<compile_context>
chip_gen: v6e
topology: v6e:2x2x1
jax: 0.10.0
libtpu: 0.0.40
codegen_flags: <defaults>
</compile_context>

<pallas_src>
import math

import jax
import jax.numpy as jnp
from jax import lax
from jax.experimental import pallas as pl
from jax.experimental.pallas import tpu as pltpu


def _round_up(x, m):
    return (x + m - 1) // m * m


def _make_encoder_lstm_kernel(T, Bc, Hp, n_layers):
    """Build the fused multi-layer LSTM kernel (static shapes baked in)."""

    def kernel(*refs):
        # refs = (x, [w_ih_l, w_hh_l, b_l] * n_layers, hid, cell, gx_sc, y_sc)
        x_ref = refs[0]                                     # (T*Bc, E)   bf16
        w_ih = [refs[1 + 3 * l] for l in range(n_layers)]   # (in, 4Hp)   bf16
        w_hh = [refs[2 + 3 * l] for l in range(n_layers)]   # (Hp, 4Hp)   bf16
        bias = [refs[3 + 3 * l] for l in range(n_layers)]   # (1, 4Hp)    f32
        hid_ref = refs[1 + 3 * n_layers]                    # (L, Bc, Hp) f32
        cell_ref = refs[2 + 3 * n_layers]                   # (L, Bc, Hp) f32
        gx_sc = refs[3 + 3 * n_layers]                      # (T*Bc, 4Hp) f32
        y_sc = refs[4 + 3 * n_layers]                       # (T*Bc, Hp)  bf16

        for l in range(n_layers):  # static unroll over layers (n_layers small)
            # Hoisted input projection for ALL timesteps: one big bf16 MXU
            # GEMM with f32 accumulation, pre-summed bias folded in.
            # NOTE: y_sc (layer l-1 output) is fully consumed here before the
            # time loop below overwrites it -> no RAW hazard.
            src_ref = x_ref if l == 0 else y_sc
            gx_sc[...] = (
                jnp.dot(src_ref[...], w_ih[l][...],
                        preferred_element_type=jnp.float32)
                + bias[l][...])

            w_hh_l = w_hh[l][...]  # (Hp, 4Hp) bf16, resident across time loop

            def step(t, carry, w_hh_l=w_hh_l):
                h_prev, c_prev = carry                       # f32 (Bc, Hp)
                if isinstance(t, int):                       # fully unrolled
                    off = t * Bc
                else:
                    off = pl.multiple_of(t * Bc, Bc)
                gates = gx_sc[pl.ds(off, Bc), :] + jnp.dot(
                    h_prev.astype(jnp.bfloat16), w_hh_l,
                    preferred_element_type=jnp.float32)
                # Hp is a multiple of 128 -> all gate slices are lane-aligned.
                i_g = jax.nn.sigmoid(gates[:, 0 * Hp:1 * Hp])
                f_g = jax.nn.sigmoid(gates[:, 1 * Hp:2 * Hp])
                g_g = jnp.tanh(gates[:, 2 * Hp:3 * Hp])
                o_g = jax.nn.sigmoid(gates[:, 3 * Hp:4 * Hp])
                c_new = f_g * c_prev + i_g * g_g
                h_new = o_g * jnp.tanh(c_new)
                # lane-dense store; stays in VMEM as next layer's input
                y_sc[pl.ds(off, Bc), :] = h_new.astype(jnp.bfloat16)
                return h_new, c_new

            h0 = jnp.zeros((Bc, Hp), jnp.float32)
            c0 = jnp.zeros((Bc, Hp), jnp.float32)
            if T <= 16:
                # Full static unroll: static slice offsets, best LLO schedule.
                h_fin, c_fin = h0, c0
                for t in range(T):
                    h_fin, c_fin = step(t, (h_fin, c_fin))
            else:
                h_fin, c_fin = lax.fori_loop(0, T, step, (h0, c0), unroll=8)

            hid_ref[l] = h_fin
            cell_ref[l] = c_fin

    return kernel


def encoder_lstm(x, layers, T, B, H):
    """Fused multi-layer LSTM.

    x: (T, B, E) float32 embedded inputs (time-major).
    layers: list of dicts with kernel-ready (padded / bf16) params
            {w_ih_t: (in_dim, 4Hp), w_hh_t: (Hp, 4Hp), bias: (1, 4Hp)}.
    Returns: hidden (n_layers, B, H), cell (n_layers, B, H) float32.
    """
    n_layers = len(layers)
    Hp = layers[0]["w_hh_t"].shape[0]
    G = 4 * Hp
    E = x.shape[-1]

    # Split the batch across two TensorCores (v7x) when each block still has
    # full sublane occupancy; otherwise run a single block.
    n_split = 2 if B >= 16 else 1
    Bp = _round_up(B, 8 * n_split)
    Bc = Bp // n_split

    if Bp != B:
        x = jnp.pad(x, ((0, 0), (0, Bp - B), (0, 0)))
    # Per-batch-block contiguous, time-major layout: (n_split, T*Bc, E), bf16.
    x = x.reshape(T, n_split, Bc, E).transpose(1, 0, 2, 3)
    x = x.reshape(n_split, T * Bc, E).astype(jnp.bfloat16)

    operands = [x]
    in_specs = [pl.BlockSpec((None, T * Bc, E), lambda i: (i, 0, 0))]
    for lp in layers:
        in_dim = lp["w_ih_t"].shape[0]
        operands += [lp["w_ih_t"], lp["w_hh_t"], lp["bias"]]
        in_specs += [
            pl.BlockSpec((in_dim, G), lambda i: (0, 0)),
            pl.BlockSpec((Hp, G), lambda i: (0, 0)),
            pl.BlockSpec((1, G), lambda i: (0, 0)),
        ]

    # Explicit VMEM budget: double-buffered operands + outputs + scratch,
    # with headroom; clamped below the smallest physical VMEM we target.
    def nbytes(shape, dt):
        return math.prod(shape) * jnp.dtype(dt).itemsize

    footprint = 2 * nbytes((T * Bc, E), jnp.bfloat16)
    for lp in layers:
        footprint += 2 * (nbytes(lp["w_ih_t"].shape, lp["w_ih_t"].dtype)
                          + nbytes(lp["w_hh_t"].shape, lp["w_hh_t"].dtype)
                          + nbytes(lp["bias"].shape, lp["bias"].dtype))
    footprint += 2 * 2 * nbytes((n_layers, Bc, Hp), jnp.float32)   # 2 outputs
    footprint += nbytes((T * Bc, G), jnp.float32)                  # gx_sc
    footprint += nbytes((T * Bc, Hp), jnp.bfloat16)                # y_sc
    vmem_limit = int(min(max(int(footprint * 1.5) + (4 << 20), 32 << 20),
                         100 << 20))

    kernel = _make_encoder_lstm_kernel(T, Bc, Hp, n_layers)

    hidden, cell = pl.pallas_call(
        kernel,
        out_shape=(
            jax.ShapeDtypeStruct((n_split, n_layers, Bc, Hp), jnp.float32),
            jax.ShapeDtypeStruct((n_split, n_layers, Bc, Hp), jnp.float32),
        ),
        grid_spec=pltpu.PrefetchScalarGridSpec(
            num_scalar_prefetch=0,
            grid=(n_split,),
            in_specs=in_specs,
            out_specs=(
                pl.BlockSpec((None, n_layers, Bc, Hp), lambda i: (i, 0, 0, 0)),
                pl.BlockSpec((None, n_layers, Bc, Hp), lambda i: (i, 0, 0, 0)),
            ),
            scratch_shapes=[
                pltpu.VMEM((T * Bc, G), jnp.float32),    # input-projection slab
                pltpu.VMEM((T * Bc, Hp), jnp.bfloat16),  # inter-layer activations
            ],
        ),
        compiler_params=pltpu.CompilerParams(
            dimension_semantics=("parallel",),
            vmem_limit_bytes=vmem_limit),
    )(*operands)

    # Undo the batch-block layout and strip the (Bp, Hp) zero padding.
    hidden = hidden.transpose(1, 0, 2, 3).reshape(n_layers, Bp, Hp)[:, :B, :H]
    cell = cell.transpose(1, 0, 2, 3).reshape(n_layers, Bp, Hp)[:, :B, :H]
    return hidden, cell


def _kernel_layout(w_ih, w_hh, b_ih, b_hh, H, Hp, pad_input):
    """PyTorch-layout LSTM params -> kernel-ready (gate-padded, transposed, bf16).

    Each of the 4 gate blocks is zero-padded from H to Hp rows so gate slices
    are lane-aligned; padded lanes provably stay zero through the recurrence.
    """
    in_dim = w_ih.shape[1]
    pad_h = Hp - H
    w_ih4 = jnp.pad(w_ih.reshape(4, H, in_dim), ((0, 0), (0, pad_h), (0, 0)))
    w_hh4 = jnp.pad(w_hh.reshape(4, H, H),
                    ((0, 0), (0, pad_h), (0, pad_h)))
    b4 = jnp.pad((b_ih + b_hh).reshape(4, H), ((0, 0), (0, pad_h)))
    if pad_input:  # layers > 0 consume the Hp-padded hidden activations
        w_ih4 = jnp.pad(w_ih4, ((0, 0), (0, 0), (0, pad_h)))
    w_ih_t = jnp.transpose(w_ih4.reshape(4 * Hp, -1)).astype(jnp.bfloat16)
    w_hh_t = jnp.transpose(w_hh4.reshape(4 * Hp, Hp)).astype(jnp.bfloat16)
    bias = b4.reshape(1, 4 * Hp).astype(jnp.float32)
    return w_ih_t, w_hh_t, bias


def init_encoder_params(key, vocab_length, embedding_dim, hidden_dim, n_layers):
    """Params mirroring the nn.Module, pre-laid-out for the kernel (done once)."""
    params = {"hidden_dim": hidden_dim}
    k_emb, key = jax.random.split(key)
    params["embedding"] = jax.random.normal(
        k_emb, (vocab_length, embedding_dim), jnp.float32) * 0.1

    Hp = _round_up(hidden_dim, 128)
    bound = 1.0 / float(hidden_dim) ** 0.5
    layers = []
    for layer in range(n_layers):
        in_dim = embedding_dim if layer == 0 else hidden_dim
        k1, k2, k3, k4, key = jax.random.split(key, 5)
        w_ih = jax.random.uniform(k1, (4 * hidden_dim, in_dim),
                                  jnp.float32, -bound, bound)
        w_hh = jax.random.uniform(k2, (4 * hidden_dim, hidden_dim),
                                  jnp.float32, -bound, bound)
        b_ih = jax.random.uniform(k3, (4 * hidden_dim,),
                                  jnp.float32, -bound, bound)
        b_hh = jax.random.uniform(k4, (4 * hidden_dim,),
                                  jnp.float32, -bound, bound)
        w_ih_t, w_hh_t, bias = _kernel_layout(
            w_ih, w_hh, b_ih, b_hh, hidden_dim, Hp, pad_input=(layer > 0))
        layers.append({
            # Kernel-ready layout (transposed / gate-padded / bf16), built ONCE:
            "w_ih_t": w_ih_t, "w_hh_t": w_hh_t, "bias": bias,
            # PyTorch-shaped copies kept only for the pure-JAX reference:
            "w_ih": w_ih, "w_hh": w_hh, "b_ih": b_ih, "b_hh": b_hh,
        })
    params["lstm"] = layers
    return params


def encoder_forward(params, batch):
    """batch: int32 [T, B] token ids. Returns (hidden, cell): [n_layers, B, H]."""
    T, B = batch.shape
    # Embedding lookup (XLA gather glue); eval-mode dropout is identity.
    # TODO(synk): fuse this gather into the kernel via scalar-prefetched ids.
    embed = jnp.take(params["embedding"], batch, axis=0)      # (T, B, E)
    return encoder_lstm(embed, params["lstm"], T, B, params["hidden_dim"])


def _encoder_forward_ref(params, batch):
    """Pure-JAX reference (matches PyTorch nn.LSTM eval semantics, f32)."""
    embed = jnp.take(params["embedding"], batch, axis=0)
    x = embed
    hiddens, cells = [], []
    for lp in params["lstm"]:
        w_ih, w_hh = lp["w_ih"], lp["w_hh"]
        b = lp["b_ih"] + lp["b_hh"]
        H = w_hh.shape[1]
        B = x.shape[1]

        def step(carry, x_t, w_ih=w_ih, w_hh=w_hh, b=b, H=H):
            h, c = carry
            g = (jnp.dot(x_t, w_ih.T, precision=lax.Precision.HIGHEST)
                 + jnp.dot(h, w_hh.T, precision=lax.Precision.HIGHEST) + b)
            i = jax.nn.sigmoid(g[:, 0 * H:1 * H])
            f = jax.nn.sigmoid(g[:, 1 * H:2 * H])
            gg = jnp.tanh(g[:, 2 * H:3 * H])
            o = jax.nn.sigmoid(g[:, 3 * H:4 * H])
            c = f * c + i * gg
            h = o * jnp.tanh(c)
            return (h, c), h

        init = (jnp.zeros((B, H), jnp.float32), jnp.zeros((B, H), jnp.float32))
        (h_fin, c_fin), y = lax.scan(step, init, x)
        hiddens.append(h_fin)
        cells.append(c_fin)
        x = y
    return jnp.stack(hiddens, axis=0), jnp.stack(cells, axis=0)


if __name__ == "__main__":
    VOCAB = 50
    EMBED = 32
    HIDDEN = 32
    N_LAYERS = 2
    SEQ = 8
    BATCH = 16   # exercises the 2-way batch split (one block per v7x TC)

    key = jax.random.PRNGKey(0)
    k_params, k_tokens = jax.random.split(key)
    params = init_encoder_params(k_params, VOCAB, EMBED, HIDDEN, N_LAYERS)

    tokens = jax.random.randint(k_tokens, (SEQ, BATCH), 0, VOCAB, jnp.int32)

    hidden, cell = encoder_forward(params, tokens)
    jax.block_until_ready((hidden, cell))

    assert hidden.shape == (N_LAYERS, BATCH, HIDDEN)
    assert cell.shape == (N_LAYERS, BATCH, HIDDEN)
    assert bool(jnp.all(jnp.isfinite(hidden))) and bool(jnp.all(jnp.isfinite(cell)))

    # bf16 MXU operands vs the f32 HIGHEST-precision reference -> loosened tol.
    h_ref, c_ref = _encoder_forward_ref(params, tokens)
    assert jnp.allclose(hidden, h_ref, atol=5e-2, rtol=5e-2)
    assert jnp.allclose(cell, c_ref, atol=5e-2, rtol=5e-2)

    print("KERNEL_OK")
</pallas_src>

<mosaic_0001>
module attributes {stable_mosaic.version = 11 : i64} {
  func.func @kernel(%arg0: i32, %arg1: memref<1x64x32xbf16, #tpu.memory_space<vmem>>, %arg2: memref<32x512xbf16, #tpu.memory_space<vmem>>, %arg3: memref<128x512xbf16, #tpu.memory_space<vmem>>, %arg4: memref<1x512xf32, #tpu.memory_space<vmem>>, %arg5: memref<128x512xbf16, #tpu.memory_space<vmem>>, %arg6: memref<128x512xbf16, #tpu.memory_space<vmem>>, %arg7: memref<1x512xf32, #tpu.memory_space<vmem>>, %arg8: memref<1x2x8x128xf32, #tpu.memory_space<vmem>>, %arg9: memref<1x2x8x128xf32, #tpu.memory_space<vmem>>, %arg10: memref<64x512xf32, #tpu.memory_space<vmem>>, %arg11: memref<64x128xbf16, #tpu.memory_space<vmem>>) attributes {dimension_semantics = [#tpu.dimension_semantics<parallel>], iteration_bounds = array<i64: 2>, scalar_prefetch = 0 : i64, scratch_operands = 2 : i64, tpu.core_type = #tpu.core_type<tc>, window_params = [{transform_indices = @transform_0, window_bounds = array<i64: 1, 64, 32>}, {pipeline_mode = #tpu.pipeline_mode<synchronous>, transform_indices = @transform_1, window_bounds = array<i64: 32, 512>}, {pipeline_mode = #tpu.pipeline_mode<synchronous>, transform_indices = @transform_2, window_bounds = array<i64: 128, 512>}, {pipeline_mode = #tpu.pipeline_mode<synchronous>, transform_indices = @transform_3, window_bounds = array<i64: 1, 512>}, {pipeline_mode = #tpu.pipeline_mode<synchronous>, transform_indices = @transform_4, window_bounds = array<i64: 128, 512>}, {pipeline_mode = #tpu.pipeline_mode<synchronous>, transform_indices = @transform_5, window_bounds = array<i64: 128, 512>}, {pipeline_mode = #tpu.pipeline_mode<synchronous>, transform_indices = @transform_6, window_bounds = array<i64: 1, 512>}, {transform_indices = @transform_7, window_bounds = array<i64: 1, 2, 8, 128>}, {transform_indices = @transform_8, window_bounds = array<i64: 1, 2, 8, 128>}]} {
    %c0 = arith.constant 0 : index
    %c0_0 = arith.constant 0 : index
    %c0_1 = arith.constant 0 : index
    %0 = vector.load %arg1[%c0, %c0_0, %c0_1] : memref<1x64x32xbf16, #tpu.memory_space<vmem>>, vector<1x64x32xbf16>
    %1 = vector.shape_cast %0 : vector<1x64x32xbf16> to vector<64x32xbf16>
    %c0_2 = arith.constant 0 : index
    %c0_3 = arith.constant 0 : index
    %2 = vector.load %arg2[%c0_2, %c0_3] : memref<32x512xbf16, #tpu.memory_space<vmem>>, vector<32x512xbf16>
    %cst = arith.constant dense<0.000000e+00> : vector<64x512xf32>
    %3 = tpu.matmul %1, %2, %cst {dimension_numbers = #tpu.dot_dimension_numbers<[1], [0], [0], [1], [0, 0, 1, 1], [], []>} : vector<64x32xbf16>, vector<32x512xbf16>, vector<64x512xf32> -> vector<64x512xf32>
    %c0_4 = arith.constant 0 : index
    %c0_5 = arith.constant 0 : index
    %4 = vector.load %arg4[%c0_4, %c0_5] : memref<1x512xf32, #tpu.memory_space<vmem>>, vector<1x512xf32>
    %5 = vector.broadcast %4 : vector<1x512xf32> to vector<64x512xf32>
    %6 = arith.addf %3, %5 : vector<64x512xf32>
    %c0_6 = arith.constant 0 : index
    %c0_7 = arith.constant 0 : index
    %7 = vector.load %arg10[%c0_6, %c0_7] : memref<64x512xf32, #tpu.memory_space<vmem>>, vector<64x512xf32>
    tpu.vector_store %arg10[%c0_6, %c0_7], %6 {strides = array<i32>} : memref<64x512xf32, #tpu.memory_space<vmem>>, vector<64x512xf32>,
    %c0_8 = arith.constant 0 : index
    %c0_9 = arith.constant 0 : index
    %8 = vector.load %arg3[%c0_8, %c0_9] : memref<128x512xbf16, #tpu.memory_space<vmem>>, vector<128x512xbf16>
    %cst_10 = arith.constant 0.000000e+00 : f32
    %9 = vector.broadcast %cst_10 : f32 to vector<8x128xf32>
    %cst_11 = arith.constant 0.000000e+00 : f32
    %10 = vector.broadcast %cst_11 : f32 to vector<8x128xf32>
    %c0_12 = arith.constant 0 : index
    %c0_13 = arith.constant 0 : index
    %11 = vector.load %arg10[%c0_12, %c0_13] : memref<64x512xf32, #tpu.memory_space<vmem>>, vector<8x512xf32>
    %12 = arith.truncf %9 : vector<8x128xf32> to vector<8x128xbf16>
    %cst_14 = arith.constant dense<0.000000e+00> : vector<8x512xf32>
    %13 = tpu.matmul %12, %8, %cst_14 {dimension_numbers = #tpu.dot_dimension_numbers<[1], [0], [0], [1], [0, 0, 1, 1], [], []>} : vector<8x128xbf16>, vector<128x512xbf16>, vector<8x512xf32> -> vector<8x512xf32>
    %14 = arith.addf %11, %13 : vector<8x512xf32>
    %15 = vector.extract_strided_slice %14 {offsets = [0, 0], sizes = [8, 128], strides = [1, 1]} : vector<8x512xf32> to vector<8x128xf32>
    %16 = arith.negf %15 : vector<8x128xf32>
    %17 = math.exp %16 : vector<8x128xf32>
    %cst_15 = arith.constant 1.000000e+00 : f32
    %18 = vector.broadcast %cst_15 : f32 to vector<8x128xf32>
    %19 = arith.addf %18, %17 : vector<8x128xf32>
    %20 = arith.divf %18, %19 : vector<8x128xf32>
    %21 = vector.extract_strided_slice %14 {offsets = [0, 128], sizes = [8, 128], strides = [1, 1]} : vector<8x512xf32> to vector<8x128xf32>
    %22 = arith.negf %21 : vector<8x128xf32>
    %23 = math.exp %22 : vector<8x128xf32>
    %cst_16 = arith.constant 1.000000e+00 : f32
    %24 = vector.broadcast %cst_16 : f32 to vector<8x128xf32>
    %25 = arith.addf %24, %23 : vector<8x128xf32>
    %26 = arith.divf %24, %25 : vector<8x128xf32>
    %27 = vector.extract_strided_slice %14 {offsets = [0, 256], sizes = [8, 128], strides = [1, 1]} : vector<8x512xf32> to vector<8x128xf32>
    %28 = math.tanh %27 : vector<8x128xf32>
    %29 = vector.extract_strided_slice %14 {offsets = [0, 384], sizes = [8, 128], strides = [1, 1]} : vector<8x512xf32> to vector<8x128xf32>
    %30 = arith.negf %29 : vector<8x128xf32>
    %31 = math.exp %30 : vector<8x128xf32>
    %cst_17 = arith.constant 1.000000e+00 : f32
    %32 = vector.broadcast %cst_17 : f32 to vector<8x128xf32>
    %33 = arith.addf %32, %31 : vector<8x128xf32>
    %34 = arith.divf %32, %33 : vector<8x128xf32>
    %35 = arith.mulf %26, %10 : vector<8x128xf32>
    %36 = arith.mulf %20, %28 : vector<8x128xf32>
    %37 = arith.addf %35, %36 : vector<8x128xf32>
    %38 = math.tanh %37 : vector<8x128xf32>
    %39 = arith.mulf %34, %38 : vector<8x128xf32>
    %40 = arith.truncf %39 : vector<8x128xf32> to vector<8x128xbf16>
    %c0_18 = arith.constant 0 : index
    %c0_19 = arith.constant 0 : index
    %41 = vector.load %arg11[%c0_18, %c0_19] : memref<64x128xbf16, #tpu.memory_space<vmem>>, vector<8x128xbf16>
    tpu.vector_store %arg11[%c0_18, %c0_19], %40 {strides = array<i32>} : memref<64x128xbf16, #tpu.memory_space<vmem>>, vector<8x128xbf16>,
    %c8 = arith.constant 8 : index
    %c0_20 = arith.constant 0 : index
    %42 = vector.load %arg10[%c8, %c0_20] : memref<64x512xf32, #tpu.memory_space<vmem>>, vector<8x512xf32>
    %43 = arith.truncf %39 : vector<8x128xf32> to vector<8x128xbf16>
    %cst_21 = arith.constant dense<0.000000e+00> : vector<8x512xf32>
    %44 = tpu.matmul %43, %8, %cst_21 {dimension_numbers = #tpu.dot_dimension_numbers<[1], [0], [0], [1], [0, 0, 1, 1], [], []>} : vector<8x128xbf16>, vector<128x512xbf16>, vector<8x512xf32> -> vector<8x512xf32>
    %45 = arith.addf %42, %44 : vector<8x512xf32>
    %46 = vector.extract_strided_slice %45 {offsets = [0, 0], sizes = [8, 128], strides = [1, 1]} : vector<8x512xf32> to vector<8x128xf32>
    %47 = arith.negf %46 : vector<8x128xf32>
    %48 = math.exp %47 : vector<8x128xf32>
    %cst_22 = arith.constant 1.000000e+00 : f32
    %49 = vector.broadcast %cst_22 : f32 to vector<8x128xf32>
    %50 = arith.addf %49, %48 : vector<8x128xf32>
    %51 = arith.divf %49, %50 : vector<8x128xf32>
    %52 = vector.extract_strided_slice %45 {offsets = [0, 128], sizes = [8, 128], strides = [1, 1]} : vector<8x512xf32> to vector<8x128xf32>
    %53 = arith.negf %52 : vector<8x128xf32>
    %54 = math.exp %53 : vector<8x128xf32>
    %cst_23 = arith.constant 1.000000e+00 : f32
    %55 = vector.broadcast %cst_23 : f32 to vector<8x128xf32>
    %56 = arith.addf %55, %54 : vector<8x128xf32>
    %57 = arith.divf %55, %56 : vector<8x128xf32>
    %58 = vector.extract_strided_slice %45 {offsets = [0, 256], sizes = [8, 128], strides = [1, 1]} : vector<8x512xf32> to vector<8x128xf32>
    %59 = math.tanh %58 : vector<8x128xf32>
    %60 = vector.extract_strided_slice %45 {offsets = [0, 384], sizes = [8, 128], strides = [1, 1]} : vector<8x512xf32> to vector<8x128xf32>
    %61 = arith.negf %60 : vector<8x128xf32>
    %62 = math.exp %61 : vector<8x128xf32>
    %cst_24 = arith.constant 1.000000e+00 : f32
    %63 = vector.broadcast %cst_24 : f32 to vector<8x128xf32>
    %64 = arith.addf %63, %62 : vector<8x128xf32>
    %65 = arith.divf %63, %64 : vector<8x128xf32>
    %66 = arith.mulf %57, %37 : vector<8x128xf32>
    %67 = arith.mulf %51, %59 : vector<8x128xf32>
    %68 = arith.addf %66, %67 : vector<8x128xf32>
    %69 = math.tanh %68 : vector<8x128xf32>
    %70 = arith.mulf %65, %69 : vector<8x128xf32>
    %71 = arith.truncf %70 : vector<8x128xf32> to vector<8x128xbf16>
    %c8_25 = arith.constant 8 : index
    %c0_26 = arith.constant 0 : index
    %72 = vector.load %arg11[%c8_25, %c0_26] : memref<64x128xbf16, #tpu.memory_space<vmem>>, vector<8x128xbf16>
    tpu.vector_store %arg11[%c8_25, %c0_26], %71 {strides = array<i32>} : memref<64x128xbf16, #tpu.memory_space<vmem>>, vector<8x128xbf16>,
    %c16 = arith.constant 16 : index
    %c0_27 = arith.constant 0 : index
    %73 = vector.load %arg10[%c16, %c0_27] : memref<64x512xf32, #tpu.memory_space<vmem>>, vector<8x512xf32>
    %74 = arith.truncf %70 : vector<8x128xf32> to vector<8x128xbf16>
    %cst_28 = arith.constant dense<0.000000e+00> : vector<8x512xf32>
    %75 = tpu.matmul %74, %8, %cst_28 {dimension_numbers = #tpu.dot_dimension_numbers<[1], [0], [0], [1], [0, 0, 1, 1], [], []>} : vector<8x128xbf16>, vector<128x512xbf16>, vector<8x512xf32> -> vector<8x512xf32>
    %76 = arith.addf %73, %75 : vector<8x512xf32>
    %77 = vector.extract_strided_slice %76 {offsets = [0, 0], sizes = [8, 128], strides = [1, 1]} : vector<8x512xf32> to vector<8x128xf32>
    %78 = arith.negf %77 : vector<8x128xf32>
    %79 = math.exp %78 : vector<8x128xf32>
    %cst_29 = arith.constant 1.000000e+00 : f32
    %80 = vector.broadcast %cst_29 : f32 to vector<8x128xf32>
    %81 = arith.addf %80, %79 : vector<8x128xf32>
    %82 = arith.divf %80, %81 : vector<8x128xf32>
    %83 = vector.extract_strided_slice %76 {offsets = [0, 128], sizes = [8, 128], strides = [1, 1]} : vector<8x512xf32> to vector<8x128xf32>
    %84 = arith.negf %83 : vector<8x128xf32>
    %85 = math.exp %84 : vector<8x128xf32>
    %cst_30 = arith.constant 1.000000e+00 : f32
    %86 = vector.broadcast %cst_30 : f32 to vector<8x128xf32>
    %87 = arith.addf %86, %85 : vector<8x128xf32>
    %88 = arith.divf %86, %87 : vector<8x128xf32>
    %89 = vector.extract_strided_slice %76 {offsets = [0, 256], sizes = [8, 128], strides = [1, 1]} : vector<8x512xf32> to vector<8x128xf32>
    %90 = math.tanh %89 : vector<8x128xf32>
    %91 = vector.extract_strided_slice %76 {offsets = [0, 384], sizes = [8, 128], strides = [1, 1]} : vector<8x512xf32> to vector<8x128xf32>
    %92 = arith.negf %91 : vector<8x128xf32>
    %93 = math.exp %92 : vector<8x128xf32>
    %cst_31 = arith.constant 1.000000e+00 : f32
    %94 = vector.broadcast %cst_31 : f32 to vector<8x128xf32>
    %95 = arith.addf %94, %93 : vector<8x128xf32>
    %96 = arith.divf %94, %95 : vector<8x128xf32>
    %97 = arith.mulf %88, %68 : vector<8x128xf32>
    %98 = arith.mulf %82, %90 : vector<8x128xf32>
    %99 = arith.addf %97, %98 : vector<8x128xf32>
    %100 = math.tanh %99 : vector<8x128xf32>
    %101 = arith.mulf %96, %100 : vector<8x128xf32>
    %102 = arith.truncf %101 : vector<8x128xf32> to vector<8x128xbf16>
    %c16_32 = arith.constant 16 : index
    %c0_33 = arith.constant 0 : index
    %103 = vector.load %arg11[%c16_32, %c0_33] : memref<64x128xbf16, #tpu.memory_space<vmem>>, vector<8x128xbf16>
    tpu.vector_store %arg11[%c16_32, %c0_33], %102 {strides = array<i32>} : memref<64x128xbf16, #tpu.memory_space<vmem>>, vector<8x128xbf16>,
    %c24 = arith.constant 24 : index
    %c0_34 = arith.constant 0 : index
    %104 = vector.load %arg10[%c24, %c0_34] : memref<64x512xf32, #tpu.memory_space<vmem>>, vector<8x512xf32>
    %105 = arith.truncf %101 : vector<8x128xf32> to vector<8x128xbf16>
    %cst_35 = arith.constant dense<0.000000e+00> : vector<8x512xf32>
    %106 = tpu.matmul %105, %8, %cst_35 {dimension_numbers = #tpu.dot_dimension_numbers<[1], [0], [0], [1], [0, 0, 1, 1], [], []>} : vector<8x128xbf16>, vector<128x512xbf16>, vector<8x512xf32> -> vector<8x512xf32>
    %107 = arith.addf %104, %106 : vector<8x512xf32>
    %108 = vector.extract_strided_slice %107 {offsets = [0, 0], sizes = [8, 128], strides = [1, 1]} : vector<8x512xf32> to vector<8x128xf32>
    %109 = arith.negf %108 : vector<8x128xf32>
    %110 = math.exp %109 : vector<8x128xf32>
    %cst_36 = arith.constant 1.000000e+00 : f32
    %111 = vector.broadcast %cst_36 : f32 to vector<8x128xf32>
    %112 = arith.addf %111, %110 : vector<8x128xf32>
    %113 = arith.divf %111, %112 : vector<8x128xf32>
    %114 = vector.extract_strided_slice %107 {offsets = [0, 128], sizes = [8, 128], strides = [1, 1]} : vector<8x512xf32> to vector<8x128xf32>
    %115 = arith.negf %114 : vector<8x128xf32>
    %116 = math.exp %115 : vector<8x128xf32>
    %cst_37 = arith.constant 1.000000e+00 : f32
    %117 = vector.broadcast %cst_37 : f32 to vector<8x128xf32>
    %118 = arith.addf %117, %116 : vector<8x128xf32>
    %119 = arith.divf %117, %118 : vector<8x128xf32>
    %120 = vector.extract_strided_slice %107 {offsets = [0, 256], sizes = [8, 128], strides = [1, 1]} : vector<8x512xf32> to vector<8x128xf32>
    %121 = math.tanh %120 : vector<8x128xf32>
    %122 = vector.extract_strided_slice %107 {offsets = [0, 384], sizes = [8, 128], strides = [1, 1]} : vector<8x512xf32> to vector<8x128xf32>
    %123 = arith.negf %122 : vector<8x128xf32>
    %124 = math.exp %123 : vector<8x128xf32>
    %cst_38 = arith.constant 1.000000e+00 : f32
    %125 = vector.broadcast %cst_38 : f32 to vector<8x128xf32>
    %126 = arith.addf %125, %124 : vector<8x128xf32>
    %127 = arith.divf %125, %126 : vector<8x128xf32>
    %128 = arith.mulf %119, %99 : vector<8x128xf32>
    %129 = arith.mulf %113, %121 : vector<8x128xf32>
    %130 = arith.addf %128, %129 : vector<8x128xf32>
    %131 = math.tanh %130 : vector<8x128xf32>
    %132 = arith.mulf %127, %131 : vector<8x128xf32>
    %133 = arith.truncf %132 : vector<8x128xf32> to vector<8x128xbf16>
    %c24_39 = arith.constant 24 : index
    %c0_40 = arith.constant 0 : index
    %134 = vector.load %arg11[%c24_39, %c0_40] : memref<64x128xbf16, #tpu.memory_space<vmem>>, vector<8x128xbf16>
    tpu.vector_store %arg11[%c24_39, %c0_40], %133 {strides = array<i32>} : memref<64x128xbf16, #tpu.memory_space<vmem>>, vector<8x128xbf16>,
    %c32 = arith.constant 32 : index
    %c0_41 = arith.constant 0 : index
    %135 = vector.load %arg10[%c32, %c0_41] : memref<64x512xf32, #tpu.memory_space<vmem>>, vector<8x512xf32>
    %136 = arith.truncf %132 : vector<8x128xf32> to vector<8x128xbf16>
    %cst_42 = arith.constant dense<0.000000e+00> : vector<8x512xf32>
    %137 = tpu.matmul %136, %8, %cst_42 {dimension_numbers = #tpu.dot_dimension_numbers<[1], [0], [0], [1], [0, 0, 1, 1], [], []>} : vector<8x128xbf16>, vector<128x512xbf16>, vector<8x512xf32> -> vector<8x512xf32>
    %138 = arith.addf %135, %137 : vector<8x512xf32>
    %139 = vector.extract_strided_slice %138 {offsets = [0, 0], sizes = [8, 128], strides = [1, 1]} : vector<8x512xf32> to vector<8x128xf32>
    %140 = arith.negf %139 : vector<8x128xf32>
    %141 = math.exp %140 : vector<8x128xf32>
    %cst_43 = arith.constant 1.000000e+00 : f32
    %142 = vector.broadcast %cst_43 : f32 to vector<8x128xf32>
    %143 = arith.addf %142, %141 : vector<8x128xf32>
    %144 = arith.divf %142, %143 : vector<8x128xf32>
    %145 = vector.extract_strided_slice %138 {offsets = [0, 128], sizes = [8, 128], strides = [1, 1]} : vector<8x512xf32> to vector<8x128xf32>
    %146 = arith.negf %145 : vector<8x128xf32>
    %147 = math.exp %146 : vector<8x128xf32>
    %cst_44 = arith.constant 1.000000e+00 : f32
    %148 = vector.broadcast %cst_44 : f32 to vector<8x128xf32>
    %149 = arith.addf %148, %147 : vector<8x128xf32>
    %150 = arith.divf %148, %149 : vector<8x128xf32>
    %151 = vector.extract_strided_slice %138 {offsets = [0, 256], sizes = [8, 128], strides = [1, 1]} : vector<8x512xf32> to vector<8x128xf32>
    %152 = math.tanh %151 : vector<8x128xf32>
    %153 = vector.extract_strided_slice %138 {offsets = [0, 384], sizes = [8, 128], strides = [1, 1]} : vector<8x512xf32> to vector<8x128xf32>
    %154 = arith.negf %153 : vector<8x128xf32>
    %155 = math.exp %154 : vector<8x128xf32>
    %cst_45 = arith.constant 1.000000e+00 : f32
    %156 = vector.broadcast %cst_45 : f32 to vector<8x128xf32>
    %157 = arith.addf %156, %155 : vector<8x128xf32>
    %158 = arith.divf %156, %157 : vector<8x128xf32>
    %159 = arith.mulf %150, %130 : vector<8x128xf32>
    %160 = arith.mulf %144, %152 : vector<8x128xf32>
    %161 = arith.addf %159, %160 : vector<8x128xf32>
    %162 = math.tanh %161 : vector<8x128xf32>
    %163 = arith.mulf %158, %162 : vector<8x128xf32>
    %164 = arith.truncf %163 : vector<8x128xf32> to vector<8x128xbf16>
    %c32_46 = arith.constant 32 : index
    %c0_47 = arith.constant 0 : index
    %165 = vector.load %arg11[%c32_46, %c0_47] : memref<64x128xbf16, #tpu.memory_space<vmem>>, vector<8x128xbf16>
    tpu.vector_store %arg11[%c32_46, %c0_47], %164 {strides = array<i32>} : memref<64x128xbf16, #tpu.memory_space<vmem>>, vector<8x128xbf16>,
    %c40 = arith.constant 40 : index
    %c0_48 = arith.constant 0 : index
    %166 = vector.load %arg10[%c40, %c0_48] : memref<64x512xf32, #tpu.memory_space<vmem>>, vector<8x512xf32>
    %167 = arith.truncf %163 : vector<8x128xf32> to vector<8x128xbf16>
    %cst_49 = arith.constant dense<0.000000e+00> : vector<8x512xf32>
    %168 = tpu.matmul %167, %8, %cst_49 {dimension_numbers = #tpu.dot_dimension_numbers<[1], [0], [0], [1], [0, 0, 1, 1], [], []>} : vector<8x128xbf16>, vector<128x512xbf16>, vector<8x512xf32> -> vector<8x512xf32>
    %169 = arith.addf %166, %168 : vector<8x512xf32>
    %170 = vector.extract_strided_slice %169 {offsets = [0, 0], sizes = [8, 128], strides = [1, 1]} : vector<8x512xf32> to vector<8x128xf32>
    %171 = arith.negf %170 : vector<8x128xf32>
    %172 = math.exp %171 : vector<8x128xf32>
    %cst_50 = arith.constant 1.000000e+00 : f32
    %173 = vector.broadcast %cst_50 : f32 to vector<8x128xf32>
    %174 = arith.addf %173, %172 : vector<8x128xf32>
    %175 = arith.divf %173, %174 : vector<8x128xf32>
    %176 = vector.extract_strided_slice %169 {offsets = [0, 128], sizes = [8, 128], strides = [1, 1]} : vector<8x512xf32> to vector<8x128xf32>
    %177 = arith.negf %176 : vector<8x128xf32>
    %178 = math.exp %177 : vector<8x128xf32>
    %cst_51 = arith.constant 1.000000e+00 : f32
    %179 = vector.broadcast %cst_51 : f32 to vector<8x128xf32>
    %180 = arith.addf %179, %178 : vector<8x128xf32>
    %181 = arith.divf %179, %180 : vector<8x128xf32>
    %182 = vector.extract_strided_slice %169 {offsets = [0, 256], sizes = [8, 128], strides = [1, 1]} : vector<8x512xf32> to vector<8x128xf32>
    %183 = math.tanh %182 : vector<8x128xf32>
    %184 = vector.extract_strided_slice %169 {offsets = [0, 384], sizes = [8, 128], strides = [1, 1]} : vector<8x512xf32> to vector<8x128xf32>
    %185 = arith.negf %184 : vector<8x128xf32>
    %186 = math.exp %185 : vector<8x128xf32>
    %cst_52 = arith.constant 1.000000e+00 : f32
    %187 = vector.broadcast %cst_52 : f32 to vector<8x128xf32>
    %188 = arith.addf %187, %186 : vector<8x128xf32>
    %189 = arith.divf %187, %188 : vector<8x128xf32>
    %190 = arith.mulf %181, %161 : vector<8x128xf32>
    %191 = arith.mulf %175, %183 : vector<8x128xf32>
    %192 = arith.addf %190, %191 : vector<8x128xf32>
    %193 = math.tanh %192 : vector<8x128xf32>
    %194 = arith.mulf %189, %193 : vector<8x128xf32>
    %195 = arith.truncf %194 : vector<8x128xf32> to vector<8x128xbf16>
    %c40_53 = arith.constant 40 : index
    %c0_54 = arith.constant 0 : index
    %196 = vector.load %arg11[%c40_53, %c0_54] : memref<64x128xbf16, #tpu.memory_space<vmem>>, vector<8x128xbf16>
    tpu.vector_store %arg11[%c40_53, %c0_54], %195 {strides = array<i32>} : memref<64x128xbf16, #tpu.memory_space<vmem>>, vector<8x128xbf16>,
    %c48 = arith.constant 48 : index
    %c0_55 = arith.constant 0 : index
    %197 = vector.load %arg10[%c48, %c0_55] : memref<64x512xf32, #tpu.memory_space<vmem>>, vector<8x512xf32>
    %198 = arith.truncf %194 : vector<8x128xf32> to vector<8x128xbf16>
    %cst_56 = arith.constant dense<0.000000e+00> : vector<8x512xf32>
    %199 = tpu.matmul %198, %8, %cst_56 {dimension_numbers = #tpu.dot_dimension_numbers<[1], [0], [0], [1], [0, 0, 1, 1], [], []>} : vector<8x128xbf16>, vector<128x512xbf16>, vector<8x512xf32> -> vector<8x512xf32>
    %200 = arith.addf %197, %199 : vector<8x512xf32>
    %201 = vector.extract_strided_slice %200 {offsets = [0, 0], sizes = [8, 128], strides = [1, 1]} : vector<8x512xf32> to vector<8x128xf32>
    %202 = arith.negf %201 : vector<8x128xf32>
    %203 = math.exp %202 : vector<8x128xf32>
    %cst_57 = arith.constant 1.000000e+00 : f32
    %204 = vector.broadcast %cst_57 : f32 to vector<8x128xf32>
    %205 = arith.addf %204, %203 : vector<8x128xf32>
    %206 = arith.divf %204, %205 : vector<8x128xf32>
    %207 = vector.extract_strided_slice %200 {offsets = [0, 128], sizes = [8, 128], strides = [1, 1]} : vector<8x512xf32> to vector<8x128xf32>
    %208 = arith.negf %207 : vector<8x128xf32>
    %209 = math.exp %208 : vector<8x128xf32>
    %cst_58 = arith.constant 1.000000e+00 : f32
    %210 = vector.broadcast %cst_58 : f32 to vector<8x128xf32>
    %211 = arith.addf %210, %209 : vector<8x128xf32>
    %212 = arith.divf %210, %211 : vector<8x128xf32>
    %213 = vector.extract_strided_slice %200 {offsets = [0, 256], sizes = [8, 128], strides = [1, 1]} : vector<8x512xf32> to vector<8x128xf32>
    %214 = math.tanh %213 : vector<8x128xf32>
    %215 = vector.extract_strided_slice %200 {offsets = [0, 384], sizes = [8, 128], strides = [1, 1]} : vector<8x512xf32> to vector<8x128xf32>
    %216 = arith.negf %215 : vector<8x128xf32>
    %217 = math.exp %216 : vector<8x128xf32>
    %cst_59 = arith.constant 1.000000e+00 : f32
    %218 = vector.broadcast %cst_59 : f32 to vector<8x128xf32>
    %219 = arith.addf %218, %217 : vector<8x128xf32>
    %220 = arith.divf %218, %219 : vector<8x128xf32>
    %221 = arith.mulf %212, %192 : vector<8x128xf32>
    %222 = arith.mulf %206, %214 : vector<8x128xf32>
    %223 = arith.addf %221, %222 : vector<8x128xf32>
    %224 = math.tanh %223 : vector<8x128xf32>
    %225 = arith.mulf %220, %224 : vector<8x128xf32>
    %226 = arith.truncf %225 : vector<8x128xf32> to vector<8x128xbf16>
    %c48_60 = arith.constant 48 : index
    %c0_61 = arith.constant 0 : index
    %227 = vector.load %arg11[%c48_60, %c0_61] : memref<64x128xbf16, #tpu.memory_space<vmem>>, vector<8x128xbf16>
    tpu.vector_store %arg11[%c48_60, %c0_61], %226 {strides = array<i32>} : memref<64x128xbf16, #tpu.memory_space<vmem>>, vector<8x128xbf16>,
    %c56 = arith.constant 56 : index
    %c0_62 = arith.constant 0 : index
    %228 = vector.load %arg10[%c56, %c0_62] : memref<64x512xf32, #tpu.memory_space<vmem>>, vector<8x512xf32>
    %229 = arith.truncf %225 : vector<8x128xf32> to vector<8x128xbf16>
    %cst_63 = arith.constant dense<0.000000e+00> : vector<8x512xf32>
    %230 = tpu.matmul %229, %8, %cst_63 {dimension_numbers = #tpu.dot_dimension_numbers<[1], [0], [0], [1], [0, 0, 1, 1], [], []>} : vector<8x128xbf16>, vector<128x512xbf16>, vector<8x512xf32> -> vector<8x512xf32>
    %231 = arith.addf %228, %230 : vector<8x512xf32>
    %232 = vector.extract_strided_slice %231 {offsets = [0, 0], sizes = [8, 128], strides = [1, 1]} : vector<8x512xf32> to vector<8x128xf32>
    %233 = arith.negf %232 : vector<8x128xf32>
    %234 = math.exp %233 : vector<8x128xf32>
    %cst_64 = arith.constant 1.000000e+00 : f32
    %235 = vector.broadcast %cst_64 : f32 to vector<8x128xf32>
    %236 = arith.addf %235, %234 : vector<8x128xf32>
    %237 = arith.divf %235, %236 : vector<8x128xf32>
    %238 = vector.extract_strided_slice %231 {offsets = [0, 128], sizes = [8, 128], strides = [1, 1]} : vector<8x512xf32> to vector<8x128xf32>
    %239 = arith.negf %238 : vector<8x128xf32>
    %240 = math.exp %239 : vector<8x128xf32>
    %cst_65 = arith.constant 1.000000e+00 : f32
    %241 = vector.broadcast %cst_65 : f32 to vector<8x128xf32>
    %242 = arith.addf %241, %240 : vector<8x128xf32>
    %243 = arith.divf %241, %242 : vector<8x128xf32>
    %244 = vector.extract_strided_slice %231 {offsets = [0, 256], sizes = [8, 128], strides = [1, 1]} : vector<8x512xf32> to vector<8x128xf32>
    %245 = math.tanh %244 : vector<8x128xf32>
    %246 = vector.extract_strided_slice %231 {offsets = [0, 384], sizes = [8, 128], strides = [1, 1]} : vector<8x512xf32> to vector<8x128xf32>
    %247 = arith.negf %246 : vector<8x128xf32>
    %248 = math.exp %247 : vector<8x128xf32>
    %cst_66 = arith.constant 1.000000e+00 : f32
    %249 = vector.broadcast %cst_66 : f32 to vector<8x128xf32>
    %250 = arith.addf %249, %248 : vector<8x128xf32>
    %251 = arith.divf %249, %250 : vector<8x128xf32>
    %252 = arith.mulf %243, %223 : vector<8x128xf32>
    %253 = arith.mulf %237, %245 : vector<8x128xf32>
    %254 = arith.addf %252, %253 : vector<8x128xf32>
    %255 = math.tanh %254 : vector<8x128xf32>
    %256 = arith.mulf %251, %255 : vector<8x128xf32>
    %257 = arith.truncf %256 : vector<8x128xf32> to vector<8x128xbf16>
    %c56_67 = arith.constant 56 : index
    %c0_68 = arith.constant 0 : index
    %258 = vector.load %arg11[%c56_67, %c0_68] : memref<64x128xbf16, #tpu.memory_space<vmem>>, vector<8x128xbf16>
    tpu.vector_store %arg11[%c56_67, %c0_68], %257 {strides = array<i32>} : memref<64x128xbf16, #tpu.memory_space<vmem>>, vector<8x128xbf16>,
    %c0_69 = arith.constant 0 : index
    %c0_70 = arith.constant 0 : index
    %c0_71 = arith.constant 0 : index
    %c0_72 = arith.constant 0 : index
    %259 = vector.load %arg8[%c0_69, %c0_70, %c0_71, %c0_72] : memref<1x2x8x128xf32, #tpu.memory_space<vmem>>, vector<1x1x8x128xf32>
    %260 = vector.shape_cast %259 : vector<1x1x8x128xf32> to vector<8x128xf32>
    %261 = vector.shape_cast %256 : vector<8x128xf32> to vector<1x1x8x128xf32>
    tpu.vector_store %arg8[%c0_69, %c0_70, %c0_71, %c0_72], %261 {strides = array<i32>} : memref<1x2x8x128xf32, #tpu.memory_space<vmem>>, vector<1x1x8x128xf32>,
    %c0_73 = arith.constant 0 : index
    %c0_74 = arith.constant 0 : index
    %c0_75 = arith.constant 0 : index
    %c0_76 = arith.constant 0 : index
    %262 = vector.load %arg9[%c0_73, %c0_74, %c0_75, %c0_76] : memref<1x2x8x128xf32, #tpu.memory_space<vmem>>, vector<1x1x8x128xf32>
    %263 = vector.shape_cast %262 : vector<1x1x8x128xf32> to vector<8x128xf32>
    %264 = vector.shape_cast %254 : vector<8x128xf32> to vector<1x1x8x128xf32>
    tpu.vector_store %arg9[%c0_73, %c0_74, %c0_75, %c0_76], %264 {strides = array<i32>} : memref<1x2x8x128xf32, #tpu.memory_space<vmem>>, vector<1x1x8x128xf32>,
    %c0_77 = arith.constant 0 : index
    %c0_78 = arith.constant 0 : index
    %265 = vector.load %arg11[%c0_77, %c0_78] : memref<64x128xbf16, #tpu.memory_space<vmem>>, vector<64x128xbf16>
    %c0_79 = arith.constant 0 : index
    %c0_80 = arith.constant 0 : index
    %266 = vector.load %arg5[%c0_79, %c0_80] : memref<128x512xbf16, #tpu.memory_space<vmem>>, vector<128x512xbf16>
    %cst_81 = arith.constant dense<0.000000e+00> : vector<64x512xf32>
    %267 = tpu.matmul %265, %266, %cst_81 {dimension_numbers = #tpu.dot_dimension_numbers<[1], [0], [0], [1], [0, 0, 1, 1], [], []>} : vector<64x128xbf16>, vector<128x512xbf16>, vector<64x512xf32> -> vector<64x512xf32>
    %c0_82 = arith.constant 0 : index
    %c0_83 = arith.constant 0 : index
    %268 = vector.load %arg7[%c0_82, %c0_83] : memref<1x512xf32, #tpu.memory_space<vmem>>, vector<1x512xf32>
    %269 = vector.broadcast %268 : vector<1x512xf32> to vector<64x512xf32>
    %270 = arith.addf %267, %269 : vector<64x512xf32>
    %c0_84 = arith.constant 0 : index
    %c0_85 = arith.constant 0 : index
    %271 = vector.load %arg10[%c0_84, %c0_85] : memref<64x512xf32, #tpu.memory_space<vmem>>, vector<64x512xf32>
    tpu.vector_store %arg10[%c0_84, %c0_85], %270 {strides = array<i32>} : memref<64x512xf32, #tpu.memory_space<vmem>>, vector<64x512xf32>,
    %c0_86 = arith.constant 0 : index
    %c0_87 = arith.constant 0 : index
    %272 = vector.load %arg6[%c0_86, %c0_87] : memref<128x512xbf16, #tpu.memory_space<vmem>>, vector<128x512xbf16>
    %cst_88 = arith.constant 0.000000e+00 : f32
    %273 = vector.broadcast %cst_88 : f32 to vector<8x128xf32>
    %cst_89 = arith.constant 0.000000e+00 : f32
    %274 = vector.broadcast %cst_89 : f32 to vector<8x128xf32>
    %c0_90 = arith.constant 0 : index
    %c0_91 = arith.constant 0 : index
    %275 = vector.load %arg10[%c0_90, %c0_91] : memref<64x512xf32, #tpu.memory_space<vmem>>, vector<8x512xf32>
    %276 = arith.truncf %273 : vector<8x128xf32> to vector<8x128xbf16>
    %cst_92 = arith.constant dense<0.000000e+00> : vector<8x512xf32>
    %277 = tpu.matmul %276, %272, %cst_92 {dimension_numbers = #tpu.dot_dimension_numbers<[1], [0], [0], [1], [0, 0, 1, 1], [], []>} : vector<8x128xbf16>, vector<128x512xbf16>, vector<8x512xf32> -> vector<8x512xf32>
    %278 = arith.addf %275, %277 : vector<8x512xf32>
    %279 = vector.extract_strided_slice %278 {offsets = [0, 0], sizes = [8, 128], strides = [1, 1]} : vector<8x512xf32> to vector<8x128xf32>
    %280 = arith.negf %279 : vector<8x128xf32>
    %281 = math.exp %280 : vector<8x128xf32>
    %cst_93 = arith.constant 1.000000e+00 : f32
    %282 = vector.broadcast %cst_93 : f32 to vector<8x128xf32>
    %283 = arith.addf %282, %281 : vector<8x128xf32>
    %284 = arith.divf %282, %283 : vector<8x128xf32>
    %285 = vector.extract_strided_slice %278 {offsets = [0, 128], sizes = [8, 128], strides = [1, 1]} : vector<8x512xf32> to vector<8x128xf32>
    %286 = arith.negf %285 : vector<8x128xf32>
    %287 = math.exp %286 : vector<8x128xf32>
    %cst_94 = arith.constant 1.000000e+00 : f32
    %288 = vector.broadcast %cst_94 : f32 to vector<8x128xf32>
    %289 = arith.addf %288, %287 : vector<8x128xf32>
    %290 = arith.divf %288, %289 : vector<8x128xf32>
    %291 = vector.extract_strided_slice %278 {offsets = [0, 256], sizes = [8, 128], strides = [1, 1]} : vector<8x512xf32> to vector<8x128xf32>
    %292 = math.tanh %291 : vector<8x128xf32>
    %293 = vector.extract_strided_slice %278 {offsets = [0, 384], sizes = [8, 128], strides = [1, 1]} : vector<8x512xf32> to vector<8x128xf32>
    %294 = arith.negf %293 : vector<8x128xf32>
    %295 = math.exp %294 : vector<8x128xf32>
    %cst_95 = arith.constant 1.000000e+00 : f32
    %296 = vector.broadcast %cst_95 : f32 to vector<8x128xf32>
    %297 = arith.addf %296, %295 : vector<8x128xf32>
    %298 = arith.divf %296, %297 : vector<8x128xf32>
    %299 = arith.mulf %290, %274 : vector<8x128xf32>
    %300 = arith.mulf %284, %292 : vector<8x128xf32>
    %301 = arith.addf %299, %300 : vector<8x128xf32>
    %302 = math.tanh %301 : vector<8x128xf32>
    %303 = arith.mulf %298, %302 : vector<8x128xf32>
    %304 = arith.truncf %303 : vector<8x128xf32> to vector<8x128xbf16>
    %c0_96 = arith.constant 0 : index
    %c0_97 = arith.constant 0 : index
    %305 = vector.load %arg11[%c0_96, %c0_97] : memref<64x128xbf16, #tpu.memory_space<vmem>>, vector<8x128xbf16>
    tpu.vector_store %arg11[%c0_96, %c0_97], %304 {strides = array<i32>} : memref<64x128xbf16, #tpu.memory_space<vmem>>, vector<8x128xbf16>,
    %c8_98 = arith.constant 8 : index
    %c0_99 = arith.constant 0 : index
    %306 = vector.load %arg10[%c8_98, %c0_99] : memref<64x512xf32, #tpu.memory_space<vmem>>, vector<8x512xf32>
    %307 = arith.truncf %303 : vector<8x128xf32> to vector<8x128xbf16>
    %cst_100 = arith.constant dense<0.000000e+00> : vector<8x512xf32>
    %308 = tpu.matmul %307, %272, %cst_100 {dimension_numbers = #tpu.dot_dimension_numbers<[1], [0], [0], [1], [0, 0, 1, 1], [], []>} : vector<8x128xbf16>, vector<128x512xbf16>, vector<8x512xf32> -> vector<8x512xf32>
    %309 = arith.addf %306, %308 : vector<8x512xf32>
    %310 = vector.extract_strided_slice %309 {offsets = [0, 0], sizes = [8, 128], strides = [1, 1]} : vector<8x512xf32> to vector<8x128xf32>
    %311 = arith.negf %310 : vector<8x128xf32>
    %312 = math.exp %311 : vector<8x128xf32>
    %cst_101 = arith.constant 1.000000e+00 : f32
    %313 = vector.broadcast %cst_101 : f32 to vector<8x128xf32>
    %314 = arith.addf %313, %312 : vector<8x128xf32>
    %315 = arith.divf %313, %314 : vector<8x128xf32>
    %316 = vector.extract_strided_slice %309 {offsets = [0, 128], sizes = [8, 128], strides = [1, 1]} : vector<8x512xf32> to vector<8x128xf32>
    %317 = arith.negf %316 : vector<8x128xf32>
    %318 = math.exp %317 : vector<8x128xf32>
    %cst_102 = arith.constant 1.000000e+00 : f32
    %319 = vector.broadcast %cst_102 : f32 to vector<8x128xf32>
    %320 = arith.addf %319, %318 : vector<8x128xf32>
    %321 = arith.divf %319, %320 : vector<8x128xf32>
    %322 = vector.extract_strided_slice %309 {offsets = [0, 256], sizes = [8, 128], strides = [1, 1]} : vector<8x512xf32> to vector<8x128xf32>
    %323 = math.tanh %322 : vector<8x128xf32>
    %324 = vector.extract_strided_slice %309 {offsets = [0, 384], sizes = [8, 128], strides = [1, 1]} : vector<8x512xf32> to vector<8x128xf32>
    %325 = arith.negf %324 : vector<8x128xf32>
    %326 = math.exp %325 : vector<8x128xf32>
    %cst_103 = arith.constant 1.000000e+00 : f32
    %327 = vector.broadcast %cst_103 : f32 to vector<8x128xf32>
    %328 = arith.addf %327, %326 : vector<8x128xf32>
    %329 = arith.divf %327, %328 : vector<8x128xf32>
    %330 = arith.mulf %321, %301 : vector<8x128xf32>
    %331 = arith.mulf %315, %323 : vector<8x128xf32>
    %332 = arith.addf %330, %331 : vector<8x128xf32>
    %333 = math.tanh %332 : vector<8x128xf32>
    %334 = arith.mulf %329, %333 : vector<8x128xf32>
    %335 = arith.truncf %334 : vector<8x128xf32> to vector<8x128xbf16>
    %c8_104 = arith.constant 8 : index
    %c0_105 = arith.constant 0 : index
    %336 = vector.load %arg11[%c8_104, %c0_105] : memref<64x128xbf16, #tpu.memory_space<vmem>>, vector<8x128xbf16>
    tpu.vector_store %arg11[%c8_104, %c0_105], %335 {strides = array<i32>} : memref<64x128xbf16, #tpu.memory_space<vmem>>, vector<8x128xbf16>,
    %c16_106 = arith.constant 16 : index
    %c0_107 = arith.constant 0 : index
    %337 = vector.load %arg10[%c16_106, %c0_107] : memref<64x512xf32, #tpu.memory_space<vmem>>, vector<8x512xf32>
    %338 = arith.truncf %334 : vector<8x128xf32> to vector<8x128xbf16>
    %cst_108 = arith.constant dense<0.000000e+00> : vector<8x512xf32>
    %339 = tpu.matmul %338, %272, %cst_108 {dimension_numbers = #tpu.dot_dimension_numbers<[1], [0], [0], [1], [0, 0, 1, 1], [], []>} : vector<8x128xbf16>, vector<128x512xbf16>, vector<8x512xf32> -> vector<8x512xf32>
    %340 = arith.addf %337, %339 : vector<8x512xf32>
    %341 = vector.extract_strided_slice %340 {offsets = [0, 0], sizes = [8, 128], strides = [1, 1]} : vector<8x512xf32> to vector<8x128xf32>
    %342 = arith.negf %341 : vector<8x128xf32>
    %343 = math.exp %342 : vector<8x128xf32>
    %cst_109 = arith.constant 1.000000e+00 : f32
    %344 = vector.broadcast %cst_109 : f32 to vector<8x128xf32>
    %345 = arith.addf %344, %343 : vector<8x128xf32>
    %346 = arith.divf %344, %345 : vector<8x128xf32>
    %347 = vector.extract_strided_slice %340 {offsets = [0, 128], sizes = [8, 128], strides = [1, 1]} : vector<8x512xf32> to vector<8x128xf32>
    %348 = arith.negf %347 : vector<8x128xf32>
    %349 = math.exp %348 : vector<8x128xf32>
    %cst_110 = arith.constant 1.000000e+00 : f32
    %350 = vector.broadcast %cst_110 : f32 to vector<8x128xf32>
    %351 = arith.addf %350, %349 : vector<8x128xf32>
    %352 = arith.divf %350, %351 : vector<8x128xf32>
    %353 = vector.extract_strided_slice %340 {offsets = [0, 256], sizes = [8, 128], strides = [1, 1]} : vector<8x512xf32> to vector<8x128xf32>
    %354 = math.tanh %353 : vector<8x128xf32>
    %355 = vector.extract_strided_slice %340 {offsets = [0, 384], sizes = [8, 128], strides = [1, 1]} : vector<8x512xf32> to vector<8x128xf32>
    %356 = arith.negf %355 : vector<8x128xf32>
    %357 = math.exp %356 : vector<8x128xf32>
    %cst_111 = arith.constant 1.000000e+00 : f32
    %358 = vector.broadcast %cst_111 : f32 to vector<8x128xf32>
    %359 = arith.addf %358, %357 : vector<8x128xf32>
    %360 = arith.divf %358, %359 : vector<8x128xf32>
    %361 = arith.mulf %352, %332 : vector<8x128xf32>
    %362 = arith.mulf %346, %354 : vector<8x128xf32>
    %363 = arith.addf %361, %362 : vector<8x128xf32>
    %364 = math.tanh %363 : vector<8x128xf32>
    %365 = arith.mulf %360, %364 : vector<8x128xf32>
    %366 = arith.truncf %365 : vector<8x128xf32> to vector<8x128xbf16>
    %c16_112 = arith.constant 16 : index
    %c0_113 = arith.constant 0 : index
    %367 = vector.load %arg11[%c16_112, %c0_113] : memref<64x128xbf16, #tpu.memory_space<vmem>>, vector<8x128xbf16>
    tpu.vector_store %arg11[%c16_112, %c0_113], %366 {strides = array<i32>} : memref<64x128xbf16, #tpu.memory_space<vmem>>, vector<8x128xbf16>,
    %c24_114 = arith.constant 24 : index
    %c0_115 = arith.constant 0 : index
    %368 = vector.load %arg10[%c24_114, %c0_115] : memref<64x512xf32, #tpu.memory_space<vmem>>, vector<8x512xf32>
    %369 = arith.truncf %365 : vector<8x128xf32> to vector<8x128xbf16>
    %cst_116 = arith.constant dense<0.000000e+00> : vector<8x512xf32>
    %370 = tpu.matmul %369, %272, %cst_116 {dimension_numbers = #tpu.dot_dimension_numbers<[1], [0], [0], [1], [0, 0, 1, 1], [], []>} : vector<8x128xbf16>, vector<128x512xbf16>, vector<8x512xf32> -> vector<8x512xf32>
    %371 = arith.addf %368, %370 : vector<8x512xf32>
    %372 = vector.extract_strided_slice %371 {offsets = [0, 0], sizes = [8, 128], strides = [1, 1]} : vector<8x512xf32> to vector<8x128xf32>
    %373 = arith.negf %372 : vector<8x128xf32>
    %374 = math.exp %373 : vector<8x128xf32>
    %cst_117 = arith.constant 1.000000e+00 : f32
    %375 = vector.broadcast %cst_117 : f32 to vector<8x128xf32>
    %376 = arith.addf %375, %374 : vector<8x128xf32>
    %377 = arith.divf %375, %376 : vector<8x128xf32>
    %378 = vector.extract_strided_slice %371 {offsets = [0, 128], sizes = [8, 128], strides = [1, 1]} : vector<8x512xf32> to vector<8x128xf32>
    %379 = arith.negf %378 : vector<8x128xf32>
    %380 = math.exp %379 : vector<8x128xf32>
    %cst_118 = arith.constant 1.000000e+00 : f32
    %381 = vector.broadcast %cst_118 : f32 to vector<8x128xf32>
    %382 = arith.addf %381, %380 : vector<8x128xf32>
    %383 = arith.divf %381, %382 : vector<8x128xf32>
    %384 = vector.extract_strided_slice %371 {offsets = [0, 256], sizes = [8, 128], strides = [1, 1]} : vector<8x512xf32> to vector<8x128xf32>
    %385 = math.tanh %384 : vector<8x128xf32>
    %386 = vector.extract_strided_slice %371 {offsets = [0, 384], sizes = [8, 128], strides = [1, 1]} : vector<8x512xf32> to vector<8x128xf32>
    %387 = arith.negf %386 : vector<8x128xf32>
    %388 = math.exp %387 : vector<8x128xf32>
    %cst_119 = arith.constant 1.000000e+00 : f32
    %389 = vector.broadcast %cst_119 : f32 to vector<8x128xf32>
    %390 = arith.addf %389, %388 : vector<8x128xf32>
    %391 = arith.divf %389, %390 : vector<8x128xf32>
    %392 = arith.mulf %383, %363 : vector<8x128xf32>
    %393 = arith.mulf %377, %385 : vector<8x128xf32>
    %394 = arith.addf %392, %393 : vector<8x128xf32>
    %395 = math.tanh %394 : vector<8x128xf32>
    %396 = arith.mulf %391, %395 : vector<8x128xf32>
    %397 = arith.truncf %396 : vector<8x128xf32> to vector<8x128xbf16>
    %c24_120 = arith.constant 24 : index
    %c0_121 = arith.constant 0 : index
    %398 = vector.load %arg11[%c24_120, %c0_121] : memref<64x128xbf16, #tpu.memory_space<vmem>>, vector<8x128xbf16>
    tpu.vector_store %arg11[%c24_120, %c0_121], %397 {strides = array<i32>} : memref<64x128xbf16, #tpu.memory_space<vmem>>, vector<8x128xbf16>,
    %c32_122 = arith.constant 32 : index
    %c0_123 = arith.constant 0 : index
    %399 = vector.load %arg10[%c32_122, %c0_123] : memref<64x512xf32, #tpu.memory_space<vmem>>, vector<8x512xf32>
    %400 = arith.truncf %396 : vector<8x128xf32> to vector<8x128xbf16>
    %cst_124 = arith.constant dense<0.000000e+00> : vector<8x512xf32>
    %401 = tpu.matmul %400, %272, %cst_124 {dimension_numbers = #tpu.dot_dimension_numbers<[1], [0], [0], [1], [0, 0, 1, 1], [], []>} : vector<8x128xbf16>, vector<128x512xbf16>, vector<8x512xf32> -> vector<8x512xf32>
    %402 = arith.addf %399, %401 : vector<8x512xf32>
    %403 = vector.extract_strided_slice %402 {offsets = [0, 0], sizes = [8, 128], strides = [1, 1]} : vector<8x512xf32> to vector<8x128xf32>
    %404 = arith.negf %403 : vector<8x128xf32>
    %405 = math.exp %404 : vector<8x128xf32>
    %cst_125 = arith.constant 1.000000e+00 : f32
    %406 = vector.broadcast %cst_125 : f32 to vector<8x128xf32>
    %407 = arith.addf %406, %405 : vector<8x128xf32>
    %408 = arith.divf %406, %407 : vector<8x128xf32>
    %409 = vector.extract_strided_slice %402 {offsets = [0, 128], sizes = [8, 128], strides = [1, 1]} : vector<8x512xf32> to vector<8x128xf32>
    %410 = arith.negf %409 : vector<8x128xf32>
    %411 = math.exp %410 : vector<8x128xf32>
    %cst_126 = arith.constant 1.000000e+00 : f32
    %412 = vector.broadcast %cst_126 : f32 to vector<8x128xf32>
    %413 = arith.addf %412, %411 : vector<8x128xf32>
    %414 = arith.divf %412, %413 : vector<8x128xf32>
    %415 = vector.extract_strided_slice %402 {offsets = [0, 256], sizes = [8, 128], strides = [1, 1]} : vector<8x512xf32> to vector<8x128xf32>
    %416 = math.tanh %415 : vector<8x128xf32>
    %417 = vector.extract_strided_slice %402 {offsets = [0, 384], sizes = [8, 128], strides = [1, 1]} : vector<8x512xf32> to vector<8x128xf32>
    %418 = arith.negf %417 : vector<8x128xf32>
    %419 = math.exp %418 : vector<8x128xf32>
    %cst_127 = arith.constant 1.000000e+00 : f32
    %420 = vector.broadcast %cst_127 : f32 to vector<8x128xf32>
    %421 = arith.addf %420, %419 : vector<8x128xf32>
    %422 = arith.divf %420, %421 : vector<8x128xf32>
    %423 = arith.mulf %414, %394 : vector<8x128xf32>
    %424 = arith.mulf %408, %416 : vector<8x128xf32>
    %425 = arith.addf %423, %424 : vector<8x128xf32>
    %426 = math.tanh %425 : vector<8x128xf32>
    %427 = arith.mulf %422, %426 : vector<8x128xf32>
    %428 = arith.truncf %427 : vector<8x128xf32> to vector<8x128xbf16>
    %c32_128 = arith.constant 32 : index
    %c0_129 = arith.constant 0 : index
    %429 = vector.load %arg11[%c32_128, %c0_129] : memref<64x128xbf16, #tpu.memory_space<vmem>>, vector<8x128xbf16>
    tpu.vector_store %arg11[%c32_128, %c0_129], %428 {strides = array<i32>} : memref<64x128xbf16, #tpu.memory_space<vmem>>, vector<8x128xbf16>,
    %c40_130 = arith.constant 40 : index
    %c0_131 = arith.constant 0 : index
    %430 = vector.load %arg10[%c40_130, %c0_131] : memref<64x512xf32, #tpu.memory_space<vmem>>, vector<8x512xf32>
    %431 = arith.truncf %427 : vector<8x128xf32> to vector<8x128xbf16>
    %cst_132 = arith.constant dense<0.000000e+00> : vector<8x512xf32>
    %432 = tpu.matmul %431, %272, %cst_132 {dimension_numbers = #tpu.dot_dimension_numbers<[1], [0], [0], [1], [0, 0, 1, 1], [], []>} : vector<8x128xbf16>, vector<128x512xbf16>, vector<8x512xf32> -> vector<8x512xf32>
    %433 = arith.addf %430, %432 : vector<8x512xf32>
    %434 = vector.extract_strided_slice %433 {offsets = [0, 0], sizes = [8, 128], strides = [1, 1]} : vector<8x512xf32> to vector<8x128xf32>
    %435 = arith.negf %434 : vector<8x128xf32>
    %436 = math.exp %435 : vector<8x128xf32>
    %cst_133 = arith.constant 1.000000e+00 : f32
    %437 = vector.broadcast %cst_133 : f32 to vector<8x128xf32>
    %438 = arith.addf %437, %436 : vector<8x128xf32>
    %439 = arith.divf %437, %438 : vector<8x128xf32>
    %440 = vector.extract_strided_slice %433 {offsets = [0, 128], sizes = [8, 128], strides = [1, 1]} : vector<8x512xf32> to vector<8x128xf32>
    %441 = arith.negf %440 : vector<8x128xf32>
    %442 = math.exp %441 : vector<8x128xf32>
    %cst_134 = arith.constant 1.000000e+00 : f32
    %443 = vector.broadcast %cst_134 : f32 to vector<8x128xf32>
    %444 = arith.addf %443, %442 : vector<8x128xf32>
    %445 = arith.divf %443, %444 : vector<8x128xf32>
    %446 = vector.extract_strided_slice %433 {offsets = [0, 256], sizes = [8, 128], strides = [1, 1]} : vector<8x512xf32> to vector<8x128xf32>
    %447 = math.tanh %446 : vector<8x128xf32>
    %448 = vector.extract_strided_slice %433 {offsets = [0, 384], sizes = [8, 128], strides = [1, 1]} : vector<8x512xf32> to vector<8x128xf32>
    %449 = arith.negf %448 : vector<8x128xf32>
    %450 = math.exp %449 : vector<8x128xf32>
    %cst_135 = arith.constant 1.000000e+00 : f32
    %451 = vector.broadcast %cst_135 : f32 to vector<8x128xf32>
    %452 = arith.addf %451, %450 : vector<8x128xf32>
    %453 = arith.divf %451, %452 : vector<8x128xf32>
    %454 = arith.mulf %445, %425 : vector<8x128xf32>
    %455 = arith.mulf %439, %447 : vector<8x128xf32>
    %456 = arith.addf %454, %455 : vector<8x128xf32>
    %457 = math.tanh %456 : vector<8x128xf32>
    %458 = arith.mulf %453, %457 : vector<8x128xf32>
    %459 = arith.truncf %458 : vector<8x128xf32> to vector<8x128xbf16>
    %c40_136 = arith.constant 40 : index
    %c0_137 = arith.constant 0 : index
    %460 = vector.load %arg11[%c40_136, %c0_137] : memref<64x128xbf16, #tpu.memory_space<vmem>>, vector<8x128xbf16>
    tpu.vector_store %arg11[%c40_136, %c0_137], %459 {strides = array<i32>} : memref<64x128xbf16, #tpu.memory_space<vmem>>, vector<8x128xbf16>,
    %c48_138 = arith.constant 48 : index
    %c0_139 = arith.constant 0 : index
    %461 = vector.load %arg10[%c48_138, %c0_139] : memref<64x512xf32, #tpu.memory_space<vmem>>, vector<8x512xf32>
    %462 = arith.truncf %458 : vector<8x128xf32> to vector<8x128xbf16>
    %cst_140 = arith.constant dense<0.000000e+00> : vector<8x512xf32>
    %463 = tpu.matmul %462, %272, %cst_140 {dimension_numbers = #tpu.dot_dimension_numbers<[1], [0], [0], [1], [0, 0, 1, 1], [], []>} : vector<8x128xbf16>, vector<128x512xbf16>, vector<8x512xf32> -> vector<8x512xf32>
    %464 = arith.addf %461, %463 : vector<8x512xf32>
    %465 = vector.extract_strided_slice %464 {offsets = [0, 0], sizes = [8, 128], strides = [1, 1]} : vector<8x512xf32> to vector<8x128xf32>
    %466 = arith.negf %465 : vector<8x128xf32>
    %467 = math.exp %466 : vector<8x128xf32>
    %cst_141 = arith.constant 1.000000e+00 : f32
    %468 = vector.broadcast %cst_141 : f32 to vector<8x128xf32>
    %469 = arith.addf %468, %467 : vector<8x128xf32>
    %470 = arith.divf %468, %469 : vector<8x128xf32>
    %471 = vector.extract_strided_slice %464 {offsets = [0, 128], sizes = [8, 128], strides = [1, 1]} : vector<8x512xf32> to vector<8x128xf32>
    %472 = arith.negf %471 : vector<8x128xf32>
    %473 = math.exp %472 : vector<8x128xf32>
    %cst_142 = arith.constant 1.000000e+00 : f32
    %474 = vector.broadcast %cst_142 : f32 to vector<8x128xf32>
    %475 = arith.addf %474, %473 : vector<8x128xf32>
    %476 = arith.divf %474, %475 : vector<8x128xf32>
    %477 = vector.extract_strided_slice %464 {offsets = [0, 256], sizes = [8, 128], strides = [1, 1]} : vector<8x512xf32> to vector<8x128xf32>
    %478 = math.tanh %477 : vector<8x128xf32>
    %479 = vector.extract_strided_slice %464 {offsets = [0, 384], sizes = [8, 128], strides = [1, 1]} : vector<8x512xf32> to vector<8x128xf32>
    %480 = arith.negf %479 : vector<8x128xf32>
    %481 = math.exp %480 : vector<8x128xf32>
    %cst_143 = arith.constant 1.000000e+00 : f32
    %482 = vector.broadcast %cst_143 : f32 to vector<8x128xf32>
    %483 = arith.addf %482, %481 : vector<8x128xf32>
    %484 = arith.divf %482, %483 : vector<8x128xf32>
    %485 = arith.mulf %476, %456 : vector<8x128xf32>
    %486 = arith.mulf %470, %478 : vector<8x128xf32>
    %487 = arith.addf %485, %486 : vector<8x128xf32>
    %488 = math.tanh %487 : vector<8x128xf32>
    %489 = arith.mulf %484, %488 : vector<8x128xf32>
    %490 = arith.truncf %489 : vector<8x128xf32> to vector<8x128xbf16>
    %c48_144 = arith.constant 48 : index
    %c0_145 = arith.constant 0 : index
    %491 = vector.load %arg11[%c48_144, %c0_145] : memref<64x128xbf16, #tpu.memory_space<vmem>>, vector<8x128xbf16>
    tpu.vector_store %arg11[%c48_144, %c0_145], %490 {strides = array<i32>} : memref<64x128xbf16, #tpu.memory_space<vmem>>, vector<8x128xbf16>,
    %c56_146 = arith.constant 56 : index
    %c0_147 = arith.constant 0 : index
    %492 = vector.load %arg10[%c56_146, %c0_147] : memref<64x512xf32, #tpu.memory_space<vmem>>, vector<8x512xf32>
    %493 = arith.truncf %489 : vector<8x128xf32> to vector<8x128xbf16>
    %cst_148 = arith.constant dense<0.000000e+00> : vector<8x512xf32>
    %494 = tpu.matmul %493, %272, %cst_148 {dimension_numbers = #tpu.dot_dimension_numbers<[1], [0], [0], [1], [0, 0, 1, 1], [], []>} : vector<8x128xbf16>, vector<128x512xbf16>, vector<8x512xf32> -> vector<8x512xf32>
    %495 = arith.addf %492, %494 : vector<8x512xf32>
    %496 = vector.extract_strided_slice %495 {offsets = [0, 0], sizes = [8, 128], strides = [1, 1]} : vector<8x512xf32> to vector<8x128xf32>
    %497 = arith.negf %496 : vector<8x128xf32>
    %498 = math.exp %497 : vector<8x128xf32>
    %cst_149 = arith.constant 1.000000e+00 : f32
    %499 = vector.broadcast %cst_149 : f32 to vector<8x128xf32>
    %500 = arith.addf %499, %498 : vector<8x128xf32>
    %501 = arith.divf %499, %500 : vector<8x128xf32>
    %502 = vector.extract_strided_slice %495 {offsets = [0, 128], sizes = [8, 128], strides = [1, 1]} : vector<8x512xf32> to vector<8x128xf32>
    %503 = arith.negf %502 : vector<8x128xf32>
    %504 = math.exp %503 : vector<8x128xf32>
    %cst_150 = arith.constant 1.000000e+00 : f32
    %505 = vector.broadcast %cst_150 : f32 to vector<8x128xf32>
    %506 = arith.addf %505, %504 : vector<8x128xf32>
    %507 = arith.divf %505, %506 : vector<8x128xf32>
    %508 = vector.extract_strided_slice %495 {offsets = [0, 256], sizes = [8, 128], strides = [1, 1]} : vector<8x512xf32> to vector<8x128xf32>
    %509 = math.tanh %508 : vector<8x128xf32>
    %510 = vector.extract_strided_slice %495 {offsets = [0, 384], sizes = [8, 128], strides = [1, 1]} : vector<8x512xf32> to vector<8x128xf32>
    %511 = arith.negf %510 : vector<8x128xf32>
    %512 = math.exp %511 : vector<8x128xf32>
    %cst_151 = arith.constant 1.000000e+00 : f32
    %513 = vector.broadcast %cst_151 : f32 to vector<8x128xf32>
    %514 = arith.addf %513, %512 : vector<8x128xf32>
    %515 = arith.divf %513, %514 : vector<8x128xf32>
    %516 = arith.mulf %507, %487 : vector<8x128xf32>
    %517 = arith.mulf %501, %509 : vector<8x128xf32>
    %518 = arith.addf %516, %517 : vector<8x128xf32>
    %519 = math.tanh %518 : vector<8x128xf32>
    %520 = arith.mulf %515, %519 : vector<8x128xf32>
    %521 = arith.truncf %520 : vector<8x128xf32> to vector<8x128xbf16>
    %c56_152 = arith.constant 56 : index
    %c0_153 = arith.constant 0 : index
    %522 = vector.load %arg11[%c56_152, %c0_153] : memref<64x128xbf16, #tpu.memory_space<vmem>>, vector<8x128xbf16>
    tpu.vector_store %arg11[%c56_152, %c0_153], %521 {strides = array<i32>} : memref<64x128xbf16, #tpu.memory_space<vmem>>, vector<8x128xbf16>,
    %c0_154 = arith.constant 0 : index
    %c1 = arith.constant 1 : index
    %c0_155 = arith.constant 0 : index
    %c0_156 = arith.constant 0 : index
    %523 = vector.load %arg8[%c0_154, %c1, %c0_155, %c0_156] : memref<1x2x8x128xf32, #tpu.memory_space<vmem>>, vector<1x1x8x128xf32>
    %524 = vector.shape_cast %523 : vector<1x1x8x128xf32> to vector<8x128xf32>
    %525 = vector.shape_cast %520 : vector<8x128xf32> to vector<1x1x8x128xf32>
    tpu.vector_store %arg8[%c0_154, %c1, %c0_155, %c0_156], %525 {strides = array<i32>} : memref<1x2x8x128xf32, #tpu.memory_space<vmem>>, vector<1x1x8x128xf32>,
    %c0_157 = arith.constant 0 : index
    %c1_158 = arith.constant 1 : index
    %c0_159 = arith.constant 0 : index
    %c0_160 = arith.constant 0 : index
    %526 = vector.load %arg9[%c0_157, %c1_158, %c0_159, %c0_160] : memref<1x2x8x128xf32, #tpu.memory_space<vmem>>, vector<1x1x8x128xf32>
    %527 = vector.shape_cast %526 : vector<1x1x8x128xf32> to vector<8x128xf32>
    %528 = vector.shape_cast %518 : vector<8x128xf32> to vector<1x1x8x128xf32>
    tpu.vector_store %arg9[%c0_157, %c1_158, %c0_159, %c0_160], %528 {strides = array<i32>} : memref<1x2x8x128xf32, #tpu.memory_space<vmem>>, vector<1x1x8x128xf32>,
    return
  }
  func.func @transform_0(%arg0: i32) -> (i32, i32, i32) {
    %c0_i32 = arith.constant 0 : i32
    %c0_i32_0 = arith.constant 0 : i32
    %c0_i32_1 = arith.constant 0 : i32
    return %arg0, %c0_i32, %c0_i32_0 : i32, i32, i32
  }
  func.func @transform_1(%arg0: i32) -> (i32, i32) {
    %c0_i32 = arith.constant 0 : i32
    %c0_i32_0 = arith.constant 0 : i32
    %c0_i32_1 = arith.constant 0 : i32
    return %c0_i32, %c0_i32_0 : i32, i32
  }
  func.func @transform_2(%arg0: i32) -> (i32, i32) {
    %c0_i32 = arith.constant 0 : i32
    %c0_i32_0 = arith.constant 0 : i32
    %c0_i32_1 = arith.constant 0 : i32
    return %c0_i32, %c0_i32_0 : i32, i32
  }
  func.func @transform_3(%arg0: i32) -> (i32, i32) {
    %c0_i32 = arith.constant 0 : i32
    %c0_i32_0 = arith.constant 0 : i32
    %c0_i32_1 = arith.constant 0 : i32
    return %c0_i32, %c0_i32_0 : i32, i32
  }
  func.func @transform_4(%arg0: i32) -> (i32, i32) {
    %c0_i32 = arith.constant 0 : i32
    %c0_i32_0 = arith.constant 0 : i32
    %c0_i32_1 = arith.constant 0 : i32
    return %c0_i32, %c0_i32_0 : i32, i32
  }
  func.func @transform_5(%arg0: i32) -> (i32, i32) {
    %c0_i32 = arith.constant 0 : i32
    %c0_i32_0 = arith.constant 0 : i32
    %c0_i32_1 = arith.constant 0 : i32
    return %c0_i32, %c0_i32_0 : i32, i32
  }
  func.func @transform_6(%arg0: i32) -> (i32, i32) {
    %c0_i32 = arith.constant 0 : i32
    %c0_i32_0 = arith.constant 0 : i32
    %c0_i32_1 = arith.constant 0 : i32
    return %c0_i32, %c0_i32_0 : i32, i32
  }
  func.func @transform_7(%arg0: i32) -> (i32, i32, i32, i32) {
    %c0_i32 = arith.constant 0 : i32
    %c0_i32_0 = arith.constant 0 : i32
    %c0_i32_1 = arith.constant 0 : i32
    %c0_i32_2 = arith.constant 0 : i32
    return %arg0, %c0_i32, %c0_i32_0, %c0_i32_1 : i32, i32, i32, i32
  }
  func.func @transform_8(%arg0: i32) -> (i32, i32, i32, i32) {
    %c0_i32 = arith.constant 0 : i32
    %c0_i32_0 = arith.constant 0 : i32
    %c0_i32_1 = arith.constant 0 : i32
    %c0_i32_2 = arith.constant 0 : i32
    return %arg0, %c0_i32, %c0_i32_0, %c0_i32_1 : i32, i32, i32, i32
  }
}

</mosaic_0001>

<llo_original>
// kernel: tpu_custom_call.1
$region0: #{tpu_custom_call.1}
  #allocation0 [shape = 'u32[]', space=smem, size = 0x4, offset = 0x4, fixed_abs, tag = 'smem constant byte address 0x4 - core index']
  #allocation1 [shape = 'u32[144,128]{1,0:T(1,128)}', space=vmem, size = 0x12000, scoped, tag = 'internal scratch']
  #allocation2 [shape = 'f32[64,512]{1,0:T(8,128)}', space=vmem, size = 0x20000, scoped, tag = 'scratch operand']
  #allocation3 [shape = 'bf16[64,128]{1,0:T(8,128)(2,1)}', space=vmem, size = 0x4000, scoped, tag = 'scratch operand']
  %s0 = inlined_call_operand.vmem [shape: bf16[2,64,32], index: 0, kind: input, shape index: {}]
  %s1 = inlined_call_operand.vmem [shape: bf16[32,512], index: 1, kind: input, shape index: {}]
  %s2 = inlined_call_operand.hbm [shape: bf16[128,512], index: 2, kind: input, shape index: {}]
  %s3 = inlined_call_operand.vmem [shape: f32[1,512], index: 3, kind: input, shape index: {}]
  %s4 = inlined_call_operand.hbm [shape: bf16[128,512], index: 4, kind: input, shape index: {}]
  %s5 = inlined_call_operand.hbm [shape: bf16[128,512], index: 5, kind: input, shape index: {}]
  %s6 = inlined_call_operand.vmem [shape: f32[1,512], index: 6, kind: input, shape index: {}]
  %s7 = inlined_call_operand.hbm [shape: f32[2,2,8,128], index: 7, kind: output, shape index: {0}]
  %s8 = inlined_call_operand.hbm [shape: f32[2,2,8,128], index: 8, kind: output, shape index: {1}]
  %9 = xla_tuple %s7, %s8
  %s10 = sld [smem:[#allocation0]]
  $region81: #{tpu_custom_call.1} parent=0
    _
  %s12 = ssub.s32 1, %s10
  %s13 = scalar_select 0, %s12, %s10
  $region1: #{tpu_custom_call.1} parent=0
    #allocation4 [shape = 'u8[131072]{0}', space=vmem, size = 0x20000, scoped, tag = 'input window, operand 2, single buffered']
    #allocation5 [shape = 's32[2]{0}', space=sflag, size = 0x8, scoped, tag = 'scoped memory for tpu_custom_call.1']
    #allocation6 [shape = 's32[2]{0}', space=sflag, size = 0x8, scoped, tag = 'scoped memory for tpu_custom_call.1']
    #allocation7 [shape = 'u8[131072]{0}', space=vmem, size = 0x20000, scoped, tag = 'input window, operand 4, single buffered']
    #allocation8 [shape = 's32[1]{0}', space=sflag, size = 0x4, scoped, tag = 'scoped memory for tpu_custom_call.1']
    #allocation9 [shape = 'u8[131072]{0}', space=vmem, size = 0x20000, scoped, tag = 'input window, operand 5, single buffered']
    #allocation10 [shape = 'u8[16384]{0}', space=vmem, size = 0x4000, scoped, tag = 'output window, operand 0']
    #allocation11 [shape = 'u8[16384]{0}', space=vmem, size = 0x4000, scoped, tag = 'output window, operand 1']
    #allocation12 [shape = 's32[2]{0}', space=sflag, size = 0x8, scoped, tag = 'scoped memory for tpu_custom_call.1']
    %14 = vsyncpa [#allocation5], 0
    %15 = vsyncpa [#allocation8], 0
    %16 = vsyncpa [#allocation6], 0
    %s17 = scalar_lea.sflag [#allocation6], 1
    %18 = vsyncpa %s17, 0
    %19 = vsyncpa [#allocation12], 0
    %s20 = scalar_lea.sflag [#allocation12], 1
    %21 = vsyncpa %s20, 0
    loop: start=0, step=1, limit=4
    $region2: #{tpu_custom_call.1} parent=1 // loop_pre_header
      _
    $region3: #{tpu_custom_call.1} parent=1 // loop_header
      %s23 = sphi 0, %s27
      %p24 = scmp.ge.s32.totalorder %s23, 4
      %s33 = sphi 0, %s35
      %s36 = sphi 0, %s33
      %s37 = sphi 0, %s36
      %s53 = sphi 0, %s37
      %s57 = sphi 0, %s57
      %s59 = sphi 0, %s57
      %s60 = sphi 0, %s59
      %s74 = sphi 0, %s60
      %s78 = sphi 0, %s78
      %s80 = sphi 0, %s78
      %s81 = sphi 0, %s80
      %s95 = sphi 0, %s81
      %s99 = sphi 0, %s99
      %s101 = sphi 0, %s99
      %s102 = sphi 0, %s101
      %s116 = sphi 0, %s102
      %s120 = sphi 0, %s120
      %s122 = sphi 0, %s120
      %s123 = sphi 0, %s122
      %s137 = sphi 0, %s123
      %s141 = sphi 0, %s141
      %s143 = sphi 0, %s141
      %s144 = sphi 0, %s143
      %s158 = sphi 0, %s144
      %s162 = sphi 0, %s162
      %s164 = sphi 0, %s162
      %s165 = sphi 0, %s164
      %s179 = sphi 0, %s165
      %s185 = sphi 0, %s187
      %s188 = sphi 0, %s185
      %s189 = sphi 0, %s188
      %s205 = sphi 0, %s189
      %s211 = sphi 0, %s213
      %s214 = sphi 0, %s211
      %s215 = sphi 0, %s214
      %s231 = sphi 0, %s215
    $region4: #{tpu_custom_call.1} parent=1 // loop_header_branch
      %26 = sbr.rel (%p24) target = $region8
    $region5: #{tpu_custom_call.1} parent=1 // loop_body
      %s28 = ssub.s32 %s23, 1
      %s29 = ssub.s32 %s23, 2
      %s30 = sadd.s32 %s23, 1
      %s31 = ssub.s32 %s23, %s30
      %p32 = scmp.eq.s32.totalorder %s31, 0
      %s34 = sadd.s32 %s33, 1
      %s35 = scalar_select %p32, %s33, %s34
      %p38 = pneg %p32
      %p39 = scmp.eq.s32.totalorder %s23, 1
      %p40 = por %p38, %p39
      %p41 = scmp.ne.s32.totalorder %s33, %s36
      %p42 = scmp.eq.s32.totalorder %s23, 0
      %p43 = por %p41, %p42
      %p44 = scmp.ne.s32.totalorder %s33, %s36
      %p45 = scmp.eq.s32.totalorder %s28, 1
      %p46 = por %p44, %p45
      %p47 = scmp.ne.s32.totalorder %s36, %s37
      %p48 = scmp.eq.s32.totalorder %s28, 0
      %p49 = por %p47, %p48
      %p50 = scmp.ne.s32.totalorder %s36, %s37
      %p51 = scmp.eq.s32.totalorder %s29, 1
      %p52 = por %p50, %p51
      %p54 = scmp.ne.s32.totalorder %s37, %s53
      %p55 = scmp.eq.s32.totalorder %s29, 0
      %p56 = por %p54, %p55
      %s58 = sadd.s32 %s57, 1
      %p61 = scmp.eq.s32.totalorder %s23, 1
      %p62 = scmp.ne.s32.totalorder %s57, %s59
      %p63 = scmp.eq.s32.totalorder %s23, 0
      %p64 = por %p62, %p63
      %p65 = scmp.ne.s32.totalorder %s57, %s59
      %p66 = scmp.eq.s32.totalorder %s28, 1
      %p67 = por %p65, %p66
      %p68 = scmp.ne.s32.totalorder %s59, %s60
      %p69 = scmp.eq.s32.totalorder %s28, 0
      %p70 = por %p68, %p69
      %p71 = scmp.ne.s32.totalorder %s59, %s60
      %p72 = scmp.eq.s32.totalorder %s29, 1
      %p73 = por %p71, %p72
      %p75 = scmp.ne.s32.totalorder %s60, %s74
      %p76 = scmp.eq.s32.totalorder %s29, 0
      %p77 = por %p75, %p76
      %s79 = sadd.s32 %s78, 1
      %p82 = scmp.eq.s32.totalorder %s23, 1
      %p83 = scmp.ne.s32.totalorder %s78, %s80
      %p84 = scmp.eq.s32.totalorder %s23, 0
      %p85 = por %p83, %p84
      %p86 = scmp.ne.s32.totalorder %s78, %s80
      %p87 = scmp.eq.s32.totalorder %s28, 1
      %p88 = por %p86, %p87
      %p89 = scmp.ne.s32.totalorder %s80, %s81
      %p90 = scmp.eq.s32.totalorder %s28, 0
      %p91 = por %p89, %p90
      %p92 = scmp.ne.s32.totalorder %s80, %s81
      %p93 = scmp.eq.s32.totalorder %s29, 1
      %p94 = por %p92, %p93
      %p96 = scmp.ne.s32.totalorder %s81, %s95
      %p97 = scmp.eq.s32.totalorder %s29, 0
      %p98 = por %p96, %p97
      %s100 = sadd.s32 %s99, 1
      %p103 = scmp.eq.s32.totalorder %s23, 1
      %p104 = scmp.ne.s32.totalorder %s99, %s101
      %p105 = scmp.eq.s32.totalorder %s23, 0
      %p106 = por %p104, %p105
      %p107 = scmp.ne.s32.totalorder %s99, %s101
      %p108 = scmp.eq.s32.totalorder %s28, 1
      %p109 = por %p107, %p108
      %p110 = scmp.ne.s32.totalorder %s101, %s102
      %p111 = scmp.eq.s32.totalorder %s28, 0
      %p112 = por %p110, %p111
      %p113 = scmp.ne.s32.totalorder %s101, %s102
      %p114 = scmp.eq.s32.totalorder %s29, 1
      %p115 = por %p113, %p114
      %p117 = scmp.ne.s32.totalorder %s102, %s116
      %p118 = scmp.eq.s32.totalorder %s29, 0
      %p119 = por %p117, %p118
      %s121 = sadd.s32 %s120, 1
      %p124 = scmp.eq.s32.totalorder %s23, 1
      %p125 = scmp.ne.s32.totalorder %s120, %s122
      %p126 = scmp.eq.s32.totalorder %s23, 0
      %p127 = por %p125, %p126
      %p128 = scmp.ne.s32.totalorder %s120, %s122
      %p129 = scmp.eq.s32.totalorder %s28, 1
      %p130 = por %p128, %p129
      %p131 = scmp.ne.s32.totalorder %s122, %s123
      %p132 = scmp.eq.s32.totalorder %s28, 0
      %p133 = por %p131, %p132
      %p134 = scmp.ne.s32.totalorder %s122, %s123
      %p135 = scmp.eq.s32.totalorder %s29, 1
      %p136 = por %p134, %p135
      %p138 = scmp.ne.s32.totalorder %s123, %s137
      %p139 = scmp.eq.s32.totalorder %s29, 0
      %p140 = por %p138, %p139
      %s142 = sadd.s32 %s141, 1
      %p145 = scmp.eq.s32.totalorder %s23, 1
      %p146 = scmp.ne.s32.totalorder %s141, %s143
      %p147 = scmp.eq.s32.totalorder %s23, 0
      %p148 = por %p146, %p147
      %p149 = scmp.ne.s32.totalorder %s141, %s143
      %p150 = scmp.eq.s32.totalorder %s28, 1
      %p151 = por %p149, %p150
      %p152 = scmp.ne.s32.totalorder %s143, %s144
      %p153 = scmp.eq.s32.totalorder %s28, 0
      %p154 = por %p152, %p153
      %p155 = scmp.ne.s32.totalorder %s143, %s144
      %p156 = scmp.eq.s32.totalorder %s29, 1
      %p157 = por %p155, %p156
      %p159 = scmp.ne.s32.totalorder %s144, %s158
      %p160 = scmp.eq.s32.totalorder %s29, 0
      %p161 = por %p159, %p160
      %s163 = sadd.s32 %s162, 1
      %p166 = scmp.eq.s32.totalorder %s23, 1
      %p167 = scmp.ne.s32.totalorder %s162, %s164
      %p168 = scmp.eq.s32.totalorder %s23, 0
      %p169 = por %p167, %p168
      %p170 = scmp.ne.s32.totalorder %s162, %s164
      %p171 = scmp.eq.s32.totalorder %s28, 1
      %p172 = por %p170, %p171
      %p173 = scmp.ne.s32.totalorder %s164, %s165
      %p174 = scmp.eq.s32.totalorder %s28, 0
      %p175 = por %p173, %p174
      %p176 = scmp.ne.s32.totalorder %s164, %s165
      %p177 = scmp.eq.s32.totalorder %s29, 1
      %p178 = por %p176, %p177
      %p180 = scmp.ne.s32.totalorder %s165, %s179
      %p181 = scmp.eq.s32.totalorder %s29, 0
      %p182 = por %p180, %p181
      %s183 = ssub.s32 %s23, %s30
      %p184 = scmp.eq.s32.totalorder %s183, 0
      %s186 = sadd.s32 %s185, 1
      %s187 = scalar_select %p184, %s185, %s186
      %p190 = pneg %p184
      %p191 = scmp.eq.s32.totalorder %s23, 1
      %p192 = por %p190, %p191
      %p193 = scmp.ne.s32.totalorder %s185, %s188
      %p194 = scmp.eq.s32.totalorder %s23, 0
      %p195 = por %p193, %p194
      %p196 = scmp.ne.s32.totalorder %s185, %s188
      %p197 = scmp.eq.s32.totalorder %s28, 1
      %p198 = por %p196, %p197
      %p199 = scmp.ne.s32.totalorder %s188, %s189
      %p200 = scmp.eq.s32.totalorder %s28, 0
      %p201 = por %p199, %p200
      %p202 = scmp.ne.s32.totalorder %s188, %s189
      %p203 = scmp.eq.s32.totalorder %s29, 1
      %p204 = por %p202, %p203
      %p206 = scmp.ne.s32.totalorder %s189, %s205
      %p207 = scmp.eq.s32.totalorder %s29, 0
      %p208 = por %p206, %p207
      %s209 = ssub.s32 %s23, %s30
      %p210 = scmp.eq.s32.totalorder %s209, 0
      %s212 = sadd.s32 %s211, 1
      %s213 = scalar_select %p210, %s211, %s212
      %p216 = pneg %p210
      %p217 = scmp.eq.s32.totalorder %s23, 1
      %p218 = por %p216, %p217
      %p219 = scmp.ne.s32.totalorder %s211, %s214
      %p220 = scmp.eq.s32.totalorder %s23, 0
      %p221 = por %p219, %p220
      %p222 = scmp.ne.s32.totalorder %s211, %s214
      %p223 = scmp.eq.s32.totalorder %s28, 1
      %p224 = por %p222, %p223
      %p225 = scmp.ne.s32.totalorder %s214, %s215
      %p226 = scmp.eq.s32.totalorder %s28, 0
      %p227 = por %p225, %p226
      %p228 = scmp.ne.s32.totalorder %s214, %s215
      %p229 = scmp.eq.s32.totalorder %s29, 1
      %p230 = por %p228, %p229
      %p232 = scmp.ne.s32.totalorder %s215, %s231
      %p233 = scmp.eq.s32.totalorder %s29, 0
      %p234 = por %p232, %p233
      %p235 = scmp.le.s32.totalorder 1, %s23
      %p236 = scmp.lt.s32.totalorder %s23, 3
      %p237 = pnand %p235, %p236
      %p238 = pneg %p237
      // Predicated region
      $region9: #{tpu_custom_call.1} parent=5 // pred_check
        _
      $region10: #{tpu_custom_call.1} parent=5 // pred_check_branch
        %240 = sbr.rel (%p237) target = $region12
      $region11: #{tpu_custom_call.1} parent=5 // pred_region
        %s241 = ssub.s32 %s23, 1
        // Predicated region
        $region13: #{tpu_custom_call.1} parent=11 // pred_check
          %p242 = pneg %p70
        $region14: #{tpu_custom_call.1} parent=11 // pred_check_branch
          %244 = sbr.rel (%p242) target = $region16
        $region15: #{tpu_custom_call.1} parent=11 // pred_region
          _
        $region16: #{tpu_custom_call.1} parent=11 // pred_fallthru
          _
        // Predicated region
        $region17: #{tpu_custom_call.1} parent=11 // pred_check
          %p245 = pneg %p91
        $region18: #{tpu_custom_call.1} parent=11 // pred_check_branch
          %247 = sbr.rel (%p245) target = $region20
        $region19: #{tpu_custom_call.1} parent=11 // pred_region
          %s249 = ssub.s32 4096, 4096
          %250 = vsyncadd [#allocation5], %s249
          %s251 = sshll.u32 [#allocation4], 4
          %s252 = int_to_ptr.vmem [resolvable:$true] %s251
          %257 = dma.hbm_to_vmem [thread:$0]  %s2, 4096, %s252, [#allocation5], 256, 256, 16
        $region20: #{tpu_custom_call.1} parent=11 // pred_fallthru
          _
        // Predicated region
        $region21: #{tpu_custom_call.1} parent=11 // pred_check
          %p258 = pneg %p112
        $region22: #{tpu_custom_call.1} parent=11 // pred_check_branch
          %260 = sbr.rel (%p258) target = $region24
        $region23: #{tpu_custom_call.1} parent=11 // pred_region
          _
        $region24: #{tpu_custom_call.1} parent=11 // pred_fallthru
          _
        // Predicated region
        $region25: #{tpu_custom_call.1} parent=11 // pred_check
          %p261 = pneg %p133
        $region26: #{tpu_custom_call.1} parent=11 // pred_check_branch
          %263 = sbr.rel (%p261) target = $region28
        $region27: #{tpu_custom_call.1} parent=11 // pred_region
          %s265 = ssub.s32 4096, 4096
          %266 = vsyncadd [#allocation8], %s265
          %s267 = sshll.u32 [#allocation7], 4
          %s268 = int_to_ptr.vmem [resolvable:$true] %s267
          %273 = dma.hbm_to_vmem [thread:$0]  %s4, 4096, %s268, [#allocation8], 256, 256, 16
        $region28: #{tpu_custom_call.1} parent=11 // pred_fallthru
          _
        // Predicated region
        $region29: #{tpu_custom_call.1} parent=11 // pred_check
          %p274 = pneg %p154
        $region30: #{tpu_custom_call.1} parent=11 // pred_check_branch
          %276 = sbr.rel (%p274) target = $region32
        $region31: #{tpu_custom_call.1} parent=11 // pred_region
          %s278 = ssub.s32 4096, 4096
          %279 = vsyncadd [#allocation8], %s278
          %s280 = sshll.u32 [#allocation9], 4
          %s281 = int_to_ptr.vmem [resolvable:$true] %s280
          %286 = dma.hbm_to_vmem [thread:$0]  %s5, 4096, %s281, [#allocation8], 256, 256, 16
        $region32: #{tpu_custom_call.1} parent=11 // pred_fallthru
          _
        // Predicated region
        $region33: #{tpu_custom_call.1} parent=11 // pred_check
          %p287 = pneg %p175
        $region34: #{tpu_custom_call.1} parent=11 // pred_check_branch
          %289 = sbr.rel (%p287) target = $region36
        $region35: #{tpu_custom_call.1} parent=11 // pred_region
          _
        $region36: #{tpu_custom_call.1} parent=11 // pred_fallthru
          _
      $region12: #{tpu_custom_call.1} parent=5 // pred_fallthru
        _
      %p290 = scmp.lt.s32.totalorder %s23, 2
      // Predicated region
      $region37: #{tpu_custom_call.1} parent=5 // pred_check
        %p291 = pneg %p290
      $region38: #{tpu_custom_call.1} parent=5 // pred_check_branch
        %293 = sbr.rel (%p291) target = $region40
      $region39: #{tpu_custom_call.1} parent=5 // pred_region
        // Predicated region
        $region41: #{tpu_custom_call.1} parent=39 // pred_check
          %p294 = pneg %p43
        $region42: #{tpu_custom_call.1} parent=39 // pred_check_branch
          %296 = sbr.rel (%p294) target = $region44
        $region43: #{tpu_custom_call.1} parent=39 // pred_region
          %p297 = scmp.lt.s32.totalorder %s23, 1
          %s298 = scalar_select %p297, %s23, 1
          %s299 = smul.addr %s298, 8
          %s300 = smul.addr %s299, 4
          %s301 = scalar_lea.vmem %s0, %s300
        $region44: #{tpu_custom_call.1} parent=39 // pred_fallthru
          _
      $region40: #{tpu_custom_call.1} parent=5 // pred_fallthru
        _
      %p302 = scmp.le.s32.totalorder 1, %s23
      %p303 = scmp.lt.s32.totalorder %s23, 3
      %p304 = pnand %p302, %p303
      %p305 = pneg %p304
      // Predicated region
      $region45: #{tpu_custom_call.1} parent=5 // pred_check
        _
      $region46: #{tpu_custom_call.1} parent=5 // pred_check_branch
        %307 = sbr.rel (%p304) target = $region48
      $region47: #{tpu_custom_call.1} parent=5 // pred_region
        %s308 = ssub.s32 %s23, 1
        // Predicated region
        $region49: #{tpu_custom_call.1} parent=47 // pred_check
          %p309 = pneg %p91
        $region50: #{tpu_custom_call.1} parent=47 // pred_check_branch
          %311 = sbr.rel (%p309) target = $region52
        $region51: #{tpu_custom_call.1} parent=47 // pred_region
          %312 = dma.done [#allocation5], 4096
        $region52: #{tpu_custom_call.1} parent=47 // pred_fallthru
          _
        // Predicated region
        $region53: #{tpu_custom_call.1} parent=47 // pred_check
          %p313 = pneg %p133
        $region54: #{tpu_custom_call.1} parent=47 // pred_check_branch
          %315 = sbr.rel (%p313) target = $region56
        $region55: #{tpu_custom_call.1} parent=47 // pred_region
          %316 = dma.done [#allocation8], 4096
        $region56: #{tpu_custom_call.1} parent=47 // pred_fallthru
          _
        // Predicated region
        $region57: #{tpu_custom_call.1} parent=47 // pred_check
          %p317 = pneg %p154
        $region58: #{tpu_custom_call.1} parent=47 // pred_check_branch
          %319 = sbr.rel (%p317) target = $region60
        $region59: #{tpu_custom_call.1} parent=47 // pred_region
          %320 = dma.done [#allocation8], 4096
        $region60: #{tpu_custom_call.1} parent=47 // pred_fallthru
          _
        %p321 = scmp.lt.s32.totalorder %s28, 1
        %s322 = scalar_select %p321, %s28, 1
        %s323 = smul.addr %s322, 8
        %s324 = smul.addr %s323, 4
        %s325 = scalar_lea.vmem %s0, %s324
        %p326 = pneg %p49
        %p327 = pneg %p46
        %p328 = pneg %p70
        %p329 = pneg %p67
        %p330 = pneg %p91
        %p331 = pneg %p88
        %p332 = pneg %p112
        %p333 = pneg %p109
        %p334 = pneg %p133
        %p335 = pneg %p130
        %p336 = pneg %p154
        %p337 = pneg %p151
        %p338 = pneg %p175
        %p339 = pneg %p172
        %p340 = pneg %p201
        %p341 = pneg %p198
        %s342 = sand.u32 %s188, 1
        %s343 = scalar_lea.sflag [#allocation6], %s342
        %s344 = sand.u32 %s188, 1
        %s345 = smul.addr %s344, 16
        %s346 = scalar_lea.vmem [#allocation10], %s345
        %p347 = pneg %p227
        %p348 = pneg %p224
        %s349 = sand.u32 %s214, 1
        %s350 = scalar_lea.sflag [#allocation12], %s349
        %s351 = sand.u32 %s214, 1
        %s352 = smul.addr %s351, 16
        %s353 = scalar_lea.vmem [#allocation11], %s352
        %p354 = scmp.lt.s32.totalorder %s28, 1
        %s355 = scalar_select %p354, %s28, 1
        %s356 = smul.addr %s355, 8
        %s357 = smul.addr %s356, 4
        %s358 = scalar_lea.vmem %s0, %s357
        %v360 = vld [vmem:[%s358] sm:$0xf]
        %v361 = vld [vmem:[%s358 + $0x4] sm:$0xf]
        %v362 = vld [vmem:[%s358 + $0x8] sm:$0xf]
        %v363 = vld [vmem:[%s358 + $0xc] sm:$0xf]
        %v364 = vld [vmem:[%s358 + $0x10] sm:$0xf]
        %v365 = vld [vmem:[%s358 + $0x14] sm:$0xf]
        %v366 = vld [vmem:[%s358 + $0x18] sm:$0xf]
        %v367 = vld [vmem:[%s358 + $0x1c] sm:$0xf]
        %v368 = vld [vmem:[%s1] sm:$0xff]
        %v369 = vld [vmem:[%s1 + $0x8] sm:$0xff]
        %v370 = vld [vmem:[%s1 + $0x10] sm:$0xff]
        %v371 = vld [vmem:[%s1 + $0x18] sm:$0xff]
        %v372 = vld [vmem:[%s1 + $0x20] sm:$0xff]
        %v373 = vld [vmem:[%s1 + $0x28] sm:$0xff]
        %v374 = vld [vmem:[%s1 + $0x30] sm:$0xff]
        %v375 = vld [vmem:[%s1 + $0x38] sm:$0xff]
        %v376 = vld [vmem:[%s3] sm:$0xf]
        %v378 = vlaneseq
        %v379 = vshrl.u32 %v378, 7
        %v380 = vsub.s32 0, %v379
        %v381 = vrot.slane %v376, %v380
        %v382 = vlaneseq
        %v383 = vshrl.u32 %v382, 7
        %v384 = vsub.s32 1, %v383
        %v385 = vrot.slane %v376, %v384
        %v386 = vlaneseq
        %v387 = vshrl.u32 %v386, 7
        %v388 = vsub.s32 2, %v387
        %v389 = vrot.slane %v376, %v388
        %v390 = vlaneseq
        %v391 = vshrl.u32 %v390, 7
        %v392 = vsub.s32 3, %v391
        %v393 = vrot.slane %v376, %v392
        %v406 = vunpack.c.l.b16 %v360
        %v407 = vunpack.c.l.b16 %v361
        %v408 = vunpack.c.l.b16 %v362
        %v409 = vunpack.c.l.b16 %v363
        %v410 = vunpack.c.l.b16 %v364
        %v411 = vunpack.c.l.b16 %v365
        %v412 = vunpack.c.l.b16 %v366
        %v413 = vunpack.c.l.b16 %v367
        %v414 = vpack.c.b16 %v407, %v406
        %v415 = vpack.c.b16 %v409, %v408
        %v416 = vpack.c.b16 %v411, %v410
        %v417 = vpack.c.b16 %v413, %v412
        %v426 = vunpack.c.l.b16 %v368
        %v427 = vunpack.c.h.b16 %v368
        %v428 = vunpack.c.l.b16 %v369
        %v429 = vunpack.c.h.b16 %v369
        %v430 = vunpack.c.l.b16 %v370
        %v431 = vunpack.c.h.b16 %v370
        %v432 = vunpack.c.l.b16 %v371
        %v433 = vunpack.c.h.b16 %v371
        %v434 = vunpack.c.l.b16 %v372
        %v435 = vunpack.c.h.b16 %v372
        %v436 = vunpack.c.l.b16 %v373
        %v437 = vunpack.c.h.b16 %v373
        %v438 = vunpack.c.l.b16 %v374
        %v439 = vunpack.c.h.b16 %v374
        %v440 = vunpack.c.l.b16 %v375
        %v441 = vunpack.c.h.b16 %v375
        %v442 = vpack.c.b16 %v430, %v426
        %v443 = vpack.c.b16 %v431, %v427
        %v444 = vpack.c.b16 %v432, %v428
        %v445 = vpack.c.b16 %v433, %v429
        %v446 = vpack.c.b16 %v438, %v434
        %v447 = vpack.c.b16 %v439, %v435
        %v448 = vpack.c.b16 %v440, %v436
        %v449 = vpack.c.b16 %v441, %v437
        %vm458 = vcmask 261120
        %v460 = vsel %vm458, %v414, 0
        %v463 = vsel %vm458, %v415, 0
        %v466 = vsel %vm458, %v416, 0
        %v469 = vsel %vm458, %v417, 0
        %471 = vmatprep.subr.bf16.mxu0 0
        %472 = vmatpush1.bf16.msra.mxu0 0
        %473 = vmatprep.subr.bf16.mxu0 0
        %474 = vmatpush1.bf16.msra.mxu0 0
        %475 = vmatprep.subr.bf16.mxu0 0
        %476 = vmatpush1.bf16.msra.mxu0 0
        %477 = vmatprep.subr.bf16.mxu0 0
        %478 = vmatpush1.bf16.msra.mxu0 0
        %479 = vmatprep.subr.bf16.mxu0 0
        %480 = vmatpush1.bf16.msra.mxu0 0
        %481 = vmatprep.subr.bf16.mxu0 0
        %482 = vmatpush1.bf16.msra.mxu0 0
        %483 = vmatprep.subr.bf16.mxu0 %v447
        %484 = vmatpush1.bf16.msra.mxu0 %v446
        %485 = vmatprep.subr.bf16.mxu0 %v443
        %486 = vmatpush1.bf16.msra.mxu0 %v442
        %487 = vmatprep.subr.bf16.mxu0 0
        %488 = vmatpush2.bf16.msra.mxu0 0
        %489 = vmatprep.subr.bf16.mxu0 0
        %490 = vmatpush2.bf16.msra.mxu0 0
        %491 = vmatprep.subr.bf16.mxu0 0
        %492 = vmatpush2.bf16.msra.mxu0 0
        %493 = vmatprep.subr.bf16.mxu0 0
        %494 = vmatpush2.bf16.msra.mxu0 0
        %495 = vmatprep.subr.bf16.mxu0 0
        %496 = vmatpush2.bf16.msra.mxu0 0
        %497 = vmatprep.subr.bf16.mxu0 0
        %498 = vmatpush2.bf16.msra.mxu0 0
        %499 = vmatprep.subr.bf16.mxu0 0
        %500 = vmatpush2.bf16.msra.mxu0 0
        %501 = vmatprep.subr.bf16.mxu0 0
        %502 = vmatpush2.bf16.msra.mxu0 0
        %503 = vmatprep.mubr.bf16.mxu0 0
        %504 = vmatmul.mubr.bf16.gmra.mxu0 %v460
        %v505 = vpop.f32.mrf.mxu0
        %v506 = vadd.f32 %v381, %v505
        %v507 = vpop.f32.mrf.mxu0
        %v508 = vadd.f32 %v385, %v507
        %v509 = vpop.f32.mrf.mxu0
        %v510 = vadd.f32 %v381, %v509
        %v511 = vpop.f32.mrf.mxu0
        %v512 = vadd.f32 %v385, %v511
        %513 = vmatprep.mubr.bf16.mxu0 0
        %514 = vmatmul.mubr.bf16.gmra.mxu0 %v463
        %v515 = vpop.f32.mrf.mxu0
        %v516 = vadd.f32 %v381, %v515
        %v517 = vpop.f32.mrf.mxu0
        %v518 = vadd.f32 %v385, %v517
        %v519 = vpop.f32.mrf.mxu0
        %v520 = vadd.f32 %v381, %v519
        %v521 = vpop.f32.mrf.mxu0
        %v522 = vadd.f32 %v385, %v521
        %523 = vmatprep.mubr.bf16.mxu0 0
        %524 = vmatmul.mubr.bf16.gmra.mxu0 %v466
        %v525 = vpop.f32.mrf.mxu0
        %v526 = vadd.f32 %v381, %v525
        %v527 = vpop.f32.mrf.mxu0
        %v528 = vadd.f32 %v385, %v527
        %v529 = vpop.f32.mrf.mxu0
        %v530 = vadd.f32 %v381, %v529
        %v531 = vpop.f32.mrf.mxu0
        %v532 = vadd.f32 %v385, %v531
        %533 = vmatprep.mubr.bf16.mxu0 0
        %534 = vmatmul.mubr.bf16.gmra.mxu0 %v469
        %v535 = vpop.f32.mrf.mxu0
        %v536 = vadd.f32 %v381, %v535
        %v537 = vpop.f32.mrf.mxu0
        %v538 = vadd.f32 %v385, %v537
        %v539 = vpop.f32.mrf.mxu0
        %v540 = vadd.f32 %v381, %v539
        %v541 = vpop.f32.mrf.mxu0
        %v542 = vadd.f32 %v385, %v541
        %543 = vdwg.mxu0
        %544 = vmatprep.subr.bf16.mxu0 0
        %545 = vmatpush1.bf16.msra.mxu0 0
        %546 = vmatprep.subr.bf16.mxu0 0
        %547 = vmatpush1.bf16.msra.mxu0 0
        %548 = vmatprep.subr.bf16.mxu0 0
        %549 = vmatpush1.bf16.msra.mxu0 0
        %550 = vmatprep.subr.bf16.mxu0 0
        %551 = vmatpush1.bf16.msra.mxu0 0
        %552 = vmatprep.subr.bf16.mxu0 0
        %553 = vmatpush1.bf16.msra.mxu0 0
        %554 = vmatprep.subr.bf16.mxu0 0
        %555 = vmatpush1.bf16.msra.mxu0 0
        %556 = vmatprep.subr.bf16.mxu0 %v449
        %557 = vmatpush1.bf16.msra.mxu0 %v448
        %558 = vmatprep.subr.bf16.mxu0 %v445
        %559 = vmatpush1.bf16.msra.mxu0 %v444
        %560 = vmatprep.subr.bf16.mxu0 0
        %561 = vmatpush2.bf16.msra.mxu0 0
        %562 = vmatprep.subr.bf16.mxu0 0
        %563 = vmatpush2.bf16.msra.mxu0 0
        %564 = vmatprep.subr.bf16.mxu0 0
        %565 = vmatpush2.bf16.msra.mxu0 0
        %566 = vmatprep.subr.bf16.mxu0 0
        %567 = vmatpush2.bf16.msra.mxu0 0
        %568 = vmatprep.subr.bf16.mxu0 0
        %569 = vmatpush2.bf16.msra.mxu0 0
        %570 = vmatprep.subr.bf16.mxu0 0
        %571 = vmatpush2.bf16.msra.mxu0 0
        %572 = vmatprep.subr.bf16.mxu0 0
        %573 = vmatpush2.bf16.msra.mxu0 0
        %574 = vmatprep.subr.bf16.mxu0 0
        %575 = vmatpush2.bf16.msra.mxu0 0
        %576 = vmatprep.mubr.bf16.mxu0 0
        %577 = vmatmul.mubr.bf16.gmra.mxu0 %v460
        %v578 = vpop.f32.mrf.mxu0
        %v579 = vadd.f32 %v389, %v578
        %v580 = vpop.f32.mrf.mxu0
        %v581 = vadd.f32 %v393, %v580
        %v582 = vpop.f32.mrf.mxu0
        %v583 = vadd.f32 %v389, %v582
        %v584 = vpop.f32.mrf.mxu0
        %v585 = vadd.f32 %v393, %v584
        %586 = vmatprep.mubr.bf16.mxu0 0
        %587 = vmatmul.mubr.bf16.gmra.mxu0 %v463
        %v588 = vpop.f32.mrf.mxu0
        %v589 = vadd.f32 %v389, %v588
        %v590 = vpop.f32.mrf.mxu0
        %v591 = vadd.f32 %v393, %v590
        %v592 = vpop.f32.mrf.mxu0
        %v593 = vadd.f32 %v389, %v592
        %v594 = vpop.f32.mrf.mxu0
        %v595 = vadd.f32 %v393, %v594
        %596 = vmatprep.mubr.bf16.mxu0 0
        %597 = vmatmul.mubr.bf16.gmra.mxu0 %v466
        %v598 = vpop.f32.mrf.mxu0
        %v599 = vadd.f32 %v389, %v598
        %v600 = vpop.f32.mrf.mxu0
        %v601 = vadd.f32 %v393, %v600
        %v602 = vpop.f32.mrf.mxu0
        %v603 = vadd.f32 %v389, %v602
        %v604 = vpop.f32.mrf.mxu0
        %v605 = vadd.f32 %v393, %v604
        %606 = vmatprep.mubr.bf16.mxu0 0
        %607 = vmatmul.mubr.bf16.gmra.mxu0 %v469
        %v608 = vpop.f32.mrf.mxu0
        %v609 = vadd.f32 %v389, %v608
        %v610 = vpop.f32.mrf.mxu0
        %v611 = vadd.f32 %v393, %v610
        %v612 = vpop.f32.mrf.mxu0
        %v613 = vadd.f32 %v389, %v612
        %v614 = vpop.f32.mrf.mxu0
        %v615 = vadd.f32 %v393, %v614
        %616 = vdwg.mxu0
        %617 = vst [vmem:[#allocation2] sm:$0xff] %v506
        %618 = vst [vmem:[#allocation2 + $0x8] sm:$0xff] %v508
        %619 = vst [vmem:[#allocation2 + $0x10] sm:$0xff] %v579
        %620 = vst [vmem:[#allocation2 + $0x18] sm:$0xff] %v581
        %621 = vst [vmem:[#allocation2 + $0x20] sm:$0xff] %v510
        %622 = vst [vmem:[#allocation2 + $0x28] sm:$0xff] %v512
        %623 = vst [vmem:[#allocation2 + $0x30] sm:$0xff] %v583
        %624 = vst [vmem:[#allocation2 + $0x38] sm:$0xff] %v585
        %625 = vst [vmem:[#allocation2 + $0x40] sm:$0xff] %v516
        %626 = vst [vmem:[#allocation2 + $0x48] sm:$0xff] %v518
        %627 = vst [vmem:[#allocation2 + $0x50] sm:$0xff] %v589
        %628 = vst [vmem:[#allocation2 + $0x58] sm:$0xff] %v591
        %629 = vst [vmem:[#allocation2 + $0x60] sm:$0xff] %v520
        %630 = vst [vmem:[#allocation2 + $0x68] sm:$0xff] %v522
        %631 = vst [vmem:[#allocation2 + $0x70] sm:$0xff] %v593
        %632 = vst [vmem:[#allocation2 + $0x78] sm:$0xff] %v595
        %633 = vst [vmem:[#allocation2 + $0x80] sm:$0xff] %v526
        %634 = vst [vmem:[#allocation2 + $0x88] sm:$0xff] %v528
        %635 = vst [vmem:[#allocation2 + $0x90] sm:$0xff] %v599
        %636 = vst [vmem:[#allocation2 + $0x98] sm:$0xff] %v601
        %637 = vst [vmem:[#allocation2 + $0xa0] sm:$0xff] %v530
        %638 = vst [vmem:[#allocation2 + $0xa8] sm:$0xff] %v532
        %639 = vst [vmem:[#allocation2 + $0xb0] sm:$0xff] %v603
        %640 = vst [vmem:[#allocation2 + $0xb8] sm:$0xff] %v605
        %641 = vst [vmem:[#allocation2 + $0xc0] sm:$0xff] %v536
        %642 = vst [vmem:[#allocation2 + $0xc8] sm:$0xff] %v538
        %643 = vst [vmem:[#allocation2 + $0xd0] sm:$0xff] %v609
        %644 = vst [vmem:[#allocation2 + $0xd8] sm:$0xff] %v611
        %645 = vst [vmem:[#allocation2 + $0xe0] sm:$0xff] %v540
        %646 = vst [vmem:[#allocation2 + $0xe8] sm:$0xff] %v542
        %647 = vst [vmem:[#allocation2 + $0xf0] sm:$0xff] %v613
        %648 = vst [vmem:[#allocation2 + $0xf8] sm:$0xff] %v615
        %v649 = vld [vmem:[#allocation4] sm:$0xff]
        %v650 = vld [vmem:[#allocation4 + $0x8] sm:$0xff]
        %v651 = vld [vmem:[#allocation4 + $0x10] sm:$0xff]
        %v652 = vld [vmem:[#allocation4 + $0x18] sm:$0xff]
        %v653 = vld [vmem:[#allocation4 + $0x20] sm:$0xff]
        %v654 = vld [vmem:[#allocation4 + $0x28] sm:$0xff]
        %v655 = vld [vmem:[#allocation4 + $0x30] sm:$0xff]
        %v656 = vld [vmem:[#allocation4 + $0x38] sm:$0xff]
        %v657 = vld [vmem:[#allocation4 + $0x40] sm:$0xff]
        %v658 = vld [vmem:[#allocation4 + $0x48] sm:$0xff]
        %v659 = vld [vmem:[#allocation4 + $0x50] sm:$0xff]
        %v660 = vld [vmem:[#allocation4 + $0x58] sm:$0xff]
        %v661 = vld [vmem:[#allocation4 + $0x60] sm:$0xff]
        %v662 = vld [vmem:[#allocation4 + $0x68] sm:$0xff]
        %v663 = vld [vmem:[#allocation4 + $0x70] sm:$0xff]
        %v664 = vld [vmem:[#allocation4 + $0x78] sm:$0xff]
        %v665 = vld [vmem:[#allocation4 + $0x80] sm:$0xff]
        %v666 = vld [vmem:[#allocation4 + $0x88] sm:$0xff]
        %v667 = vld [vmem:[#allocation4 + $0x90] sm:$0xff]
        %v668 = vld [vmem:[#allocation4 + $0x98] sm:$0xff]
        %v669 = vld [vmem:[#allocation4 + $0xa0] sm:$0xff]
        %v670 = vld [vmem:[#allocation4 + $0xa8] sm:$0xff]
        %v671 = vld [vmem:[#allocation4 + $0xb0] sm:$0xff]
        %v672 = vld [vmem:[#allocation4 + $0xb8] sm:$0xff]
        %v673 = vld [vmem:[#allocation4 + $0xc0] sm:$0xff]
        %v674 = vld [vmem:[#allocation4 + $0xc8] sm:$0xff]
        %v675 = vld [vmem:[#allocation4 + $0xd0] sm:$0xff]
        %v676 = vld [vmem:[#allocation4 + $0xd8] sm:$0xff]
        %v677 = vld [vmem:[#allocation4 + $0xe0] sm:$0xff]
        %v678 = vld [vmem:[#allocation4 + $0xe8] sm:$0xff]
        %v679 = vld [vmem:[#allocation4 + $0xf0] sm:$0xff]
        %v680 = vld [vmem:[#allocation4 + $0xf8] sm:$0xff]
        %v681 = vld [vmem:[#allocation2] sm:$0xff]
        %v682 = vld [vmem:[#allocation2 + $0x8] sm:$0xff]
        %v683 = vld [vmem:[#allocation2 + $0x10] sm:$0xff]
        %v684 = vld [vmem:[#allocation2 + $0x18] sm:$0xff]
        %v717 = vunpack.c.l.b16 %v649
        %v718 = vunpack.c.h.b16 %v649
        %v719 = vunpack.c.l.b16 %v650
        %v720 = vunpack.c.h.b16 %v650
        %v721 = vunpack.c.l.b16 %v651
        %v722 = vunpack.c.h.b16 %v651
        %v723 = vunpack.c.l.b16 %v652
        %v724 = vunpack.c.h.b16 %v652
        %v725 = vunpack.c.l.b16 %v653
        %v726 = vunpack.c.h.b16 %v653
        %v727 = vunpack.c.l.b16 %v654
        %v728 = vunpack.c.h.b16 %v654
        %v729 = vunpack.c.l.b16 %v655
        %v730 = vunpack.c.h.b16 %v655
        %v731 = vunpack.c.l.b16 %v656
        %v732 = vunpack.c.h.b16 %v656
        %v733 = vunpack.c.l.b16 %v657
        %v734 = vunpack.c.h.b16 %v657
        %v735 = vunpack.c.l.b16 %v658
        %v736 = vunpack.c.h.b16 %v658
        %v737 = vunpack.c.l.b16 %v659
        %v738 = vunpack.c.h.b16 %v659
        %v739 = vunpack.c.l.b16 %v660
        %v740 = vunpack.c.h.b16 %v660
        %v741 = vunpack.c.l.b16 %v661
        %v742 = vunpack.c.h.b16 %v661
        %v743 = vunpack.c.l.b16 %v662
        %v744 = vunpack.c.h.b16 %v662
        %v745 = vunpack.c.l.b16 %v663
        %v746 = vunpack.c.h.b16 %v663
        %v747 = vunpack.c.l.b16 %v664
        %v748 = vunpack.c.h.b16 %v664
        %v749 = vunpack.c.l.b16 %v665
        %v750 = vunpack.c.h.b16 %v665
        %v751 = vunpack.c.l.b16 %v666
        %v752 = vunpack.c.h.b16 %v666
        %v753 = vunpack.c.l.b16 %v667
        %v754 = vunpack.c.h.b16 %v667
        %v755 = vunpack.c.l.b16 %v668
        %v756 = vunpack.c.h.b16 %v668
        %v757 = vunpack.c.l.b16 %v669
        %v758 = vunpack.c.h.b16 %v669
        %v759 = vunpack.c.l.b16 %v670
        %v760 = vunpack.c.h.b16 %v670
        %v761 = vunpack.c.l.b16 %v671
        %v762 = vunpack.c.h.b16 %v671
        %v763 = vunpack.c.l.b16 %v672
        %v764 = vunpack.c.h.b16 %v672
        %v765 = vunpack.c.l.b16 %v673
        %v766 = vunpack.c.h.b16 %v673
        %v767 = vunpack.c.l.b16 %v674
        %v768 = vunpack.c.h.b16 %v674
        %v769 = vunpack.c.l.b16 %v675
        %v770 = vunpack.c.h.b16 %v675
        %v771 = vunpack.c.l.b16 %v676
        %v772 = vunpack.c.h.b16 %v676
        %v773 = vunpack.c.l.b16 %v677
        %v774 = vunpack.c.h.b16 %v677
        %v775 = vunpack.c.l.b16 %v678
        %v776 = vunpack.c.h.b16 %v678
        %v777 = vunpack.c.l.b16 %v679
        %v778 = vunpack.c.h.b16 %v679
        %v779 = vunpack.c.l.b16 %v680
        %v780 = vunpack.c.h.b16 %v680
        %v781 = vpack.c.b16 %v721, %v717
        %v782 = vpack.c.b16 %v722, %v718
        %v783 = vpack.c.b16 %v723, %v719
        %v784 = vpack.c.b16 %v724, %v720
        %v785 = vpack.c.b16 %v729, %v725
        %v786 = vpack.c.b16 %v730, %v726
        %v787 = vpack.c.b16 %v731, %v727
        %v788 = vpack.c.b16 %v732, %v728
        %v789 = vpack.c.b16 %v737, %v733
        %v790 = vpack.c.b16 %v738, %v734
        %v791 = vpack.c.b16 %v739, %v735
        %v792 = vpack.c.b16 %v740, %v736
        %v793 = vpack.c.b16 %v745, %v741
        %v794 = vpack.c.b16 %v746, %v742
        %v795 = vpack.c.b16 %v747, %v743
        %v796 = vpack.c.b16 %v748, %v744
        %v797 = vpack.c.b16 %v753, %v749
        %v798 = vpack.c.b16 %v754, %v750
        %v799 = vpack.c.b16 %v755, %v751
        %v800 = vpack.c.b16 %v756, %v752
        %v801 = vpack.c.b16 %v761, %v757
        %v802 = vpack.c.b16 %v762, %v758
        %v803 = vpack.c.b16 %v763, %v759
        %v804 = vpack.c.b16 %v764, %v760
        %v805 = vpack.c.b16 %v769, %v765
        %v806 = vpack.c.b16 %v770, %v766
        %v807 = vpack.c.b16 %v771, %v767
        %v808 = vpack.c.b16 %v772, %v768
        %v809 = vpack.c.b16 %v777, %v773
        %v810 = vpack.c.b16 %v778, %v774
        %v811 = vpack.c.b16 %v779, %v775
        %v812 = vpack.c.b16 %v780, %v776
        %845 = vmatprep.subr.bf16.mxu0 %v810
        %846 = vmatpush1.bf16.msra.mxu0 %v809
        %847 = vmatprep.subr.bf16.mxu0 %v806
        %848 = vmatpush1.bf16.msra.mxu0 %v805
        %849 = vmatprep.subr.bf16.mxu0 %v802
        %850 = vmatpush1.bf16.msra.mxu0 %v801
        %851 = vmatprep.subr.bf16.mxu0 %v798
        %852 = vmatpush1.bf16.msra.mxu0 %v797
        %853 = vmatprep.subr.bf16.mxu0 %v794
        %854 = vmatpush1.bf16.msra.mxu0 %v793
        %855 = vmatprep.subr.bf16.mxu0 %v790
        %856 = vmatpush1.bf16.msra.mxu0 %v789
        %857 = vmatprep.subr.bf16.mxu0 %v786
        %858 = vmatpush1.bf16.msra.mxu0 %v785
        %859 = vmatprep.subr.bf16.mxu0 %v782
        %860 = vmatpush1.bf16.msra.mxu0 %v781
        %861 = vmatprep.subr.bf16.mxu0 0
        %862 = vmatpush2.bf16.msra.mxu0 0
        %863 = vmatprep.subr.bf16.mxu0 0
        %864 = vmatpush2.bf16.msra.mxu0 0
        %865 = vmatprep.subr.bf16.mxu0 0
        %866 = vmatpush2.bf16.msra.mxu0 0
        %867 = vmatprep.subr.bf16.mxu0 0
        %868 = vmatpush2.bf16.msra.mxu0 0
        %869 = vmatprep.subr.bf16.mxu0 0
        %870 = vmatpush2.bf16.msra.mxu0 0
        %871 = vmatprep.subr.bf16.mxu0 0
        %872 = vmatpush2.bf16.msra.mxu0 0
        %873 = vmatprep.subr.bf16.mxu0 0
        %874 = vmatpush2.bf16.msra.mxu0 0
        %875 = vmatprep.subr.bf16.mxu0 0
        %876 = vmatpush2.bf16.msra.mxu0 0
        %877 = vmatprep.mubr.bf16.mxu0 0
        %878 = vmatmul.mubr.bf16.gmra.mxu0 0
        %v879 = vpop.f32.mrf.mxu0
        %v880 = vadd.f32 0.0, %v879
        %v881 = vpop.f32.mrf.mxu0
        %v882 = vadd.f32 0.0, %v881
        %v883 = vpop.f32.mrf.mxu0
        %v884 = vpop.f32.mrf.mxu0
        %885 = vdwg.mxu0
        %886 = vmatprep.subr.bf16.mxu0 %v812
        %887 = vmatpush1.bf16.msra.mxu0 %v811
        %888 = vmatprep.subr.bf16.mxu0 %v808
        %889 = vmatpush1.bf16.msra.mxu0 %v807
        %890 = vmatprep.subr.bf16.mxu0 %v804
        %891 = vmatpush1.bf16.msra.mxu0 %v803
        %892 = vmatprep.subr.bf16.mxu0 %v800
        %893 = vmatpush1.bf16.msra.mxu0 %v799
        %894 = vmatprep.subr.bf16.mxu0 %v796
        %895 = vmatpush1.bf16.msra.mxu0 %v795
        %896 = vmatprep.subr.bf16.mxu0 %v792
        %897 = vmatpush1.bf16.msra.mxu0 %v791
        %898 = vmatprep.subr.bf16.mxu0 %v788
        %899 = vmatpush1.bf16.msra.mxu0 %v787
        %900 = vmatprep.subr.bf16.mxu0 %v784
        %901 = vmatpush1.bf16.msra.mxu0 %v783
        %902 = vmatprep.subr.bf16.mxu0 0
        %903 = vmatpush2.bf16.msra.mxu0 0
        %904 = vmatprep.subr.bf16.mxu0 0
        %905 = vmatpush2.bf16.msra.mxu0 0
        %906 = vmatprep.subr.bf16.mxu0 0
        %907 = vmatpush2.bf16.msra.mxu0 0
        %908 = vmatprep.subr.bf16.mxu0 0
        %909 = vmatpush2.bf16.msra.mxu0 0
        %910 = vmatprep.subr.bf16.mxu0 0
        %911 = vmatpush2.bf16.msra.mxu0 0
        %912 = vmatprep.subr.bf16.mxu0 0
        %913 = vmatpush2.bf16.msra.mxu0 0
        %914 = vmatprep.subr.bf16.mxu0 0
        %915 = vmatpush2.bf16.msra.mxu0 0
        %916 = vmatprep.subr.bf16.mxu0 0
        %917 = vmatpush2.bf16.msra.mxu0 0
        %918 = vmatprep.mubr.bf16.mxu0 0
        %919 = vmatmul.mubr.bf16.gmra.mxu0 0
        %v920 = vpop.f32.mrf.mxu0
        %v921 = vadd.f32 0.0, %v920
        %v922 = vpop.f32.mrf.mxu0
        %v923 = vadd.f32 0.0, %v922
        %v924 = vpop.f32.mrf.mxu0
        %v925 = vpop.f32.mrf.mxu0
        %926 = vdwg.mxu0
        %v927 = vadd.f32 %v681, %v880
        %v928 = vadd.f32 %v682, %v882
        %v929 = vadd.f32 %v683, %v921
        %v930 = vadd.f32 %v684, %v923
        %v931 = vxor.u32 %v927, 2147483648
        %v932 = vmul.f32 %v931, 1.442695
        %v933 = vpow.pop %v932
        %v934 = vadd.f32 %v933, 1.0
        %v935 = vrcp.pop %v934
        %v936 = vmul.f32 1.0, %v935
        %v937 = vxor.u32 %v928, 2147483648
        %v938 = vmul.f32 %v937, 1.442695
        %v939 = vpow.pop %v938
        %v940 = vadd.f32 %v939, 1.0
        %v941 = vrcp.pop %v940
        %v942 = vmul.f32 1.0, %v941
        %v943 = vtanh.pop %v929
        %v944 = vxor.u32 %v930, 2147483648
        %v945 = vmul.f32 %v944, 1.442695
        %v946 = vpow.pop %v945
        %v947 = vadd.f32 %v946, 1.0
        %v948 = vrcp.pop %v947
        %v949 = vmul.f32 1.0, %v948
        %v950 = vmul.f32 %v942, 0.0
        %v951 = vmul.f32 %v936, %v943
        %v952 = vadd.f32 %v950, %v951
        %v953 = vtanh.pop %v952
        %v954 = vmul.f32 %v949, %v953
        %v955 = vpack.c.bf16 %v954, %v954
        %956 = vst [vmem:[#allocation3] sm:$0xf] %v955
        %v957 = vld [vmem:[#allocation2 + $0x20] sm:$0xff]
        %v958 = vld [vmem:[#allocation2 + $0x28] sm:$0xff]
        %v959 = vld [vmem:[#allocation2 + $0x30] sm:$0xff]
        %v960 = vld [vmem:[#allocation2 + $0x38] sm:$0xff]
        %961 = vmatprep.subr.bf16.mxu0 %v810
        %962 = vmatpush1.bf16.msra.mxu0 %v809
        %963 = vmatprep.subr.bf16.mxu0 %v806
        %964 = vmatpush1.bf16.msra.mxu0 %v805
        %965 = vmatprep.subr.bf16.mxu0 %v802
        %966 = vmatpush1.bf16.msra.mxu0 %v801
        %967 = vmatprep.subr.bf16.mxu0 %v798
        %968 = vmatpush1.bf16.msra.mxu0 %v797
        %969 = vmatprep.subr.bf16.mxu0 %v794
        %970 = vmatpush1.bf16.msra.mxu0 %v793
        %971 = vmatprep.subr.bf16.mxu0 %v790
        %972 = vmatpush1.bf16.msra.mxu0 %v789
        %973 = vmatprep.subr.bf16.mxu0 %v786
        %974 = vmatpush1.bf16.msra.mxu0 %v785
        %975 = vmatprep.subr.bf16.mxu0 %v782
        %976 = vmatpush1.bf16.msra.mxu0 %v781
        %977 = vmatprep.subr.bf16.mxu0 0
        %978 = vmatpush2.bf16.msra.mxu0 0
        %979 = vmatprep.subr.bf16.mxu0 0
        %980 = vmatpush2.bf16.msra.mxu0 0
        %981 = vmatprep.subr.bf16.mxu0 0
        %982 = vmatpush2.bf16.msra.mxu0 0
        %983 = vmatprep.subr.bf16.mxu0 0
        %984 = vmatpush2.bf16.msra.mxu0 0
        %985 = vmatprep.subr.bf16.mxu0 0
        %986 = vmatpush2.bf16.msra.mxu0 0
        %987 = vmatprep.subr.bf16.mxu0 0
        %988 = vmatpush2.bf16.msra.mxu0 0
        %989 = vmatprep.subr.bf16.mxu0 0
        %990 = vmatpush2.bf16.msra.mxu0 0
        %991 = vmatprep.subr.bf16.mxu0 0
        %992 = vmatpush2.bf16.msra.mxu0 0
        %993 = vmatprep.mubr.bf16.mxu0 0
        %994 = vmatmul.mubr.bf16.gmra.mxu0 %v955
        %v995 = vpop.f32.mrf.mxu0
        %v996 = vadd.f32 0.0, %v995
        %v997 = vpop.f32.mrf.mxu0
        %v998 = vadd.f32 0.0, %v997
        %v999 = vpop.f32.mrf.mxu0
        %v1000 = vpop.f32.mrf.mxu0
        %1001 = vdwg.mxu0
        %1002 = vmatprep.subr.bf16.mxu0 %v812
        %1003 = vmatpush1.bf16.msra.mxu0 %v811
        %1004 = vmatprep.subr.bf16.mxu0 %v808
        %1005 = vmatpush1.bf16.msra.mxu0 %v807
        %1006 = vmatprep.subr.bf16.mxu0 %v804
        %1007 = vmatpush1.bf16.msra.mxu0 %v803
        %1008 = vmatprep.subr.bf16.mxu0 %v800
        %1009 = vmatpush1.bf16.msra.mxu0 %v799
        %1010 = vmatprep.subr.bf16.mxu0 %v796
        %1011 = vmatpush1.bf16.msra.mxu0 %v795
        %1012 = vmatprep.subr.bf16.mxu0 %v792
        %1013 = vmatpush1.bf16.msra.mxu0 %v791
        %1014 = vmatprep.subr.bf16.mxu0 %v788
        %1015 = vmatpush1.bf16.msra.mxu0 %v787
        %1016 = vmatprep.subr.bf16.mxu0 %v784
        %1017 = vmatpush1.bf16.msra.mxu0 %v783
        %1018 = vmatprep.subr.bf16.mxu0 0
        %1019 = vmatpush2.bf16.msra.mxu0 0
        %1020 = vmatprep.subr.bf16.mxu0 0
        %1021 = vmatpush2.bf16.msra.mxu0 0
        %1022 = vmatprep.subr.bf16.mxu0 0
        %1023 = vmatpush2.bf16.msra.mxu0 0
        %1024 = vmatprep.subr.bf16.mxu0 0
        %1025 = vmatpush2.bf16.msra.mxu0 0
        %1026 = vmatprep.subr.bf16.mxu0 0
        %1027 = vmatpush2.bf16.msra.mxu0 0
        %1028 = vmatprep.subr.bf16.mxu0 0
        %1029 = vmatpush2.bf16.msra.mxu0 0
        %1030 = vmatprep.subr.bf16.mxu0 0
        %1031 = vmatpush2.bf16.msra.mxu0 0
        %1032 = vmatprep.subr.bf16.mxu0 0
        %1033 = vmatpush2.bf16.msra.mxu0 0
        %1034 = vmatprep.mubr.bf16.mxu0 0
        %1035 = vmatmul.mubr.bf16.gmra.mxu0 %v955
        %v1036 = vpop.f32.mrf.mxu0
        %v1037 = vadd.f32 0.0, %v1036
        %v1038 = vpop.f32.mrf.mxu0
        %v1039 = vadd.f32 0.0, %v1038
        %v1040 = vpop.f32.mrf.mxu0
        %v1041 = vpop.f32.mrf.mxu0
        %1042 = vdwg.mxu0
        %v1043 = vadd.f32 %v957, %v996
        %v1044 = vadd.f32 %v958, %v998
        %v1045 = vadd.f32 %v959, %v1037
        %v1046 = vadd.f32 %v960, %v1039
        %v1047 = vxor.u32 %v1043, 2147483648
        %v1048 = vmul.f32 %v1047, 1.442695
        %v1049 = vpow.pop %v1048
        %v1050 = vadd.f32 %v1049, 1.0
        %v1051 = vrcp.pop %v1050
        %v1052 = vmul.f32 1.0, %v1051
        %v1053 = vxor.u32 %v1044, 2147483648
        %v1054 = vmul.f32 %v1053, 1.442695
        %v1055 = vpow.pop %v1054
        %v1056 = vadd.f32 %v1055, 1.0
        %v1057 = vrcp.pop %v1056
        %v1058 = vmul.f32 1.0, %v1057
        %v1059 = vtanh.pop %v1045
        %v1060 = vxor.u32 %v1046, 2147483648
        %v1061 = vmul.f32 %v1060, 1.442695
        %v1062 = vpow.pop %v1061
        %v1063 = vadd.f32 %v1062, 1.0
        %v1064 = vrcp.pop %v1063
        %v1065 = vmul.f32 1.0, %v1064
        %v1066 = vmul.f32 %v1058, %v952
        %v1067 = vmul.f32 %v1052, %v1059
        %v1068 = vadd.f32 %v1066, %v1067
        %v1069 = vtanh.pop %v1068
        %v1070 = vmul.f32 %v1065, %v1069
        %v1071 = vpack.c.bf16 %v1070, %v1070
        %1072 = vst [vmem:[#allocation3 + $0x4] sm:$0xf] %v1071
        %v1073 = vld [vmem:[#allocation2 + $0x40] sm:$0xff]
        %v1074 = vld [vmem:[#allocation2 + $0x48] sm:$0xff]
        %v1075 = vld [vmem:[#allocation2 + $0x50] sm:$0xff]
        %v1076 = vld [vmem:[#allocation2 + $0x58] sm:$0xff]
        %1077 = vmatprep.subr.bf16.mxu0 %v810
        %1078 = vmatpush1.bf16.msra.mxu0 %v809
        %1079 = vmatprep.subr.bf16.mxu0 %v806
        %1080 = vmatpush1.bf16.msra.mxu0 %v805
        %1081 = vmatprep.subr.bf16.mxu0 %v802
        %1082 = vmatpush1.bf16.msra.mxu0 %v801
        %1083 = vmatprep.subr.bf16.mxu0 %v798
        %1084 = vmatpush1.bf16.msra.mxu0 %v797
        %1085 = vmatprep.subr.bf16.mxu0 %v794
        %1086 = vmatpush1.bf16.msra.mxu0 %v793
        %1087 = vmatprep.subr.bf16.mxu0 %v790
        %1088 = vmatpush1.bf16.msra.mxu0 %v789
        %1089 = vmatprep.subr.bf16.mxu0 %v786
        %1090 = vmatpush1.bf16.msra.mxu0 %v785
        %1091 = vmatprep.subr.bf16.mxu0 %v782
        %1092 = vmatpush1.bf16.msra.mxu0 %v781
        %1093 = vmatprep.subr.bf16.mxu0 0
        %1094 = vmatpush2.bf16.msra.mxu0 0
        %1095 = vmatprep.subr.bf16.mxu0 0
        %1096 = vmatpush2.bf16.msra.mxu0 0
        %1097 = vmatprep.subr.bf16.mxu0 0
        %1098 = vmatpush2.bf16.msra.mxu0 0
        %1099 = vmatprep.subr.bf16.mxu0 0
        %1100 = vmatpush2.bf16.msra.mxu0 0
        %1101 = vmatprep.subr.bf16.mxu0 0
        %1102 = vmatpush2.bf16.msra.mxu0 0
        %1103 = vmatprep.subr.bf16.mxu0 0
        %1104 = vmatpush2.bf16.msra.mxu0 0
        %1105 = vmatprep.subr.bf16.mxu0 0
        %1106 = vmatpush2.bf16.msra.mxu0 0
        %1107 = vmatprep.subr.bf16.mxu0 0
        %1108 = vmatpush2.bf16.msra.mxu0 0
        %1109 = vmatprep.mubr.bf16.mxu0 0
        %1110 = vmatmul.mubr.bf16.gmra.mxu0 %v1071
        %v1111 = vpop.f32.mrf.mxu0
        %v1112 = vadd.f32 0.0, %v1111
        %v1113 = vpop.f32.mrf.mxu0
        %v1114 = vadd.f32 0.0, %v1113
        %v1115 = vpop.f32.mrf.mxu0
        %v1116 = vpop.f32.mrf.mxu0
        %1117 = vdwg.mxu0
        %1118 = vmatprep.subr.bf16.mxu0 %v812
        %1119 = vmatpush1.bf16.msra.mxu0 %v811
        %1120 = vmatprep.subr.bf16.mxu0 %v808
        %1121 = vmatpush1.bf16.msra.mxu0 %v807
        %1122 = vmatprep.subr.bf16.mxu0 %v804
        %1123 = vmatpush1.bf16.msra.mxu0 %v803
        %1124 = vmatprep.subr.bf16.mxu0 %v800
        %1125 = vmatpush1.bf16.msra.mxu0 %v799
        %1126 = vmatprep.subr.bf16.mxu0 %v796
        %1127 = vmatpush1.bf16.msra.mxu0 %v795
        %1128 = vmatprep.subr.bf16.mxu0 %v792
        %1129 = vmatpush1.bf16.msra.mxu0 %v791
        %1130 = vmatprep.subr.bf16.mxu0 %v788
        %1131 = vmatpush1.bf16.msra.mxu0 %v787
        %1132 = vmatprep.subr.bf16.mxu0 %v784
        %1133 = vmatpush1.bf16.msra.mxu0 %v783
        %1134 = vmatprep.subr.bf16.mxu0 0
        %1135 = vmatpush2.bf16.msra.mxu0 0
        %1136 = vmatprep.subr.bf16.mxu0 0
        %1137 = vmatpush2.bf16.msra.mxu0 0
        %1138 = vmatprep.subr.bf16.mxu0 0
        %1139 = vmatpush2.bf16.msra.mxu0 0
        %1140 = vmatprep.subr.bf16.mxu0 0
        %1141 = vmatpush2.bf16.msra.mxu0 0
        %1142 = vmatprep.subr.bf16.mxu0 0
        %1143 = vmatpush2.bf16.msra.mxu0 0
        %1144 = vmatprep.subr.bf16.mxu0 0
        %1145 = vmatpush2.bf16.msra.mxu0 0
        %1146 = vmatprep.subr.bf16.mxu0 0
        %1147 = vmatpush2.bf16.msra.mxu0 0
        %1148 = vmatprep.subr.bf16.mxu0 0
        %1149 = vmatpush2.bf16.msra.mxu0 0
        %1150 = vmatprep.mubr.bf16.mxu0 0
        %1151 = vmatmul.mubr.bf16.gmra.mxu0 %v1071
        %v1152 = vpop.f32.mrf.mxu0
        %v1153 = vadd.f32 0.0, %v1152
        %v1154 = vpop.f32.mrf.mxu0
        %v1155 = vadd.f32 0.0, %v1154
        %v1156 = vpop.f32.mrf.mxu0
        %v1157 = vpop.f32.mrf.mxu0
        %1158 = vdwg.mxu0
        %v1159 = vadd.f32 %v1073, %v1112
        %v1160 = vadd.f32 %v1074, %v1114
        %v1161 = vadd.f32 %v1075, %v1153
        %v1162 = vadd.f32 %v1076, %v1155
        %v1163 = vxor.u32 %v1159, 2147483648
        %v1164 = vmul.f32 %v1163, 1.442695
        %v1165 = vpow.pop %v1164
        %v1166 = vadd.f32 %v1165, 1.0
        %v1167 = vrcp.pop %v1166
        %v1168 = vmul.f32 1.0, %v1167
        %v1169 = vxor.u32 %v1160, 2147483648
        %v1170 = vmul.f32 %v1169, 1.442695
        %v1171 = vpow.pop %v1170
        %v1172 = vadd.f32 %v1171, 1.0
        %v1173 = vrcp.pop %v1172
        %v1174 = vmul.f32 1.0, %v1173
        %v1175 = vtanh.pop %v1161
        %v1176 = vxor.u32 %v1162, 2147483648
        %v1177 = vmul.f32 %v1176, 1.442695
        %v1178 = vpow.pop %v1177
        %v1179 = vadd.f32 %v1178, 1.0
        %v1180 = vrcp.pop %v1179
        %v1181 = vmul.f32 1.0, %v1180
        %v1182 = vmul.f32 %v1174, %v1068
        %v1183 = vmul.f32 %v1168, %v1175
        %v1184 = vadd.f32 %v1182, %v1183
        %v1185 = vtanh.pop %v1184
        %v1186 = vmul.f32 %v1181, %v1185
        %v1187 = vpack.c.bf16 %v1186, %v1186
        %1188 = vst [vmem:[#allocation3 + $0x8] sm:$0xf] %v1187
        %v1189 = vld [vmem:[#allocation2 + $0x60] sm:$0xff]
        %v1190 = vld [vmem:[#allocation2 + $0x68] sm:$0xff]
        %v1191 = vld [vmem:[#allocation2 + $0x70] sm:$0xff]
        %v1192 = vld [vmem:[#allocation2 + $0x78] sm:$0xff]
        %1193 = vmatprep.subr.bf16.mxu0 %v810
        %1194 = vmatpush1.bf16.msra.mxu0 %v809
        %1195 = vmatprep.subr.bf16.mxu0 %v806
        %1196 = vmatpush1.bf16.msra.mxu0 %v805
        %1197 = vmatprep.subr.bf16.mxu0 %v802
        %1198 = vmatpush1.bf16.msra.mxu0 %v801
        %1199 = vmatprep.subr.bf16.mxu0 %v798
        %1200 = vmatpush1.bf16.msra.mxu0 %v797
        %1201 = vmatprep.subr.bf16.mxu0 %v794
        %1202 = vmatpush1.bf16.msra.mxu0 %v793
        %1203 = vmatprep.subr.bf16.mxu0 %v790
        %1204 = vmatpush1.bf16.msra.mxu0 %v789
        %1205 = vmatprep.subr.bf16.mxu0 %v786
        %1206 = vmatpush1.bf16.msra.mxu0 %v785
        %1207 = vmatprep.subr.bf16.mxu0 %v782
        %1208 = vmatpush1.bf16.msra.mxu0 %v781
        %1209 = vmatprep.subr.bf16.mxu0 0
        %1210 = vmatpush2.bf16.msra.mxu0 0
        %1211 = vmatprep.subr.bf16.mxu0 0
        %1212 = vmatpush2.bf16.msra.mxu0 0
        %1213 = vmatprep.subr.bf16.mxu0 0
        %1214 = vmatpush2.bf16.msra.mxu0 0
        %1215 = vmatprep.subr.bf16.mxu0 0
        %1216 = vmatpush2.bf16.msra.mxu0 0
        %1217 = vmatprep.subr.bf16.mxu0 0
        %1218 = vmatpush2.bf16.msra.mxu0 0
        %1219 = vmatprep.subr.bf16.mxu0 0
        %1220 = vmatpush2.bf16.msra.mxu0 0
        %1221 = vmatprep.subr.bf16.mxu0 0
        %1222 = vmatpush2.bf16.msra.mxu0 0
        %1223 = vmatprep.subr.bf16.mxu0 0
        %1224 = vmatpush2.bf16.msra.mxu0 0
        %1225 = vmatprep.mubr.bf16.mxu0 0
        %1226 = vmatmul.mubr.bf16.gmra.mxu0 %v1187
        %v1227 = vpop.f32.mrf.mxu0
        %v1228 = vadd.f32 0.0, %v1227
        %v1229 = vpop.f32.mrf.mxu0
        %v1230 = vadd.f32 0.0, %v1229
        %v1231 = vpop.f32.mrf.mxu0
        %v1232 = vpop.f32.mrf.mxu0
        %1233 = vdwg.mxu0
        %1234 = vmatprep.subr.bf16.mxu0 %v812
        %1235 = vmatpush1.bf16.msra.mxu0 %v811
        %1236 = vmatprep.subr.bf16.mxu0 %v808
        %1237 = vmatpush1.bf16.msra.mxu0 %v807
        %1238 = vmatprep.subr.bf16.mxu0 %v804
        %1239 = vmatpush1.bf16.msra.mxu0 %v803
        %1240 = vmatprep.subr.bf16.mxu0 %v800
        %1241 = vmatpush1.bf16.msra.mxu0 %v799
        %1242 = vmatprep.subr.bf16.mxu0 %v796
        %1243 = vmatpush1.bf16.msra.mxu0 %v795
        %1244 = vmatprep.subr.bf16.mxu0 %v792
        %1245 = vmatpush1.bf16.msra.mxu0 %v791
        %1246 = vmatprep.subr.bf16.mxu0 %v788
        %1247 = vmatpush1.bf16.msra.mxu0 %v787
        %1248 = vmatprep.subr.bf16.mxu0 %v784
        %1249 = vmatpush1.bf16.msra.mxu0 %v783
        %1250 = vmatprep.subr.bf16.mxu0 0
        %1251 = vmatpush2.bf16.msra.mxu0 0
        %1252 = vmatprep.subr.bf16.mxu0 0
        %1253 = vmatpush2.bf16.msra.mxu0 0
        %1254 = vmatprep.subr.bf16.mxu0 0
        %1255 = vmatpush2.bf16.msra.mxu0 0
        %1256 = vmatprep.subr.bf16.mxu0 0
        %1257 = vmatpush2.bf16.msra.mxu0 0
        %1258 = vmatprep.subr.bf16.mxu0 0
        %1259 = vmatpush2.bf16.msra.mxu0 0
        %1260 = vmatprep.subr.bf16.mxu0 0
        %1261 = vmatpush2.bf16.msra.mxu0 0
        %1262 = vmatprep.subr.bf16.mxu0 0
        %1263 = vmatpush2.bf16.msra.mxu0 0
        %1264 = vmatprep.subr.bf16.mxu0 0
        %1265 = vmatpush2.bf16.msra.mxu0 0
        %1266 = vmatprep.mubr.bf16.mxu0 0
        %1267 = vmatmul.mubr.bf16.gmra.mxu0 %v1187
        %v1268 = vpop.f32.mrf.mxu0
        %v1269 = vadd.f32 0.0, %v1268
        %v1270 = vpop.f32.mrf.mxu0
        %v1271 = vadd.f32 0.0, %v1270
        %v1272 = vpop.f32.mrf.mxu0
        %v1273 = vpop.f32.mrf.mxu0
        %1274 = vdwg.mxu0
        %v1275 = vadd.f32 %v1189, %v1228
        %v1276 = vadd.f32 %v1190, %v1230
        %v1277 = vadd.f32 %v1191, %v1269
        %v1278 = vadd.f32 %v1192, %v1271
        %v1279 = vxor.u32 %v1275, 2147483648
        %v1280 = vmul.f32 %v1279, 1.442695
        %v1281 = vpow.pop %v1280
        %v1282 = vadd.f32 %v1281, 1.0
        %v1283 = vrcp.pop %v1282
        %v1284 = vmul.f32 1.0, %v1283
        %v1285 = vxor.u32 %v1276, 2147483648
        %v1286 = vmul.f32 %v1285, 1.442695
        %v1287 = vpow.pop %v1286
        %v1288 = vadd.f32 %v1287, 1.0
        %v1289 = vrcp.pop %v1288
        %v1290 = vmul.f32 1.0, %v1289
        %v1291 = vtanh.pop %v1277
        %v1292 = vxor.u32 %v1278, 2147483648
        %v1293 = vmul.f32 %v1292, 1.442695
        %v1294 = vpow.pop %v1293
        %v1295 = vadd.f32 %v1294, 1.0
        %v1296 = vrcp.pop %v1295
        %v1297 = vmul.f32 1.0, %v1296
        %v1298 = vmul.f32 %v1290, %v1184
        %v1299 = vmul.f32 %v1284, %v1291
        %v1300 = vadd.f32 %v1298, %v1299
        %v1301 = vtanh.pop %v1300
        %v1302 = vmul.f32 %v1297, %v1301
        %v1303 = vpack.c.bf16 %v1302, %v1302
        %1304 = vst [vmem:[#allocation3 + $0xc] sm:$0xf] %v1303
        %v1305 = vld [vmem:[#allocation2 + $0x80] sm:$0xff]
        %v1306 = vld [vmem:[#allocation2 + $0x88] sm:$0xff]
        %v1307 = vld [vmem:[#allocation2 + $0x90] sm:$0xff]
        %v1308 = vld [vmem:[#allocation2 + $0x98] sm:$0xff]
        %1309 = vmatprep.subr.bf16.mxu0 %v810
        %1310 = vmatpush1.bf16.msra.mxu0 %v809
        %1311 = vmatprep.subr.bf16.mxu0 %v806
        %1312 = vmatpush1.bf16.msra.mxu0 %v805
        %1313 = vmatprep.subr.bf16.mxu0 %v802
        %1314 = vmatpush1.bf16.msra.mxu0 %v801
        %1315 = vmatprep.subr.bf16.mxu0 %v798
        %1316 = vmatpush1.bf16.msra.mxu0 %v797
        %1317 = vmatprep.subr.bf16.mxu0 %v794
        %1318 = vmatpush1.bf16.msra.mxu0 %v793
        %1319 = vmatprep.subr.bf16.mxu0 %v790
        %1320 = vmatpush1.bf16.msra.mxu0 %v789
        %1321 = vmatprep.subr.bf16.mxu0 %v786
        %1322 = vmatpush1.bf16.msra.mxu0 %v785
        %1323 = vmatprep.subr.bf16.mxu0 %v782
        %1324 = vmatpush1.bf16.msra.mxu0 %v781
        %1325 = vmatprep.subr.bf16.mxu0 0
        %1326 = vmatpush2.bf16.msra.mxu0 0
        %1327 = vmatprep.subr.bf16.mxu0 0
        %1328 = vmatpush2.bf16.msra.mxu0 0
        %1329 = vmatprep.subr.bf16.mxu0 0
        %1330 = vmatpush2.bf16.msra.mxu0 0
        %1331 = vmatprep.subr.bf16.mxu0 0
        %1332 = vmatpush2.bf16.msra.mxu0 0
        %1333 = vmatprep.subr.bf16.mxu0 0
        %1334 = vmatpush2.bf16.msra.mxu0 0
        %1335 = vmatprep.subr.bf16.mxu0 0
        %1336 = vmatpush2.bf16.msra.mxu0 0
        %1337 = vmatprep.subr.bf16.mxu0 0
        %1338 = vmatpush2.bf16.msra.mxu0 0
        %1339 = vmatprep.subr.bf16.mxu0 0
        %1340 = vmatpush2.bf16.msra.mxu0 0
        %1341 = vmatprep.mubr.bf16.mxu0 0
        %1342 = vmatmul.mubr.bf16.gmra.mxu0 %v1303
        %v1343 = vpop.f32.mrf.mxu0
        %v1344 = vadd.f32 0.0, %v1343
        %v1345 = vpop.f32.mrf.mxu0
        %v1346 = vadd.f32 0.0, %v1345
        %v1347 = vpop.f32.mrf.mxu0
        %v1348 = vpop.f32.mrf.mxu0
        %1349 = vdwg.mxu0
        %1350 = vmatprep.subr.bf16.mxu0 %v812
        %1351 = vmatpush1.bf16.msra.mxu0 %v811
        %1352 = vmatprep.subr.bf16.mxu0 %v808
        %1353 = vmatpush1.bf16.msra.mxu0 %v807
        %1354 = vmatprep.subr.bf16.mxu0 %v804
        %1355 = vmatpush1.bf16.msra.mxu0 %v803
        %1356 = vmatprep.subr.bf16.mxu0 %v800
        %1357 = vmatpush1.bf16.msra.mxu0 %v799
        %1358 = vmatprep.subr.bf16.mxu0 %v796
        %1359 = vmatpush1.bf16.msra.mxu0 %v795
        %1360 = vmatprep.subr.bf16.mxu0 %v792
        %1361 = vmatpush1.bf16.msra.mxu0 %v791
        %1362 = vmatprep.subr.bf16.mxu0 %v788
        %1363 = vmatpush1.bf16.msra.mxu0 %v787
        %1364 = vmatprep.subr.bf16.mxu0 %v784
        %1365 = vmatpush1.bf16.msra.mxu0 %v783
        %1366 = vmatprep.subr.bf16.mxu0 0
        %1367 = vmatpush2.bf16.msra.mxu0 0
        %1368 = vmatprep.subr.bf16.mxu0 0
        %1369 = vmatpush2.bf16.msra.mxu0 0
        %1370 = vmatprep.subr.bf16.mxu0 0
        %1371 = vmatpush2.bf16.msra.mxu0 0
        %1372 = vmatprep.subr.bf16.mxu0 0
        %1373 = vmatpush2.bf16.msra.mxu0 0
        %1374 = vmatprep.subr.bf16.mxu0 0
        %1375 = vmatpush2.bf16.msra.mxu0 0
        %1376 = vmatprep.subr.bf16.mxu0 0
        %1377 = vmatpush2.bf16.msra.mxu0 0
        %1378 = vmatprep.subr.bf16.mxu0 0
        %1379 = vmatpush2.bf16.msra.mxu0 0
        %1380 = vmatprep.subr.bf16.mxu0 0
        %1381 = vmatpush2.bf16.msra.mxu0 0
        %1382 = vmatprep.mubr.bf16.mxu0 0
        %1383 = vmatmul.mubr.bf16.gmra.mxu0 %v1303
        %v1384 = vpop.f32.mrf.mxu0
        %v1385 = vadd.f32 0.0, %v1384
        %v1386 = vpop.f32.mrf.mxu0
        %v1387 = vadd.f32 0.0, %v1386
        %v1388 = vpop.f32.mrf.mxu0
        %v1389 = vpop.f32.mrf.mxu0
        %1390 = vdwg.mxu0
        %v1391 = vadd.f32 %v1305, %v1344
        %v1392 = vadd.f32 %v1306, %v1346
        %v1393 = vadd.f32 %v1307, %v1385
        %v1394 = vadd.f32 %v1308, %v1387
        %v1395 = vxor.u32 %v1391, 2147483648
        %v1396 = vmul.f32 %v1395, 1.442695
        %v1397 = vpow.pop %v1396
        %v1398 = vadd.f32 %v1397, 1.0
        %v1399 = vrcp.pop %v1398
        %v1400 = vmul.f32 1.0, %v1399
        %v1401 = vxor.u32 %v1392, 2147483648
        %v1402 = vmul.f32 %v1401, 1.442695
        %v1403 = vpow.pop %v1402
        %v1404 = vadd.f32 %v1403, 1.0
        %v1405 = vrcp.pop %v1404
        %v1406 = vmul.f32 1.0, %v1405
        %v1407 = vtanh.pop %v1393
        %v1408 = vxor.u32 %v1394, 2147483648
        %v1409 = vmul.f32 %v1408, 1.442695
        %v1410 = vpow.pop %v1409
        %v1411 = vadd.f32 %v1410, 1.0
        %v1412 = vrcp.pop %v1411
        %v1413 = vmul.f32 1.0, %v1412
        %v1414 = vmul.f32 %v1406, %v1300
        %v1415 = vmul.f32 %v1400, %v1407
        %v1416 = vadd.f32 %v1414, %v1415
        %v1417 = vtanh.pop %v1416
        %v1418 = vmul.f32 %v1413, %v1417
        %v1419 = vpack.c.bf16 %v1418, %v1418
        %1420 = vst [vmem:[#allocation3 + $0x10] sm:$0xf] %v1419
        %v1421 = vld [vmem:[#allocation2 + $0xa0] sm:$0xff]
        %v1422 = vld [vmem:[#allocation2 + $0xa8] sm:$0xff]
        %v1423 = vld [vmem:[#allocation2 + $0xb0] sm:$0xff]
        %v1424 = vld [vmem:[#allocation2 + $0xb8] sm:$0xff]
        %1425 = vmatprep.subr.bf16.mxu0 %v810
        %1426 = vmatpush1.bf16.msra.mxu0 %v809
        %1427 = vmatprep.subr.bf16.mxu0 %v806
        %1428 = vmatpush1.bf16.msra.mxu0 %v805
        %1429 = vmatprep.subr.bf16.mxu0 %v802
        %1430 = vmatpush1.bf16.msra.mxu0 %v801
        %1431 = vmatprep.subr.bf16.mxu0 %v798
        %1432 = vmatpush1.bf16.msra.mxu0 %v797
        %1433 = vmatprep.subr.bf16.mxu0 %v794
        %1434 = vmatpush1.bf16.msra.mxu0 %v793
        %1435 = vmatprep.subr.bf16.mxu0 %v790
        %1436 = vmatpush1.bf16.msra.mxu0 %v789
        %1437 = vmatprep.subr.bf16.mxu0 %v786
        %1438 = vmatpush1.bf16.msra.mxu0 %v785
        %1439 = vmatprep.subr.bf16.mxu0 %v782
        %1440 = vmatpush1.bf16.msra.mxu0 %v781
        %1441 = vmatprep.subr.bf16.mxu0 0
        %1442 = vmatpush2.bf16.msra.mxu0 0
        %1443 = vmatprep.subr.bf16.mxu0 0
        %1444 = vmatpush2.bf16.msra.mxu0 0
        %1445 = vmatprep.subr.bf16.mxu0 0
        %1446 = vmatpush2.bf16.msra.mxu0 0
        %1447 = vmatprep.subr.bf16.mxu0 0
        %1448 = vmatpush2.bf16.msra.mxu0 0
        %1449 = vmatprep.subr.bf16.mxu0 0
        %1450 = vmatpush2.bf16.msra.mxu0 0
        %1451 = vmatprep.subr.bf16.mxu0 0
        %1452 = vmatpush2.bf16.msra.mxu0 0
        %1453 = vmatprep.subr.bf16.mxu0 0
        %1454 = vmatpush2.bf16.msra.mxu0 0
        %1455 = vmatprep.subr.bf16.mxu0 0
        %1456 = vmatpush2.bf16.msra.mxu0 0
        %1457 = vmatprep.mubr.bf16.mxu0 0
        %1458 = vmatmul.mubr.bf16.gmra.mxu0 %v1419
        %v1459 = vpop.f32.mrf.mxu0
        %v1460 = vadd.f32 0.0, %v1459
        %v1461 = vpop.f32.mrf.mxu0
        %v1462 = vadd.f32 0.0, %v1461
        %v1463 = vpop.f32.mrf.mxu0
        %v1464 = vpop.f32.mrf.mxu0
        %1465 = vdwg.mxu0
        %1466 = vmatprep.subr.bf16.mxu0 %v812
        %1467 = vmatpush1.bf16.msra.mxu0 %v811
        %1468 = vmatprep.subr.bf16.mxu0 %v808
        %1469 = vmatpush1.bf16.msra.mxu0 %v807
        %1470 = vmatprep.subr.bf16.mxu0 %v804
        %1471 = vmatpush1.bf16.msra.mxu0 %v803
        %1472 = vmatprep.subr.bf16.mxu0 %v800
        %1473 = vmatpush1.bf16.msra.mxu0 %v799
        %1474 = vmatprep.subr.bf16.mxu0 %v796
        %1475 = vmatpush1.bf16.msra.mxu0 %v795
        %1476 = vmatprep.subr.bf16.mxu0 %v792
        %1477 = vmatpush1.bf16.msra.mxu0 %v791
        %1478 = vmatprep.subr.bf16.mxu0 %v788
        %1479 = vmatpush1.bf16.msra.mxu0 %v787
        %1480 = vmatprep.subr.bf16.mxu0 %v784
        %1481 = vmatpush1.bf16.msra.mxu0 %v783
        %1482 = vmatprep.subr.bf16.mxu0 0
        %1483 = vmatpush2.bf16.msra.mxu0 0
        %1484 = vmatprep.subr.bf16.mxu0 0
        %1485 = vmatpush2.bf16.msra.mxu0 0
        %1486 = vmatprep.subr.bf16.mxu0 0
        %1487 = vmatpush2.bf16.msra.mxu0 0
        %1488 = vmatprep.subr.bf16.mxu0 0
        %1489 = vmatpush2.bf16.msra.mxu0 0
        %1490 = vmatprep.subr.bf16.mxu0 0
        %1491 = vmatpush2.bf16.msra.mxu0 0
        %1492 = vmatprep.subr.bf16.mxu0 0
        %1493 = vmatpush2.bf16.msra.mxu0 0
        %1494 = vmatprep.subr.bf16.mxu0 0
        %1495 = vmatpush2.bf16.msra.mxu0 0
        %1496 = vmatprep.subr.bf16.mxu0 0
        %1497 = vmatpush2.bf16.msra.mxu0 0
        %1498 = vmatprep.mubr.bf16.mxu0 0
        %1499 = vmatmul.mubr.bf16.gmra.mxu0 %v1419
        %v1500 = vpop.f32.mrf.mxu0
        %v1501 = vadd.f32 0.0, %v1500
        %v1502 = vpop.f32.mrf.mxu0
        %v1503 = vadd.f32 0.0, %v1502
        %v1504 = vpop.f32.mrf.mxu0
        %v1505 = vpop.f32.mrf.mxu0
        %1506 = vdwg.mxu0
        %v1507 = vadd.f32 %v1421, %v1460
        %v1508 = vadd.f32 %v1422, %v1462
        %v1509 = vadd.f32 %v1423, %v1501
        %v1510 = vadd.f32 %v1424, %v1503
        %v1511 = vxor.u32 %v1507, 2147483648
        %v1512 = vmul.f32 %v1511, 1.442695
        %v1513 = vpow.pop %v1512
        %v1514 = vadd.f32 %v1513, 1.0
        %v1515 = vrcp.pop %v1514
        %v1516 = vmul.f32 1.0, %v1515
        %v1517 = vxor.u32 %v1508, 2147483648
        %v1518 = vmul.f32 %v1517, 1.442695
        %v1519 = vpow.pop %v1518
        %v1520 = vadd.f32 %v1519, 1.0
        %v1521 = vrcp.pop %v1520
        %v1522 = vmul.f32 1.0, %v1521
        %v1523 = vtanh.pop %v1509
        %v1524 = vxor.u32 %v1510, 2147483648
        %v1525 = vmul.f32 %v1524, 1.442695
        %v1526 = vpow.pop %v1525
        %v1527 = vadd.f32 %v1526, 1.0
        %v1528 = vrcp.pop %v1527
        %v1529 = vmul.f32 1.0, %v1528
        %v1530 = vmul.f32 %v1522, %v1416
        %v1531 = vmul.f32 %v1516, %v1523
        %v1532 = vadd.f32 %v1530, %v1531
        %v1533 = vtanh.pop %v1532
        %v1534 = vmul.f32 %v1529, %v1533
        %v1535 = vpack.c.bf16 %v1534, %v1534
        %1536 = vst [vmem:[#allocation3 + $0x14] sm:$0xf] %v1535
        %v1537 = vld [vmem:[#allocation2 + $0xc0] sm:$0xff]
        %v1538 = vld [vmem:[#allocation2 + $0xc8] sm:$0xff]
        %v1539 = vld [vmem:[#allocation2 + $0xd0] sm:$0xff]
        %v1540 = vld [vmem:[#allocation2 + $0xd8] sm:$0xff]
        %1541 = vmatprep.subr.bf16.mxu0 %v810
        %1542 = vmatpush1.bf16.msra.mxu0 %v809
        %1543 = vmatprep.subr.bf16.mxu0 %v806
        %1544 = vmatpush1.bf16.msra.mxu0 %v805
        %1545 = vmatprep.subr.bf16.mxu0 %v802
        %1546 = vmatpush1.bf16.msra.mxu0 %v801
        %1547 = vmatprep.subr.bf16.mxu0 %v798
        %1548 = vmatpush1.bf16.msra.mxu0 %v797
        %1549 = vmatprep.subr.bf16.mxu0 %v794
        %1550 = vmatpush1.bf16.msra.mxu0 %v793
        %1551 = vmatprep.subr.bf16.mxu0 %v790
        %1552 = vmatpush1.bf16.msra.mxu0 %v789
        %1553 = vmatprep.subr.bf16.mxu0 %v786
        %1554 = vmatpush1.bf16.msra.mxu0 %v785
        %1555 = vmatprep.subr.bf16.mxu0 %v782
        %1556 = vmatpush1.bf16.msra.mxu0 %v781
        %1557 = vmatprep.subr.bf16.mxu0 0
        %1558 = vmatpush2.bf16.msra.mxu0 0
        %1559 = vmatprep.subr.bf16.mxu0 0
        %1560 = vmatpush2.bf16.msra.mxu0 0
        %1561 = vmatprep.subr.bf16.mxu0 0
        %1562 = vmatpush2.bf16.msra.mxu0 0
        %1563 = vmatprep.subr.bf16.mxu0 0
        %1564 = vmatpush2.bf16.msra.mxu0 0
        %1565 = vmatprep.subr.bf16.mxu0 0
        %1566 = vmatpush2.bf16.msra.mxu0 0
        %1567 = vmatprep.subr.bf16.mxu0 0
        %1568 = vmatpush2.bf16.msra.mxu0 0
        %1569 = vmatprep.subr.bf16.mxu0 0
        %1570 = vmatpush2.bf16.msra.mxu0 0
        %1571 = vmatprep.subr.bf16.mxu0 0
        %1572 = vmatpush2.bf16.msra.mxu0 0
        %1573 = vmatprep.mubr.bf16.mxu0 0
        %1574 = vmatmul.mubr.bf16.gmra.mxu0 %v1535
        %v1575 = vpop.f32.mrf.mxu0
        %v1576 = vadd.f32 0.0, %v1575
        %v1577 = vpop.f32.mrf.mxu0
        %v1578 = vadd.f32 0.0, %v1577
        %v1579 = vpop.f32.mrf.mxu0
        %v1580 = vpop.f32.mrf.mxu0
        %1581 = vdwg.mxu0
        %1582 = vmatprep.subr.bf16.mxu0 %v812
        %1583 = vmatpush1.bf16.msra.mxu0 %v811
        %1584 = vmatprep.subr.bf16.mxu0 %v808
        %1585 = vmatpush1.bf16.msra.mxu0 %v807
        %1586 = vmatprep.subr.bf16.mxu0 %v804
        %1587 = vmatpush1.bf16.msra.mxu0 %v803
        %1588 = vmatprep.subr.bf16.mxu0 %v800
        %1589 = vmatpush1.bf16.msra.mxu0 %v799
        %1590 = vmatprep.subr.bf16.mxu0 %v796
        %1591 = vmatpush1.bf16.msra.mxu0 %v795
        %1592 = vmatprep.subr.bf16.mxu0 %v792
        %1593 = vmatpush1.bf16.msra.mxu0 %v791
        %1594 = vmatprep.subr.bf16.mxu0 %v788
        %1595 = vmatpush1.bf16.msra.mxu0 %v787
        %1596 = vmatprep.subr.bf16.mxu0 %v784
        %1597 = vmatpush1.bf16.msra.mxu0 %v783
        %1598 = vmatprep.subr.bf16.mxu0 0
        %1599 = vmatpush2.bf16.msra.mxu0 0
        %1600 = vmatprep.subr.bf16.mxu0 0
        %1601 = vmatpush2.bf16.msra.mxu0 0
        %1602 = vmatprep.subr.bf16.mxu0 0
        %1603 = vmatpush2.bf16.msra.mxu0 0
        %1604 = vmatprep.subr.bf16.mxu0 0
        %1605 = vmatpush2.bf16.msra.mxu0 0
        %1606 = vmatprep.subr.bf16.mxu0 0
        %1607 = vmatpush2.bf16.msra.mxu0 0
        %1608 = vmatprep.subr.bf16.mxu0 0
        %1609 = vmatpush2.bf16.msra.mxu0 0
        %1610 = vmatprep.subr.bf16.mxu0 0
        %1611 = vmatpush2.bf16.msra.mxu0 0
        %1612 = vmatprep.subr.bf16.mxu0 0
        %1613 = vmatpush2.bf16.msra.mxu0 0
        %1614 = vmatprep.mubr.bf16.mxu0 0
        %1615 = vmatmul.mubr.bf16.gmra.mxu0 %v1535
        %v1616 = vpop.f32.mrf.mxu0
        %v1617 = vadd.f32 0.0, %v1616
        %v1618 = vpop.f32.mrf.mxu0
        %v1619 = vadd.f32 0.0, %v1618
        %v1620 = vpop.f32.mrf.mxu0
        %v1621 = vpop.f32.mrf.mxu0
        %1622 = vdwg.mxu0
        %v1623 = vadd.f32 %v1537, %v1576
        %v1624 = vadd.f32 %v1538, %v1578
        %v1625 = vadd.f32 %v1539, %v1617
        %v1626 = vadd.f32 %v1540, %v1619
        %v1627 = vxor.u32 %v1623, 2147483648
        %v1628 = vmul.f32 %v1627, 1.442695
        %v1629 = vpow.pop %v1628
        %v1630 = vadd.f32 %v1629, 1.0
        %v1631 = vrcp.pop %v1630
        %v1632 = vmul.f32 1.0, %v1631
        %v1633 = vxor.u32 %v1624, 2147483648
        %v1634 = vmul.f32 %v1633, 1.442695
        %v1635 = vpow.pop %v1634
        %v1636 = vadd.f32 %v1635, 1.0
        %v1637 = vrcp.pop %v1636
        %v1638 = vmul.f32 1.0, %v1637
        %v1639 = vtanh.pop %v1625
        %v1640 = vxor.u32 %v1626, 2147483648
        %v1641 = vmul.f32 %v1640, 1.442695
        %v1642 = vpow.pop %v1641
        %v1643 = vadd.f32 %v1642, 1.0
        %v1644 = vrcp.pop %v1643
        %v1645 = vmul.f32 1.0, %v1644
        %v1646 = vmul.f32 %v1638, %v1532
        %v1647 = vmul.f32 %v1632, %v1639
        %v1648 = vadd.f32 %v1646, %v1647
        %v1649 = vtanh.pop %v1648
        %v1650 = vmul.f32 %v1645, %v1649
        %v1651 = vpack.c.bf16 %v1650, %v1650
        %1652 = vst [vmem:[#allocation3 + $0x18] sm:$0xf] %v1651
        %v1653 = vld [vmem:[#allocation2 + $0xe0] sm:$0xff]
        %v1654 = vld [vmem:[#allocation2 + $0xe8] sm:$0xff]
        %v1655 = vld [vmem:[#allocation2 + $0xf0] sm:$0xff]
        %v1656 = vld [vmem:[#allocation2 + $0xf8] sm:$0xff]
        %1657 = vmatprep.subr.bf16.mxu0 %v810
        %1658 = vmatpush1.bf16.msra.mxu0 %v809
        %1659 = vmatprep.subr.bf16.mxu0 %v806
        %1660 = vmatpush1.bf16.msra.mxu0 %v805
        %1661 = vmatprep.subr.bf16.mxu0 %v802
        %1662 = vmatpush1.bf16.msra.mxu0 %v801
        %1663 = vmatprep.subr.bf16.mxu0 %v798
        %1664 = vmatpush1.bf16.msra.mxu0 %v797
        %1665 = vmatprep.subr.bf16.mxu0 %v794
        %1666 = vmatpush1.bf16.msra.mxu0 %v793
        %1667 = vmatprep.subr.bf16.mxu0 %v790
        %1668 = vmatpush1.bf16.msra.mxu0 %v789
        %1669 = vmatprep.subr.bf16.mxu0 %v786
        %1670 = vmatpush1.bf16.msra.mxu0 %v785
        %1671 = vmatprep.subr.bf16.mxu0 %v782
        %1672 = vmatpush1.bf16.msra.mxu0 %v781
        %1673 = vmatprep.subr.bf16.mxu0 0
        %1674 = vmatpush2.bf16.msra.mxu0 0
        %1675 = vmatprep.subr.bf16.mxu0 0
        %1676 = vmatpush2.bf16.msra.mxu0 0
        %1677 = vmatprep.subr.bf16.mxu0 0
        %1678 = vmatpush2.bf16.msra.mxu0 0
        %1679 = vmatprep.subr.bf16.mxu0 0
        %1680 = vmatpush2.bf16.msra.mxu0 0
        %1681 = vmatprep.subr.bf16.mxu0 0
        %1682 = vmatpush2.bf16.msra.mxu0 0
        %1683 = vmatprep.subr.bf16.mxu0 0
        %1684 = vmatpush2.bf16.msra.mxu0 0
        %1685 = vmatprep.subr.bf16.mxu0 0
        %1686 = vmatpush2.bf16.msra.mxu0 0
        %1687 = vmatprep.subr.bf16.mxu0 0
        %1688 = vmatpush2.bf16.msra.mxu0 0
        %1689 = vmatprep.mubr.bf16.mxu0 0
        %1690 = vmatmul.mubr.bf16.gmra.mxu0 %v1651
        %v1691 = vpop.f32.mrf.mxu0
        %v1692 = vadd.f32 0.0, %v1691
        %v1693 = vpop.f32.mrf.mxu0
        %v1694 = vadd.f32 0.0, %v1693
        %v1695 = vpop.f32.mrf.mxu0
        %v1696 = vpop.f32.mrf.mxu0
        %1697 = vdwg.mxu0
        %1698 = vmatprep.subr.bf16.mxu0 %v812
        %1699 = vmatpush1.bf16.msra.mxu0 %v811
        %1700 = vmatprep.subr.bf16.mxu0 %v808
        %1701 = vmatpush1.bf16.msra.mxu0 %v807
        %1702 = vmatprep.subr.bf16.mxu0 %v804
        %1703 = vmatpush1.bf16.msra.mxu0 %v803
        %1704 = vmatprep.subr.bf16.mxu0 %v800
        %1705 = vmatpush1.bf16.msra.mxu0 %v799
        %1706 = vmatprep.subr.bf16.mxu0 %v796
        %1707 = vmatpush1.bf16.msra.mxu0 %v795
        %1708 = vmatprep.subr.bf16.mxu0 %v792
        %1709 = vmatpush1.bf16.msra.mxu0 %v791
        %1710 = vmatprep.subr.bf16.mxu0 %v788
        %1711 = vmatpush1.bf16.msra.mxu0 %v787
        %1712 = vmatprep.subr.bf16.mxu0 %v784
        %1713 = vmatpush1.bf16.msra.mxu0 %v783
        %1714 = vmatprep.subr.bf16.mxu0 0
        %1715 = vmatpush2.bf16.msra.mxu0 0
        %1716 = vmatprep.subr.bf16.mxu0 0
        %1717 = vmatpush2.bf16.msra.mxu0 0
        %1718 = vmatprep.subr.bf16.mxu0 0
        %1719 = vmatpush2.bf16.msra.mxu0 0
        %1720 = vmatprep.subr.bf16.mxu0 0
        %1721 = vmatpush2.bf16.msra.mxu0 0
        %1722 = vmatprep.subr.bf16.mxu0 0
        %1723 = vmatpush2.bf16.msra.mxu0 0
        %1724 = vmatprep.subr.bf16.mxu0 0
        %1725 = vmatpush2.bf16.msra.mxu0 0
        %1726 = vmatprep.subr.bf16.mxu0 0
        %1727 = vmatpush2.bf16.msra.mxu0 0
        %1728 = vmatprep.subr.bf16.mxu0 0
        %1729 = vmatpush2.bf16.msra.mxu0 0
        %1730 = vmatprep.mubr.bf16.mxu0 0
        %1731 = vmatmul.mubr.bf16.gmra.mxu0 %v1651
        %v1732 = vpop.f32.mrf.mxu0
        %v1733 = vadd.f32 0.0, %v1732
        %v1734 = vpop.f32.mrf.mxu0
        %v1735 = vadd.f32 0.0, %v1734
        %v1736 = vpop.f32.mrf.mxu0
        %v1737 = vpop.f32.mrf.mxu0
        %1738 = vdwg.mxu0
        %v1739 = vadd.f32 %v1653, %v1692
        %v1740 = vadd.f32 %v1654, %v1694
        %v1741 = vadd.f32 %v1655, %v1733
        %v1742 = vadd.f32 %v1656, %v1735
        %v1743 = vxor.u32 %v1739, 2147483648
        %v1744 = vmul.f32 %v1743, 1.442695
        %v1745 = vpow.pop %v1744
        %v1746 = vadd.f32 %v1745, 1.0
        %v1747 = vrcp.pop %v1746
        %v1748 = vmul.f32 1.0, %v1747
        %v1749 = vxor.u32 %v1740, 2147483648
        %v1750 = vmul.f32 %v1749, 1.442695
        %v1751 = vpow.pop %v1750
        %v1752 = vadd.f32 %v1751, 1.0
        %v1753 = vrcp.pop %v1752
        %v1754 = vmul.f32 1.0, %v1753
        %v1755 = vtanh.pop %v1741
        %v1756 = vxor.u32 %v1742, 2147483648
        %v1757 = vmul.f32 %v1756, 1.442695
        %v1758 = vpow.pop %v1757
        %v1759 = vadd.f32 %v1758, 1.0
        %v1760 = vrcp.pop %v1759
        %v1761 = vmul.f32 1.0, %v1760
        %v1762 = vmul.f32 %v1754, %v1648
        %v1763 = vmul.f32 %v1748, %v1755
        %v1764 = vadd.f32 %v1762, %v1763
        %v1765 = vtanh.pop %v1764
        %v1766 = vmul.f32 %v1761, %v1765
        %v1767 = vpack.c.bf16 %v1766, %v1766
        %1768 = vst [vmem:[#allocation3 + $0x1c] sm:$0xf] %v1767
        %1769 = vst [vmem:[%s346] sm:$0xff] %v1766
        %1770 = vst [vmem:[%s353] sm:$0xff] %v1764
        %v1771 = vld [vmem:[#allocation3] sm:$0xf]
        %v1772 = vld [vmem:[#allocation3 + $0x4] sm:$0xf]
        %v1773 = vld [vmem:[#allocation3 + $0x8] sm:$0xf]
        %v1774 = vld [vmem:[#allocation3 + $0xc] sm:$0xf]
        %v1775 = vld [vmem:[#allocation3 + $0x10] sm:$0xf]
        %v1776 = vld [vmem:[#allocation3 + $0x14] sm:$0xf]
        %v1777 = vld [vmem:[#allocation3 + $0x18] sm:$0xf]
        %v1778 = vld [vmem:[#allocation3 + $0x1c] sm:$0xf]
        %v1779 = vld [vmem:[#allocation7] sm:$0xff]
        %v1780 = vld [vmem:[#allocation7 + $0x8] sm:$0xff]
        %v1781 = vld [vmem:[#allocation7 + $0x10] sm:$0xff]
        %v1782 = vld [vmem:[#allocation7 + $0x18] sm:$0xff]
        %v1783 = vld [vmem:[#allocation7 + $0x20] sm:$0xff]
        %v1784 = vld [vmem:[#allocation7 + $0x28] sm:$0xff]
        %v1785 = vld [vmem:[#allocation7 + $0x30] sm:$0xff]
        %v1786 = vld [vmem:[#allocation7 + $0x38] sm:$0xff]
        %v1787 = vld [vmem:[#allocation7 + $0x40] sm:$0xff]
        %v1788 = vld [vmem:[#allocation7 + $0x48] sm:$0xff]
        %v1789 = vld [vmem:[#allocation7 + $0x50] sm:$0xff]
        %v1790 = vld [vmem:[#allocation7 + $0x58] sm:$0xff]
        %v1791 = vld [vmem:[#allocation7 + $0x60] sm:$0xff]
        %v1792 = vld [vmem:[#allocation7 + $0x68] sm:$0xff]
        %v1793 = vld [vmem:[#allocation7 + $0x70] sm:$0xff]
        %v1794 = vld [vmem:[#allocation7 + $0x78] sm:$0xff]
        %v1795 = vld [vmem:[#allocation7 + $0x80] sm:$0xff]
        %v1796 = vld [vmem:[#allocation7 + $0x88] sm:$0xff]
        %v1797 = vld [vmem:[#allocation7 + $0x90] sm:$0xff]
        %v1798 = vld [vmem:[#allocation7 + $0x98] sm:$0xff]
        %v1799 = vld [vmem:[#allocation7 + $0xa0] sm:$0xff]
        %v1800 = vld [vmem:[#allocation7 + $0xa8] sm:$0xff]
        %v1801 = vld [vmem:[#allocation7 + $0xb0] sm:$0xff]
        %v1802 = vld [vmem:[#allocation7 + $0xb8] sm:$0xff]
        %v1803 = vld [vmem:[#allocation7 + $0xc0] sm:$0xff]
        %v1804 = vld [vmem:[#allocation7 + $0xc8] sm:$0xff]
        %v1805 = vld [vmem:[#allocation7 + $0xd0] sm:$0xff]
        %v1806 = vld [vmem:[#allocation7 + $0xd8] sm:$0xff]
        %v1807 = vld [vmem:[#allocation7 + $0xe0] sm:$0xff]
        %v1808 = vld [vmem:[#allocation7 + $0xe8] sm:$0xff]
        %v1809 = vld [vmem:[#allocation7 + $0xf0] sm:$0xff]
        %v1810 = vld [vmem:[#allocation7 + $0xf8] sm:$0xff]
        %v1811 = vld [vmem:[%s6] sm:$0xf]
        %v1813 = vlaneseq
        %v1814 = vshrl.u32 %v1813, 7
        %v1815 = vsub.s32 0, %v1814
        %v1816 = vrot.slane %v1811, %v1815
        %v1817 = vlaneseq
        %v1818 = vshrl.u32 %v1817, 7
        %v1819 = vsub.s32 1, %v1818
        %v1820 = vrot.slane %v1811, %v1819
        %v1821 = vlaneseq
        %v1822 = vshrl.u32 %v1821, 7
        %v1823 = vsub.s32 2, %v1822
        %v1824 = vrot.slane %v1811, %v1823
        %v1825 = vlaneseq
        %v1826 = vshrl.u32 %v1825, 7
        %v1827 = vsub.s32 3, %v1826
        %v1828 = vrot.slane %v1811, %v1827
        %v1841 = vunpack.c.l.b16 %v1771
        %v1842 = vunpack.c.l.b16 %v1772
        %v1843 = vunpack.c.l.b16 %v1773
        %v1844 = vunpack.c.l.b16 %v1774
        %v1845 = vunpack.c.l.b16 %v1775
        %v1846 = vunpack.c.l.b16 %v1776
        %v1847 = vunpack.c.l.b16 %v1777
        %v1848 = vunpack.c.l.b16 %v1778
        %v1849 = vpack.c.b16 %v1842, %v1841
        %v1850 = vpack.c.b16 %v1844, %v1843
        %v1851 = vpack.c.b16 %v1846, %v1845
        %v1852 = vpack.c.b16 %v1848, %v1847
        %v1889 = vunpack.c.l.b16 %v1779
        %v1890 = vunpack.c.h.b16 %v1779
        %v1891 = vunpack.c.l.b16 %v1780
        %v1892 = vunpack.c.h.b16 %v1780
        %v1893 = vunpack.c.l.b16 %v1781
        %v1894 = vunpack.c.h.b16 %v1781
        %v1895 = vunpack.c.l.b16 %v1782
        %v1896 = vunpack.c.h.b16 %v1782
        %v1897 = vunpack.c.l.b16 %v1783
        %v1898 = vunpack.c.h.b16 %v1783
        %v1899 = vunpack.c.l.b16 %v1784
        %v1900 = vunpack.c.h.b16 %v1784
        %v1901 = vunpack.c.l.b16 %v1785
        %v1902 = vunpack.c.h.b16 %v1785
        %v1903 = vunpack.c.l.b16 %v1786
        %v1904 = vunpack.c.h.b16 %v1786
        %v1905 = vunpack.c.l.b16 %v1787
        %v1906 = vunpack.c.h.b16 %v1787
        %v1907 = vunpack.c.l.b16 %v1788
        %v1908 = vunpack.c.h.b16 %v1788
        %v1909 = vunpack.c.l.b16 %v1789
        %v1910 = vunpack.c.h.b16 %v1789
        %v1911 = vunpack.c.l.b16 %v1790
        %v1912 = vunpack.c.h.b16 %v1790
        %v1913 = vunpack.c.l.b16 %v1791
        %v1914 = vunpack.c.h.b16 %v1791
        %v1915 = vunpack.c.l.b16 %v1792
        %v1916 = vunpack.c.h.b16 %v1792
        %v1917 = vunpack.c.l.b16 %v1793
        %v1918 = vunpack.c.h.b16 %v1793
        %v1919 = vunpack.c.l.b16 %v1794
        %v1920 = vunpack.c.h.b16 %v1794
        %v1921 = vunpack.c.l.b16 %v1795
        %v1922 = vunpack.c.h.b16 %v1795
        %v1923 = vunpack.c.l.b16 %v1796
        %v1924 = vunpack.c.h.b16 %v1796
        %v1925 = vunpack.c.l.b16 %v1797
        %v1926 = vunpack.c.h.b16 %v1797
        %v1927 = vunpack.c.l.b16 %v1798
        %v1928 = vunpack.c.h.b16 %v1798
        %v1929 = vunpack.c.l.b16 %v1799
        %v1930 = vunpack.c.h.b16 %v1799
        %v1931 = vunpack.c.l.b16 %v1800
        %v1932 = vunpack.c.h.b16 %v1800
        %v1933 = vunpack.c.l.b16 %v1801
        %v1934 = vunpack.c.h.b16 %v1801
        %v1935 = vunpack.c.l.b16 %v1802
        %v1936 = vunpack.c.h.b16 %v1802
        %v1937 = vunpack.c.l.b16 %v1803
        %v1938 = vunpack.c.h.b16 %v1803
        %v1939 = vunpack.c.l.b16 %v1804
        %v1940 = vunpack.c.h.b16 %v1804
        %v1941 = vunpack.c.l.b16 %v1805
        %v1942 = vunpack.c.h.b16 %v1805
        %v1943 = vunpack.c.l.b16 %v1806
        %v1944 = vunpack.c.h.b16 %v1806
        %v1945 = vunpack.c.l.b16 %v1807
        %v1946 = vunpack.c.h.b16 %v1807
        %v1947 = vunpack.c.l.b16 %v1808
        %v1948 = vunpack.c.h.b16 %v1808
        %v1949 = vunpack.c.l.b16 %v1809
        %v1950 = vunpack.c.h.b16 %v1809
        %v1951 = vunpack.c.l.b16 %v1810
        %v1952 = vunpack.c.h.b16 %v1810
        %v1953 = vpack.c.b16 %v1893, %v1889
        %v1954 = vpack.c.b16 %v1894, %v1890
        %v1955 = vpack.c.b16 %v1895, %v1891
        %v1956 = vpack.c.b16 %v1896, %v1892
        %v1957 = vpack.c.b16 %v1901, %v1897
        %v1958 = vpack.c.b16 %v1902, %v1898
        %v1959 = vpack.c.b16 %v1903, %v1899
        %v1960 = vpack.c.b16 %v1904, %v1900
        %v1961 = vpack.c.b16 %v1909, %v1905
        %v1962 = vpack.c.b16 %v1910, %v1906
        %v1963 = vpack.c.b16 %v1911, %v1907
        %v1964 = vpack.c.b16 %v1912, %v1908
        %v1965 = vpack.c.b16 %v1917, %v1913
        %v1966 = vpack.c.b16 %v1918, %v1914
        %v1967 = vpack.c.b16 %v1919, %v1915
        %v1968 = vpack.c.b16 %v1920, %v1916
        %v1969 = vpack.c.b16 %v1925, %v1921
        %v1970 = vpack.c.b16 %v1926, %v1922
        %v1971 = vpack.c.b16 %v1927, %v1923
        %v1972 = vpack.c.b16 %v1928, %v1924
        %v1973 = vpack.c.b16 %v1933, %v1929
        %v1974 = vpack.c.b16 %v1934, %v1930
        %v1975 = vpack.c.b16 %v1935, %v1931
        %v1976 = vpack.c.b16 %v1936, %v1932
        %v1977 = vpack.c.b16 %v1941, %v1937
        %v1978 = vpack.c.b16 %v1942, %v1938
        %v1979 = vpack.c.b16 %v1943, %v1939
        %v1980 = vpack.c.b16 %v1944, %v1940
        %v1981 = vpack.c.b16 %v1949, %v1945
        %v1982 = vpack.c.b16 %v1950, %v1946
        %v1983 = vpack.c.b16 %v1951, %v1947
        %v1984 = vpack.c.b16 %v1952, %v1948
        %2017 = vmatprep.subr.bf16.mxu0 %v1982
        %2018 = vmatpush1.bf16.msra.mxu0 %v1981
        %2019 = vmatprep.subr.bf16.mxu0 %v1978
        %2020 = vmatpush1.bf16.msra.mxu0 %v1977
        %2021 = vmatprep.subr.bf16.mxu0 %v1974
        %2022 = vmatpush1.bf16.msra.mxu0 %v1973
        %2023 = vmatprep.subr.bf16.mxu0 %v1970
        %2024 = vmatpush1.bf16.msra.mxu0 %v1969
        %2025 = vmatprep.subr.bf16.mxu0 %v1966
        %2026 = vmatpush1.bf16.msra.mxu0 %v1965
        %2027 = vmatprep.subr.bf16.mxu0 %v1962
        %2028 = vmatpush1.bf16.msra.mxu0 %v1961
        %2029 = vmatprep.subr.bf16.mxu0 %v1958
        %2030 = vmatpush1.bf16.msra.mxu0 %v1957
        %2031 = vmatprep.subr.bf16.mxu0 %v1954
        %2032 = vmatpush1.bf16.msra.mxu0 %v1953
        %2033 = vmatprep.subr.bf16.mxu0 0
        %2034 = vmatpush2.bf16.msra.mxu0 0
        %2035 = vmatprep.subr.bf16.mxu0 0
        %2036 = vmatpush2.bf16.msra.mxu0 0
        %2037 = vmatprep.subr.bf16.mxu0 0
        %2038 = vmatpush2.bf16.msra.mxu0 0
        %2039 = vmatprep.subr.bf16.mxu0 0
        %2040 = vmatpush2.bf16.msra.mxu0 0
        %2041 = vmatprep.subr.bf16.mxu0 0
        %2042 = vmatpush2.bf16.msra.mxu0 0
        %2043 = vmatprep.subr.bf16.mxu0 0
        %2044 = vmatpush2.bf16.msra.mxu0 0
        %2045 = vmatprep.subr.bf16.mxu0 0
        %2046 = vmatpush2.bf16.msra.mxu0 0
        %2047 = vmatprep.subr.bf16.mxu0 0
        %2048 = vmatpush2.bf16.msra.mxu0 0
        %2049 = vmatprep.mubr.bf16.mxu0 0
        %2050 = vmatmul.mubr.bf16.gmra.mxu0 %v1849
        %v2051 = vpop.f32.mrf.mxu0
        %v2052 = vadd.f32 %v1816, %v2051
        %v2053 = vpop.f32.mrf.mxu0
        %v2054 = vadd.f32 %v1820, %v2053
        %v2055 = vpop.f32.mrf.mxu0
        %v2056 = vadd.f32 %v1816, %v2055
        %v2057 = vpop.f32.mrf.mxu0
        %v2058 = vadd.f32 %v1820, %v2057
        %2059 = vmatprep.mubr.bf16.mxu0 0
        %2060 = vmatmul.mubr.bf16.gmra.mxu0 %v1850
        %v2061 = vpop.f32.mrf.mxu0
        %v2062 = vadd.f32 %v1816, %v2061
        %v2063 = vpop.f32.mrf.mxu0
        %v2064 = vadd.f32 %v1820, %v2063
        %v2065 = vpop.f32.mrf.mxu0
        %v2066 = vadd.f32 %v1816, %v2065
        %v2067 = vpop.f32.mrf.mxu0
        %v2068 = vadd.f32 %v1820, %v2067
        %2069 = vmatprep.mubr.bf16.mxu0 0
        %2070 = vmatmul.mubr.bf16.gmra.mxu0 %v1851
        %v2071 = vpop.f32.mrf.mxu0
        %v2072 = vadd.f32 %v1816, %v2071
        %v2073 = vpop.f32.mrf.mxu0
        %v2074 = vadd.f32 %v1820, %v2073
        %v2075 = vpop.f32.mrf.mxu0
        %v2076 = vadd.f32 %v1816, %v2075
        %v2077 = vpop.f32.mrf.mxu0
        %v2078 = vadd.f32 %v1820, %v2077
        %2079 = vmatprep.mubr.bf16.mxu0 0
        %2080 = vmatmul.mubr.bf16.gmra.mxu0 %v1852
        %v2081 = vpop.f32.mrf.mxu0
        %v2082 = vadd.f32 %v1816, %v2081
        %v2083 = vpop.f32.mrf.mxu0
        %v2084 = vadd.f32 %v1820, %v2083
        %v2085 = vpop.f32.mrf.mxu0
        %v2086 = vadd.f32 %v1816, %v2085
        %v2087 = vpop.f32.mrf.mxu0
        %v2088 = vadd.f32 %v1820, %v2087
        %2089 = vdwg.mxu0
        %2090 = vmatprep.subr.bf16.mxu0 %v1984
        %2091 = vmatpush1.bf16.msra.mxu0 %v1983
        %2092 = vmatprep.subr.bf16.mxu0 %v1980
        %2093 = vmatpush1.bf16.msra.mxu0 %v1979
        %2094 = vmatprep.subr.bf16.mxu0 %v1976
        %2095 = vmatpush1.bf16.msra.mxu0 %v1975
        %2096 = vmatprep.subr.bf16.mxu0 %v1972
        %2097 = vmatpush1.bf16.msra.mxu0 %v1971
        %2098 = vmatprep.subr.bf16.mxu0 %v1968
        %2099 = vmatpush1.bf16.msra.mxu0 %v1967
        %2100 = vmatprep.subr.bf16.mxu0 %v1964
        %2101 = vmatpush1.bf16.msra.mxu0 %v1963
        %2102 = vmatprep.subr.bf16.mxu0 %v1960
        %2103 = vmatpush1.bf16.msra.mxu0 %v1959
        %2104 = vmatprep.subr.bf16.mxu0 %v1956
        %2105 = vmatpush1.bf16.msra.mxu0 %v1955
        %2106 = vmatprep.subr.bf16.mxu0 0
        %2107 = vmatpush2.bf16.msra.mxu0 0
        %2108 = vmatprep.subr.bf16.mxu0 0
        %2109 = vmatpush2.bf16.msra.mxu0 0
        %2110 = vmatprep.subr.bf16.mxu0 0
        %2111 = vmatpush2.bf16.msra.mxu0 0
        %2112 = vmatprep.subr.bf16.mxu0 0
        %2113 = vmatpush2.bf16.msra.mxu0 0
        %2114 = vmatprep.subr.bf16.mxu0 0
        %2115 = vmatpush2.bf16.msra.mxu0 0
        %2116 = vmatprep.subr.bf16.mxu0 0
        %2117 = vmatpush2.bf16.msra.mxu0 0
        %2118 = vmatprep.subr.bf16.mxu0 0
        %2119 = vmatpush2.bf16.msra.mxu0 0
        %2120 = vmatprep.subr.bf16.mxu0 0
        %2121 = vmatpush2.bf16.msra.mxu0 0
        %2122 = vmatprep.mubr.bf16.mxu0 0
        %2123 = vmatmul.mubr.bf16.gmra.mxu0 %v1849
        %v2124 = vpop.f32.mrf.mxu0
        %v2125 = vadd.f32 %v1824, %v2124
        %v2126 = vpop.f32.mrf.mxu0
        %v2127 = vadd.f32 %v1828, %v2126
        %v2128 = vpop.f32.mrf.mxu0
        %v2129 = vadd.f32 %v1824, %v2128
        %v2130 = vpop.f32.mrf.mxu0
        %v2131 = vadd.f32 %v1828, %v2130
        %2132 = vmatprep.mubr.bf16.mxu0 0
        %2133 = vmatmul.mubr.bf16.gmra.mxu0 %v1850
        %v2134 = vpop.f32.mrf.mxu0
        %v2135 = vadd.f32 %v1824, %v2134
        %v2136 = vpop.f32.mrf.mxu0
        %v2137 = vadd.f32 %v1828, %v2136
        %v2138 = vpop.f32.mrf.mxu0
        %v2139 = vadd.f32 %v1824, %v2138
        %v2140 = vpop.f32.mrf.mxu0
        %v2141 = vadd.f32 %v1828, %v2140
        %2142 = vmatprep.mubr.bf16.mxu0 0
        %2143 = vmatmul.mubr.bf16.gmra.mxu0 %v1851
        %v2144 = vpop.f32.mrf.mxu0
        %v2145 = vadd.f32 %v1824, %v2144
        %v2146 = vpop.f32.mrf.mxu0
        %v2147 = vadd.f32 %v1828, %v2146
        %v2148 = vpop.f32.mrf.mxu0
        %v2149 = vadd.f32 %v1824, %v2148
        %v2150 = vpop.f32.mrf.mxu0
        %v2151 = vadd.f32 %v1828, %v2150
        %2152 = vmatprep.mubr.bf16.mxu0 0
        %2153 = vmatmul.mubr.bf16.gmra.mxu0 %v1852
        %v2154 = vpop.f32.mrf.mxu0
        %v2155 = vadd.f32 %v1824, %v2154
        %v2156 = vpop.f32.mrf.mxu0
        %v2157 = vadd.f32 %v1828, %v2156
        %v2158 = vpop.f32.mrf.mxu0
        %v2159 = vadd.f32 %v1824, %v2158
        %v2160 = vpop.f32.mrf.mxu0
        %v2161 = vadd.f32 %v1828, %v2160
        %2162 = vdwg.mxu0
        %2163 = vst [vmem:[#allocation2] sm:$0xff] %v2052
        %2164 = vst [vmem:[#allocation2 + $0x8] sm:$0xff] %v2054
        %2165 = vst [vmem:[#allocation2 + $0x10] sm:$0xff] %v2125
        %2166 = vst [vmem:[#allocation2 + $0x18] sm:$0xff] %v2127
        %2167 = vst [vmem:[#allocation2 + $0x20] sm:$0xff] %v2056
        %2168 = vst [vmem:[#allocation2 + $0x28] sm:$0xff] %v2058
        %2169 = vst [vmem:[#allocation2 + $0x30] sm:$0xff] %v2129
        %2170 = vst [vmem:[#allocation2 + $0x38] sm:$0xff] %v2131
        %2171 = vst [vmem:[#allocation2 + $0x40] sm:$0xff] %v2062
        %2172 = vst [vmem:[#allocation2 + $0x48] sm:$0xff] %v2064
        %2173 = vst [vmem:[#allocation2 + $0x50] sm:$0xff] %v2135
        %2174 = vst [vmem:[#allocation2 + $0x58] sm:$0xff] %v2137
        %2175 = vst [vmem:[#allocation2 + $0x60] sm:$0xff] %v2066
        %2176 = vst [vmem:[#allocation2 + $0x68] sm:$0xff] %v2068
        %2177 = vst [vmem:[#allocation2 + $0x70] sm:$0xff] %v2139
        %2178 = vst [vmem:[#allocation2 + $0x78] sm:$0xff] %v2141
        %2179 = vst [vmem:[#allocation2 + $0x80] sm:$0xff] %v2072
        %2180 = vst [vmem:[#allocation2 + $0x88] sm:$0xff] %v2074
        %2181 = vst [vmem:[#allocation2 + $0x90] sm:$0xff] %v2145
        %2182 = vst [vmem:[#allocation2 + $0x98] sm:$0xff] %v2147
        %2183 = vst [vmem:[#allocation2 + $0xa0] sm:$0xff] %v2076
        %2184 = vst [vmem:[#allocation2 + $0xa8] sm:$0xff] %v2078
        %2185 = vst [vmem:[#allocation2 + $0xb0] sm:$0xff] %v2149
        %2186 = vst [vmem:[#allocation2 + $0xb8] sm:$0xff] %v2151
        %2187 = vst [vmem:[#allocation2 + $0xc0] sm:$0xff] %v2082
        %2188 = vst [vmem:[#allocation2 + $0xc8] sm:$0xff] %v2084
        %2189 = vst [vmem:[#allocation2 + $0xd0] sm:$0xff] %v2155
        %2190 = vst [vmem:[#allocation2 + $0xd8] sm:$0xff] %v2157
        %2191 = vst [vmem:[#allocation2 + $0xe0] sm:$0xff] %v2086
        %2192 = vst [vmem:[#allocation2 + $0xe8] sm:$0xff] %v2088
        %2193 = vst [vmem:[#allocation2 + $0xf0] sm:$0xff] %v2159
        %2194 = vst [vmem:[#allocation2 + $0xf8] sm:$0xff] %v2161
        %v2195 = vld [vmem:[#allocation9] sm:$0xff]
        %v2196 = vld [vmem:[#allocation9 + $0x8] sm:$0xff]
        %v2197 = vld [vmem:[#allocation9 + $0x10] sm:$0xff]
        %v2198 = vld [vmem:[#allocation9 + $0x18] sm:$0xff]
        %v2199 = vld [vmem:[#allocation9 + $0x20] sm:$0xff]
        %v2200 = vld [vmem:[#allocation9 + $0x28] sm:$0xff]
        %v2201 = vld [vmem:[#allocation9 + $0x30] sm:$0xff]
        %v2202 = vld [vmem:[#allocation9 + $0x38] sm:$0xff]
        %v2203 = vld [vmem:[#allocation9 + $0x40] sm:$0xff]
        %v2204 = vld [vmem:[#allocation9 + $0x48] sm:$0xff]
        %v2205 = vld [vmem:[#allocation9 + $0x50] sm:$0xff]
        %v2206 = vld [vmem:[#allocation9 + $0x58] sm:$0xff]
        %v2207 = vld [vmem:[#allocation9 + $0x60] sm:$0xff]
        %v2208 = vld [vmem:[#allocation9 + $0x68] sm:$0xff]
        %v2209 = vld [vmem:[#allocation9 + $0x70] sm:$0xff]
        %v2210 = vld [vmem:[#allocation9 + $0x78] sm:$0xff]
        %v2211 = vld [vmem:[#allocation9 + $0x80] sm:$0xff]
        %v2212 = vld [vmem:[#allocation9 + $0x88] sm:$0xff]
        %v2213 = vld [vmem:[#allocation9 + $0x90] sm:$0xff]
        %v2214 = vld [vmem:[#allocation9 + $0x98] sm:$0xff]
        %v2215 = vld [vmem:[#allocation9 + $0xa0] sm:$0xff]
        %v2216 = vld [vmem:[#allocation9 + $0xa8] sm:$0xff]
        %v2217 = vld [vmem:[#allocation9 + $0xb0] sm:$0xff]
        %v2218 = vld [vmem:[#allocation9 + $0xb8] sm:$0xff]
        %v2219 = vld [vmem:[#allocation9 + $0xc0] sm:$0xff]
        %v2220 = vld [vmem:[#allocation9 + $0xc8] sm:$0xff]
        %v2221 = vld [vmem:[#allocation9 + $0xd0] sm:$0xff]
        %v2222 = vld [vmem:[#allocation9 + $0xd8] sm:$0xff]
        %v2223 = vld [vmem:[#allocation9 + $0xe0] sm:$0xff]
        %v2224 = vld [vmem:[#allocation9 + $0xe8] sm:$0xff]
        %v2225 = vld [vmem:[#allocation9 + $0xf0] sm:$0xff]
        %v2226 = vld [vmem:[#allocation9 + $0xf8] sm:$0xff]
        %v2227 = vld [vmem:[#allocation2] sm:$0xff]
        %v2228 = vld [vmem:[#allocation2 + $0x8] sm:$0xff]
        %v2229 = vld [vmem:[#allocation2 + $0x10] sm:$0xff]
        %v2230 = vld [vmem:[#allocation2 + $0x18] sm:$0xff]
        %v2263 = vunpack.c.l.b16 %v2195
        %v2264 = vunpack.c.h.b16 %v2195
        %v2265 = vunpack.c.l.b16 %v2196
        %v2266 = vunpack.c.h.b16 %v2196
        %v2267 = vunpack.c.l.b16 %v2197
        %v2268 = vunpack.c.h.b16 %v2197
        %v2269 = vunpack.c.l.b16 %v2198
        %v2270 = vunpack.c.h.b16 %v2198
        %v2271 = vunpack.c.l.b16 %v2199
        %v2272 = vunpack.c.h.b16 %v2199
        %v2273 = vunpack.c.l.b16 %v2200
        %v2274 = vunpack.c.h.b16 %v2200
        %v2275 = vunpack.c.l.b16 %v2201
        %v2276 = vunpack.c.h.b16 %v2201
        %v2277 = vunpack.c.l.b16 %v2202
        %v2278 = vunpack.c.h.b16 %v2202
        %v2279 = vunpack.c.l.b16 %v2203
        %v2280 = vunpack.c.h.b16 %v2203
        %v2281 = vunpack.c.l.b16 %v2204
        %v2282 = vunpack.c.h.b16 %v2204
        %v2283 = vunpack.c.l.b16 %v2205
        %v2284 = vunpack.c.h.b16 %v2205
        %v2285 = vunpack.c.l.b16 %v2206
        %v2286 = vunpack.c.h.b16 %v2206
        %v2287 = vunpack.c.l.b16 %v2207
        %v2288 = vunpack.c.h.b16 %v2207
        %v2289 = vunpack.c.l.b16 %v2208
        %v2290 = vunpack.c.h.b16 %v2208
        %v2291 = vunpack.c.l.b16 %v2209
        %v2292 = vunpack.c.h.b16 %v2209
        %v2293 = vunpack.c.l.b16 %v2210
        %v2294 = vunpack.c.h.b16 %v2210
        %v2295 = vunpack.c.l.b16 %v2211
        %v2296 = vunpack.c.h.b16 %v2211
        %v2297 = vunpack.c.l.b16 %v2212
        %v2298 = vunpack.c.h.b16 %v2212
        %v2299 = vunpack.c.l.b16 %v2213
        %v2300 = vunpack.c.h.b16 %v2213
        %v2301 = vunpack.c.l.b16 %v2214
        %v2302 = vunpack.c.h.b16 %v2214
        %v2303 = vunpack.c.l.b16 %v2215
        %v2304 = vunpack.c.h.b16 %v2215
        %v2305 = vunpack.c.l.b16 %v2216
        %v2306 = vunpack.c.h.b16 %v2216
        %v2307 = vunpack.c.l.b16 %v2217
        %v2308 = vunpack.c.h.b16 %v2217
        %v2309 = vunpack.c.l.b16 %v2218
        %v2310 = vunpack.c.h.b16 %v2218
        %v2311 = vunpack.c.l.b16 %v2219
        %v2312 = vunpack.c.h.b16 %v2219
        %v2313 = vunpack.c.l.b16 %v2220
        %v2314 = vunpack.c.h.b16 %v2220
        %v2315 = vunpack.c.l.b16 %v2221
        %v2316 = vunpack.c.h.b16 %v2221
        %v2317 = vunpack.c.l.b16 %v2222
        %v2318 = vunpack.c.h.b16 %v2222
        %v2319 = vunpack.c.l.b16 %v2223
        %v2320 = vunpack.c.h.b16 %v2223
        %v2321 = vunpack.c.l.b16 %v2224
        %v2322 = vunpack.c.h.b16 %v2224
        %v2323 = vunpack.c.l.b16 %v2225
        %v2324 = vunpack.c.h.b16 %v2225
        %v2325 = vunpack.c.l.b16 %v2226
        %v2326 = vunpack.c.h.b16 %v2226
        %v2327 = vpack.c.b16 %v2267, %v2263
        %v2328 = vpack.c.b16 %v2268, %v2264
        %v2329 = vpack.c.b16 %v2269, %v2265
        %v2330 = vpack.c.b16 %v2270, %v2266
        %v2331 = vpack.c.b16 %v2275, %v2271
        %v2332 = vpack.c.b16 %v2276, %v2272
        %v2333 = vpack.c.b16 %v2277, %v2273
        %v2334 = vpack.c.b16 %v2278, %v2274
        %v2335 = vpack.c.b16 %v2283, %v2279
        %v2336 = vpack.c.b16 %v2284, %v2280
        %v2337 = vpack.c.b16 %v2285, %v2281
        %v2338 = vpack.c.b16 %v2286, %v2282
        %v2339 = vpack.c.b16 %v2291, %v2287
        %v2340 = vpack.c.b16 %v2292, %v2288
        %v2341 = vpack.c.b16 %v2293, %v2289
        %v2342 = vpack.c.b16 %v2294, %v2290
        %v2343 = vpack.c.b16 %v2299, %v2295
        %v2344 = vpack.c.b16 %v2300, %v2296
        %v2345 = vpack.c.b16 %v2301, %v2297
        %v2346 = vpack.c.b16 %v2302, %v2298
        %v2347 = vpack.c.b16 %v2307, %v2303
        %v2348 = vpack.c.b16 %v2308, %v2304
        %v2349 = vpack.c.b16 %v2309, %v2305
        %v2350 = vpack.c.b16 %v2310, %v2306
        %v2351 = vpack.c.b16 %v2315, %v2311
        %v2352 = vpack.c.b16 %v2316, %v2312
        %v2353 = vpack.c.b16 %v2317, %v2313
        %v2354 = vpack.c.b16 %v2318, %v2314
        %v2355 = vpack.c.b16 %v2323, %v2319
        %v2356 = vpack.c.b16 %v2324, %v2320
        %v2357 = vpack.c.b16 %v2325, %v2321
        %v2358 = vpack.c.b16 %v2326, %v2322
        %2391 = vmatprep.subr.bf16.mxu0 %v2356
        %2392 = vmatpush1.bf16.msra.mxu0 %v2355
        %2393 = vmatprep.subr.bf16.mxu0 %v2352
        %2394 = vmatpush1.bf16.msra.mxu0 %v2351
        %2395 = vmatprep.subr.bf16.mxu0 %v2348
        %2396 = vmatpush1.bf16.msra.mxu0 %v2347
        %2397 = vmatprep.subr.bf16.mxu0 %v2344
        %2398 = vmatpush1.bf16.msra.mxu0 %v2343
        %2399 = vmatprep.subr.bf16.mxu0 %v2340
        %2400 = vmatpush1.bf16.msra.mxu0 %v2339
        %2401 = vmatprep.subr.bf16.mxu0 %v2336
        %2402 = vmatpush1.bf16.msra.mxu0 %v2335
        %2403 = vmatprep.subr.bf16.mxu0 %v2332
        %2404 = vmatpush1.bf16.msra.mxu0 %v2331
        %2405 = vmatprep.subr.bf16.mxu0 %v2328
        %2406 = vmatpush1.bf16.msra.mxu0 %v2327
        %2407 = vmatprep.subr.bf16.mxu0 0
        %2408 = vmatpush2.bf16.msra.mxu0 0
        %2409 = vmatprep.subr.bf16.mxu0 0
        %2410 = vmatpush2.bf16.msra.mxu0 0
        %2411 = vmatprep.subr.bf16.mxu0 0
        %2412 = vmatpush2.bf16.msra.mxu0 0
        %2413 = vmatprep.subr.bf16.mxu0 0
        %2414 = vmatpush2.bf16.msra.mxu0 0
        %2415 = vmatprep.subr.bf16.mxu0 0
        %2416 = vmatpush2.bf16.msra.mxu0 0
        %2417 = vmatprep.subr.bf16.mxu0 0
        %2418 = vmatpush2.bf16.msra.mxu0 0
        %2419 = vmatprep.subr.bf16.mxu0 0
        %2420 = vmatpush2.bf16.msra.mxu0 0
        %2421 = vmatprep.subr.bf16.mxu0 0
        %2422 = vmatpush2.bf16.msra.mxu0 0
        %2423 = vmatprep.mubr.bf16.mxu0 0
        %2424 = vmatmul.mubr.bf16.gmra.mxu0 0
        %v2425 = vpop.f32.mrf.mxu0
        %v2426 = vadd.f32 0.0, %v2425
        %v2427 = vpop.f32.mrf.mxu0
        %v2428 = vadd.f32 0.0, %v2427
        %v2429 = vpop.f32.mrf.mxu0
        %v2430 = vpop.f32.mrf.mxu0
        %2431 = vdwg.mxu0
        %2432 = vmatprep.subr.bf16.mxu0 %v2358
        %2433 = vmatpush1.bf16.msra.mxu0 %v2357
        %2434 = vmatprep.subr.bf16.mxu0 %v2354
        %2435 = vmatpush1.bf16.msra.mxu0 %v2353
        %2436 = vmatprep.subr.bf16.mxu0 %v2350
        %2437 = vmatpush1.bf16.msra.mxu0 %v2349
        %2438 = vmatprep.subr.bf16.mxu0 %v2346
        %2439 = vmatpush1.bf16.msra.mxu0 %v2345
        %2440 = vmatprep.subr.bf16.mxu0 %v2342
        %2441 = vmatpush1.bf16.msra.mxu0 %v2341
        %2442 = vmatprep.subr.bf16.mxu0 %v2338
        %2443 = vmatpush1.bf16.msra.mxu0 %v2337
        %2444 = vmatprep.subr.bf16.mxu0 %v2334
        %2445 = vmatpush1.bf16.msra.mxu0 %v2333
        %2446 = vmatprep.subr.bf16.mxu0 %v2330
        %2447 = vmatpush1.bf16.msra.mxu0 %v2329
        %2448 = vmatprep.subr.bf16.mxu0 0
        %2449 = vmatpush2.bf16.msra.mxu0 0
        %2450 = vmatprep.subr.bf16.mxu0 0
        %2451 = vmatpush2.bf16.msra.mxu0 0
        %2452 = vmatprep.subr.bf16.mxu0 0
        %2453 = vmatpush2.bf16.msra.mxu0 0
        %2454 = vmatprep.subr.bf16.mxu0 0
        %2455 = vmatpush2.bf16.msra.mxu0 0
        %2456 = vmatprep.subr.bf16.mxu0 0
        %2457 = vmatpush2.bf16.msra.mxu0 0
        %2458 = vmatprep.subr.bf16.mxu0 0
        %2459 = vmatpush2.bf16.msra.mxu0 0
        %2460 = vmatprep.subr.bf16.mxu0 0
        %2461 = vmatpush2.bf16.msra.mxu0 0
        %2462 = vmatprep.subr.bf16.mxu0 0
        %2463 = vmatpush2.bf16.msra.mxu0 0
        %2464 = vmatprep.mubr.bf16.mxu0 0
        %2465 = vmatmul.mubr.bf16.gmra.mxu0 0
        %v2466 = vpop.f32.mrf.mxu0
        %v2467 = vadd.f32 0.0, %v2466
        %v2468 = vpop.f32.mrf.mxu0
        %v2469 = vadd.f32 0.0, %v2468
        %v2470 = vpop.f32.mrf.mxu0
        %v2471 = vpop.f32.mrf.mxu0
        %2472 = vdwg.mxu0
        %v2473 = vadd.f32 %v2227, %v2426
        %v2474 = vadd.f32 %v2228, %v2428
        %v2475 = vadd.f32 %v2229, %v2467
        %v2476 = vadd.f32 %v2230, %v2469
        %v2477 = vxor.u32 %v2473, 2147483648
        %v2478 = vmul.f32 %v2477, 1.442695
        %v2479 = vpow.pop %v2478
        %v2480 = vadd.f32 %v2479, 1.0
        %v2481 = vrcp.pop %v2480
        %v2482 = vmul.f32 1.0, %v2481
        %v2483 = vxor.u32 %v2474, 2147483648
        %v2484 = vmul.f32 %v2483, 1.442695
        %v2485 = vpow.pop %v2484
        %v2486 = vadd.f32 %v2485, 1.0
        %v2487 = vrcp.pop %v2486
        %v2488 = vmul.f32 1.0, %v2487
        %v2489 = vtanh.pop %v2475
        %v2490 = vxor.u32 %v2476, 2147483648
        %v2491 = vmul.f32 %v2490, 1.442695
        %v2492 = vpow.pop %v2491
        %v2493 = vadd.f32 %v2492, 1.0
        %v2494 = vrcp.pop %v2493
        %v2495 = vmul.f32 1.0, %v2494
        %v2496 = vmul.f32 %v2488, 0.0
        %v2497 = vmul.f32 %v2482, %v2489
        %v2498 = vadd.f32 %v2496, %v2497
        %v2499 = vtanh.pop %v2498
        %v2500 = vmul.f32 %v2495, %v2499
        %v2501 = vpack.c.bf16 %v2500, %v2500
        %2502 = vst [vmem:[#allocation3] sm:$0xf] %v2501
        %v2503 = vld [vmem:[#allocation2 + $0x20] sm:$0xff]
        %v2504 = vld [vmem:[#allocation2 + $0x28] sm:$0xff]
        %v2505 = vld [vmem:[#allocation2 + $0x30] sm:$0xff]
        %v2506 = vld [vmem:[#allocation2 + $0x38] sm:$0xff]
        %2507 = vmatprep.subr.bf16.mxu0 %v2356
        %2508 = vmatpush1.bf16.msra.mxu0 %v2355
        %2509 = vmatprep.subr.bf16.mxu0 %v2352
        %2510 = vmatpush1.bf16.msra.mxu0 %v2351
        %2511 = vmatprep.subr.bf16.mxu0 %v2348
        %2512 = vmatpush1.bf16.msra.mxu0 %v2347
        %2513 = vmatprep.subr.bf16.mxu0 %v2344
        %2514 = vmatpush1.bf16.msra.mxu0 %v2343
        %2515 = vmatprep.subr.bf16.mxu0 %v2340
        %2516 = vmatpush1.bf16.msra.mxu0 %v2339
        %2517 = vmatprep.subr.bf16.mxu0 %v2336
        %2518 = vmatpush1.bf16.msra.mxu0 %v2335
        %2519 = vmatprep.subr.bf16.mxu0 %v2332
        %2520 = vmatpush1.bf16.msra.mxu0 %v2331
        %2521 = vmatprep.subr.bf16.mxu0 %v2328
        %2522 = vmatpush1.bf16.msra.mxu0 %v2327
        %2523 = vmatprep.subr.bf16.mxu0 0
        %2524 = vmatpush2.bf16.msra.mxu0 0
        %2525 = vmatprep.subr.bf16.mxu0 0
        %2526 = vmatpush2.bf16.msra.mxu0 0
        %2527 = vmatprep.subr.bf16.mxu0 0
        %2528 = vmatpush2.bf16.msra.mxu0 0
        %2529 = vmatprep.subr.bf16.mxu0 0
        %2530 = vmatpush2.bf16.msra.mxu0 0
        %2531 = vmatprep.subr.bf16.mxu0 0
        %2532 = vmatpush2.bf16.msra.mxu0 0
        %2533 = vmatprep.subr.bf16.mxu0 0
        %2534 = vmatpush2.bf16.msra.mxu0 0
        %2535 = vmatprep.subr.bf16.mxu0 0
        %2536 = vmatpush2.bf16.msra.mxu0 0
        %2537 = vmatprep.subr.bf16.mxu0 0
        %2538 = vmatpush2.bf16.msra.mxu0 0
        %2539 = vmatprep.mubr.bf16.mxu0 0
        %2540 = vmatmul.mubr.bf16.gmra.mxu0 %v2501
        %v2541 = vpop.f32.mrf.mxu0
        %v2542 = vadd.f32 0.0, %v2541
        %v2543 = vpop.f32.mrf.mxu0
        %v2544 = vadd.f32 0.0, %v2543
        %v2545 = vpop.f32.mrf.mxu0
        %v2546 = vpop.f32.mrf.mxu0
        %2547 = vdwg.mxu0
        %2548 = vmatprep.subr.bf16.mxu0 %v2358
        %2549 = vmatpush1.bf16.msra.mxu0 %v2357
        %2550 = vmatprep.subr.bf16.mxu0 %v2354
        %2551 = vmatpush1.bf16.msra.mxu0 %v2353
        %2552 = vmatprep.subr.bf16.mxu0 %v2350
        %2553 = vmatpush1.bf16.msra.mxu0 %v2349
        %2554 = vmatprep.subr.bf16.mxu0 %v2346
        %2555 = vmatpush1.bf16.msra.mxu0 %v2345
        %2556 = vmatprep.subr.bf16.mxu0 %v2342
        %2557 = vmatpush1.bf16.msra.mxu0 %v2341
        %2558 = vmatprep.subr.bf16.mxu0 %v2338
        %2559 = vmatpush1.bf16.msra.mxu0 %v2337
        %2560 = vmatprep.subr.bf16.mxu0 %v2334
        %2561 = vmatpush1.bf16.msra.mxu0 %v2333
        %2562 = vmatprep.subr.bf16.mxu0 %v2330
        %2563 = vmatpush1.bf16.msra.mxu0 %v2329
        %2564 = vmatprep.subr.bf16.mxu0 0
        %2565 = vmatpush2.bf16.msra.mxu0 0
        %2566 = vmatprep.subr.bf16.mxu0 0
        %2567 = vmatpush2.bf16.msra.mxu0 0
        %2568 = vmatprep.subr.bf16.mxu0 0
        %2569 = vmatpush2.bf16.msra.mxu0 0
        %2570 = vmatprep.subr.bf16.mxu0 0
        %2571 = vmatpush2.bf16.msra.mxu0 0
        %2572 = vmatprep.subr.bf16.mxu0 0
        %2573 = vmatpush2.bf16.msra.mxu0 0
        %2574 = vmatprep.subr.bf16.mxu0 0
        %2575 = vmatpush2.bf16.msra.mxu0 0
        %2576 = vmatprep.subr.bf16.mxu0 0
        %2577 = vmatpush2.bf16.msra.mxu0 0
        %2578 = vmatprep.subr.bf16.mxu0 0
        %2579 = vmatpush2.bf16.msra.mxu0 0
        %2580 = vmatprep.mubr.bf16.mxu0 0
        %2581 = vmatmul.mubr.bf16.gmra.mxu0 %v2501
        %v2582 = vpop.f32.mrf.mxu0
        %v2583 = vadd.f32 0.0, %v2582
        %v2584 = vpop.f32.mrf.mxu0
        %v2585 = vadd.f32 0.0, %v2584
        %v2586 = vpop.f32.mrf.mxu0
        %v2587 = vpop.f32.mrf.mxu0
        %2588 = vdwg.mxu0
        %v2589 = vadd.f32 %v2503, %v2542
        %v2590 = vadd.f32 %v2504, %v2544
        %v2591 = vadd.f32 %v2505, %v2583
        %v2592 = vadd.f32 %v2506, %v2585
        %v2593 = vxor.u32 %v2589, 2147483648
        %v2594 = vmul.f32 %v2593, 1.442695
        %v2595 = vpow.pop %v2594
        %v2596 = vadd.f32 %v2595, 1.0
        %v2597 = vrcp.pop %v2596
        %v2598 = vmul.f32 1.0, %v2597
        %v2599 = vxor.u32 %v2590, 2147483648
        %v2600 = vmul.f32 %v2599, 1.442695
        %v2601 = vpow.pop %v2600
        %v2602 = vadd.f32 %v2601, 1.0
        %v2603 = vrcp.pop %v2602
        %v2604 = vmul.f32 1.0, %v2603
        %v2605 = vtanh.pop %v2591
        %v2606 = vxor.u32 %v2592, 2147483648
        %v2607 = vmul.f32 %v2606, 1.442695
        %v2608 = vpow.pop %v2607
        %v2609 = vadd.f32 %v2608, 1.0
        %v2610 = vrcp.pop %v2609
        %v2611 = vmul.f32 1.0, %v2610
        %v2612 = vmul.f32 %v2604, %v2498
        %v2613 = vmul.f32 %v2598, %v2605
        %v2614 = vadd.f32 %v2612, %v2613
        %v2615 = vtanh.pop %v2614
        %v2616 = vmul.f32 %v2611, %v2615
        %v2617 = vpack.c.bf16 %v2616, %v2616
        %2618 = vst [vmem:[#allocation3 + $0x4] sm:$0xf] %v2617
        %v2619 = vld [vmem:[#allocation2 + $0x40] sm:$0xff]
        %v2620 = vld [vmem:[#allocation2 + $0x48] sm:$0xff]
        %v2621 = vld [vmem:[#allocation2 + $0x50] sm:$0xff]
        %v2622 = vld [vmem:[#allocation2 + $0x58] sm:$0xff]
        %2623 = vmatprep.subr.bf16.mxu0 %v2356
        %2624 = vmatpush1.bf16.msra.mxu0 %v2355
        %2625 = vmatprep.subr.bf16.mxu0 %v2352
        %2626 = vmatpush1.bf16.msra.mxu0 %v2351
        %2627 = vmatprep.subr.bf16.mxu0 %v2348
        %2628 = vmatpush1.bf16.msra.mxu0 %v2347
        %2629 = vmatprep.subr.bf16.mxu0 %v2344
        %2630 = vmatpush1.bf16.msra.mxu0 %v2343
        %2631 = vmatprep.subr.bf16.mxu0 %v2340
        %2632 = vmatpush1.bf16.msra.mxu0 %v2339
        %2633 = vmatprep.subr.bf16.mxu0 %v2336
        %2634 = vmatpush1.bf16.msra.mxu0 %v2335
        %2635 = vmatprep.subr.bf16.mxu0 %v2332
        %2636 = vmatpush1.bf16.msra.mxu0 %v2331
        %2637 = vmatprep.subr.bf16.mxu0 %v2328
        %2638 = vmatpush1.bf16.msra.mxu0 %v2327
        %2639 = vmatprep.subr.bf16.mxu0 0
        %2640 = vmatpush2.bf16.msra.mxu0 0
        %2641 = vmatprep.subr.bf16.mxu0 0
        %2642 = vmatpush2.bf16.msra.mxu0 0
        %2643 = vmatprep.subr.bf16.mxu0 0
        %2644 = vmatpush2.bf16.msra.mxu0 0
        %2645 = vmatprep.subr.bf16.mxu0 0
        %2646 = vmatpush2.bf16.msra.mxu0 0
        %2647 = vmatprep.subr.bf16.mxu0 0
        %2648 = vmatpush2.bf16.msra.mxu0 0
        %2649 = vmatprep.subr.bf16.mxu0 0
        %2650 = vmatpush2.bf16.msra.mxu0 0
        %2651 = vmatprep.subr.bf16.mxu0 0
        %2652 = vmatpush2.bf16.msra.mxu0 0
        %2653 = vmatprep.subr.bf16.mxu0 0
        %2654 = vmatpush2.bf16.msra.mxu0 0
        %2655 = vmatprep.mubr.bf16.mxu0 0
        %2656 = vmatmul.mubr.bf16.gmra.mxu0 %v2617
        %v2657 = vpop.f32.mrf.mxu0
        %v2658 = vadd.f32 0.0, %v2657
        %v2659 = vpop.f32.mrf.mxu0
        %v2660 = vadd.f32 0.0, %v2659
        %v2661 = vpop.f32.mrf.mxu0
        %v2662 = vpop.f32.mrf.mxu0
        %2663 = vdwg.mxu0
        %2664 = vmatprep.subr.bf16.mxu0 %v2358
        %2665 = vmatpush1.bf16.msra.mxu0 %v2357
        %2666 = vmatprep.subr.bf16.mxu0 %v2354
        %2667 = vmatpush1.bf16.msra.mxu0 %v2353
        %2668 = vmatprep.subr.bf16.mxu0 %v2350
        %2669 = vmatpush1.bf16.msra.mxu0 %v2349
        %2670 = vmatprep.subr.bf16.mxu0 %v2346
        %2671 = vmatpush1.bf16.msra.mxu0 %v2345
        %2672 = vmatprep.subr.bf16.mxu0 %v2342
        %2673 = vmatpush1.bf16.msra.mxu0 %v2341
        %2674 = vmatprep.subr.bf16.mxu0 %v2338
        %2675 = vmatpush1.bf16.msra.mxu0 %v2337
        %2676 = vmatprep.subr.bf16.mxu0 %v2334
        %2677 = vmatpush1.bf16.msra.mxu0 %v2333
        %2678 = vmatprep.subr.bf16.mxu0 %v2330
        %2679 = vmatpush1.bf16.msra.mxu0 %v2329
        %2680 = vmatprep.subr.bf16.mxu0 0
        %2681 = vmatpush2.bf16.msra.mxu0 0
        %2682 = vmatprep.subr.bf16.mxu0 0
        %2683 = vmatpush2.bf16.msra.mxu0 0
        %2684 = vmatprep.subr.bf16.mxu0 0
        %2685 = vmatpush2.bf16.msra.mxu0 0
        %2686 = vmatprep.subr.bf16.mxu0 0
        %2687 = vmatpush2.bf16.msra.mxu0 0
        %2688 = vmatprep.subr.bf16.mxu0 0
        %2689 = vmatpush2.bf16.msra.mxu0 0
        %2690 = vmatprep.subr.bf16.mxu0 0
        %2691 = vmatpush2.bf16.msra.mxu0 0
        %2692 = vmatprep.subr.bf16.mxu0 0
        %2693 = vmatpush2.bf16.msra.mxu0 0
        %2694 = vmatprep.subr.bf16.mxu0 0
        %2695 = vmatpush2.bf16.msra.mxu0 0
        %2696 = vmatprep.mubr.bf16.mxu0 0
        %2697 = vmatmul.mubr.bf16.gmra.mxu0 %v2617
        %v2698 = vpop.f32.mrf.mxu0
        %v2699 = vadd.f32 0.0, %v2698
        %v2700 = vpop.f32.mrf.mxu0
        %v2701 = vadd.f32 0.0, %v2700
        %v2702 = vpop.f32.mrf.mxu0
        %v2703 = vpop.f32.mrf.mxu0
        %2704 = vdwg.mxu0
        %v2705 = vadd.f32 %v2619, %v2658
        %v2706 = vadd.f32 %v2620, %v2660
        %v2707 = vadd.f32 %v2621, %v2699
        %v2708 = vadd.f32 %v2622, %v2701
        %v2709 = vxor.u32 %v2705, 2147483648
        %v2710 = vmul.f32 %v2709, 1.442695
        %v2711 = vpow.pop %v2710
        %v2712 = vadd.f32 %v2711, 1.0
        %v2713 = vrcp.pop %v2712
        %v2714 = vmul.f32 1.0, %v2713
        %v2715 = vxor.u32 %v2706, 2147483648
        %v2716 = vmul.f32 %v2715, 1.442695
        %v2717 = vpow.pop %v2716
        %v2718 = vadd.f32 %v2717, 1.0
        %v2719 = vrcp.pop %v2718
        %v2720 = vmul.f32 1.0, %v2719
        %v2721 = vtanh.pop %v2707
        %v2722 = vxor.u32 %v2708, 2147483648
        %v2723 = vmul.f32 %v2722, 1.442695
        %v2724 = vpow.pop %v2723
        %v2725 = vadd.f32 %v2724, 1.0
        %v2726 = vrcp.pop %v2725
        %v2727 = vmul.f32 1.0, %v2726
        %v2728 = vmul.f32 %v2720, %v2614
        %v2729 = vmul.f32 %v2714, %v2721
        %v2730 = vadd.f32 %v2728, %v2729
        %v2731 = vtanh.pop %v2730
        %v2732 = vmul.f32 %v2727, %v2731
        %v2733 = vpack.c.bf16 %v2732, %v2732
        %2734 = vst [vmem:[#allocation3 + $0x8] sm:$0xf] %v2733
        %v2735 = vld [vmem:[#allocation2 + $0x60] sm:$0xff]
        %v2736 = vld [vmem:[#allocation2 + $0x68] sm:$0xff]
        %v2737 = vld [vmem:[#allocation2 + $0x70] sm:$0xff]
        %v2738 = vld [vmem:[#allocation2 + $0x78] sm:$0xff]
        %2739 = vmatprep.subr.bf16.mxu0 %v2356
        %2740 = vmatpush1.bf16.msra.mxu0 %v2355
        %2741 = vmatprep.subr.bf16.mxu0 %v2352
        %2742 = vmatpush1.bf16.msra.mxu0 %v2351
        %2743 = vmatprep.subr.bf16.mxu0 %v2348
        %2744 = vmatpush1.bf16.msra.mxu0 %v2347
        %2745 = vmatprep.subr.bf16.mxu0 %v2344
        %2746 = vmatpush1.bf16.msra.mxu0 %v2343
        %2747 = vmatprep.subr.bf16.mxu0 %v2340
        %2748 = vmatpush1.bf16.msra.mxu0 %v2339
        %2749 = vmatprep.subr.bf16.mxu0 %v2336
        %2750 = vmatpush1.bf16.msra.mxu0 %v2335
        %2751 = vmatprep.subr.bf16.mxu0 %v2332
        %2752 = vmatpush1.bf16.msra.mxu0 %v2331
        %2753 = vmatprep.subr.bf16.mxu0 %v2328
        %2754 = vmatpush1.bf16.msra.mxu0 %v2327
        %2755 = vmatprep.subr.bf16.mxu0 0
        %2756 = vmatpush2.bf16.msra.mxu0 0
        %2757 = vmatprep.subr.bf16.mxu0 0
        %2758 = vmatpush2.bf16.msra.mxu0 0
        %2759 = vmatprep.subr.bf16.mxu0 0
        %2760 = vmatpush2.bf16.msra.mxu0 0
        %2761 = vmatprep.subr.bf16.mxu0 0
        %2762 = vmatpush2.bf16.msra.mxu0 0
        %2763 = vmatprep.subr.bf16.mxu0 0
        %2764 = vmatpush2.bf16.msra.mxu0 0
        %2765 = vmatprep.subr.bf16.mxu0 0
        %2766 = vmatpush2.bf16.msra.mxu0 0
        %2767 = vmatprep.subr.bf16.mxu0 0
        %2768 = vmatpush2.bf16.msra.mxu0 0
        %2769 = vmatprep.subr.bf16.mxu0 0
        %2770 = vmatpush2.bf16.msra.mxu0 0
        %2771 = vmatprep.mubr.bf16.mxu0 0
        %2772 = vmatmul.mubr.bf16.gmra.mxu0 %v2733
        %v2773 = vpop.f32.mrf.mxu0
        %v2774 = vadd.f32 0.0, %v2773
        %v2775 = vpop.f32.mrf.mxu0
        %v2776 = vadd.f32 0.0, %v2775
        %v2777 = vpop.f32.mrf.mxu0
        %v2778 = vpop.f32.mrf.mxu0
        %2779 = vdwg.mxu0
        %2780 = vmatprep.subr.bf16.mxu0 %v2358
        %2781 = vmatpush1.bf16.msra.mxu0 %v2357
        %2782 = vmatprep.subr.bf16.mxu0 %v2354
        %2783 = vmatpush1.bf16.msra.mxu0 %v2353
        %2784 = vmatprep.subr.bf16.mxu0 %v2350
        %2785 = vmatpush1.bf16.msra.mxu0 %v2349
        %2786 = vmatprep.subr.bf16.mxu0 %v2346
        %2787 = vmatpush1.bf16.msra.mxu0 %v2345
        %2788 = vmatprep.subr.bf16.mxu0 %v2342
        %2789 = vmatpush1.bf16.msra.mxu0 %v2341
        %2790 = vmatprep.subr.bf16.mxu0 %v2338
        %2791 = vmatpush1.bf16.msra.mxu0 %v2337
        %2792 = vmatprep.subr.bf16.mxu0 %v2334
        %2793 = vmatpush1.bf16.msra.mxu0 %v2333
        %2794 = vmatprep.subr.bf16.mxu0 %v2330
        %2795 = vmatpush1.bf16.msra.mxu0 %v2329
        %2796 = vmatprep.subr.bf16.mxu0 0
        %2797 = vmatpush2.bf16.msra.mxu0 0
        %2798 = vmatprep.subr.bf16.mxu0 0
        %2799 = vmatpush2.bf16.msra.mxu0 0
        %2800 = vmatprep.subr.bf16.mxu0 0
        %2801 = vmatpush2.bf16.msra.mxu0 0
        %2802 = vmatprep.subr.bf16.mxu0 0
        %2803 = vmatpush2.bf16.msra.mxu0 0
        %2804 = vmatprep.subr.bf16.mxu0 0
        %2805 = vmatpush2.bf16.msra.mxu0 0
        %2806 = vmatprep.subr.bf16.mxu0 0
        %2807 = vmatpush2.bf16.msra.mxu0 0
        %2808 = vmatprep.subr.bf16.mxu0 0
        %2809 = vmatpush2.bf16.msra.mxu0 0
        %2810 = vmatprep.subr.bf16.mxu0 0
        %2811 = vmatpush2.bf16.msra.mxu0 0
        %2812 = vmatprep.mubr.bf16.mxu0 0
        %2813 = vmatmul.mubr.bf16.gmra.mxu0 %v2733
        %v2814 = vpop.f32.mrf.mxu0
        %v2815 = vadd.f32 0.0, %v2814
        %v2816 = vpop.f32.mrf.mxu0
        %v2817 = vadd.f32 0.0, %v2816
        %v2818 = vpop.f32.mrf.mxu0
        %v2819 = vpop.f32.mrf.mxu0
        %2820 = vdwg.mxu0
        %v2821 = vadd.f32 %v2735, %v2774
        %v2822 = vadd.f32 %v2736, %v2776
        %v2823 = vadd.f32 %v2737, %v2815
        %v2824 = vadd.f32 %v2738, %v2817
        %v2825 = vxor.u32 %v2821, 2147483648
        %v2826 = vmul.f32 %v2825, 1.442695
        %v2827 = vpow.pop %v2826
        %v2828 = vadd.f32 %v2827, 1.0
        %v2829 = vrcp.pop %v2828
        %v2830 = vmul.f32 1.0, %v2829
        %v2831 = vxor.u32 %v2822, 2147483648
        %v2832 = vmul.f32 %v2831, 1.442695
        %v2833 = vpow.pop %v2832
        %v2834 = vadd.f32 %v2833, 1.0
        %v2835 = vrcp.pop %v2834
        %v2836 = vmul.f32 1.0, %v2835
        %v2837 = vtanh.pop %v2823
        %v2838 = vxor.u32 %v2824, 2147483648
        %v2839 = vmul.f32 %v2838, 1.442695
        %v2840 = vpow.pop %v2839
        %v2841 = vadd.f32 %v2840, 1.0
        %v2842 = vrcp.pop %v2841
        %v2843 = vmul.f32 1.0, %v2842
        %v2844 = vmul.f32 %v2836, %v2730
        %v2845 = vmul.f32 %v2830, %v2837
        %v2846 = vadd.f32 %v2844, %v2845
        %v2847 = vtanh.pop %v2846
        %v2848 = vmul.f32 %v2843, %v2847
        %v2849 = vpack.c.bf16 %v2848, %v2848
        %2850 = vst [vmem:[#allocation3 + $0xc] sm:$0xf] %v2849
        %v2851 = vld [vmem:[#allocation2 + $0x80] sm:$0xff]
        %v2852 = vld [vmem:[#allocation2 + $0x88] sm:$0xff]
        %v2853 = vld [vmem:[#allocation2 + $0x90] sm:$0xff]
        %v2854 = vld [vmem:[#allocation2 + $0x98] sm:$0xff]
        %2855 = vmatprep.subr.bf16.mxu0 %v2356
        %2856 = vmatpush1.bf16.msra.mxu0 %v2355
        %2857 = vmatprep.subr.bf16.mxu0 %v2352
        %2858 = vmatpush1.bf16.msra.mxu0 %v2351
        %2859 = vmatprep.subr.bf16.mxu0 %v2348
        %2860 = vmatpush1.bf16.msra.mxu0 %v2347
        %2861 = vmatprep.subr.bf16.mxu0 %v2344
        %2862 = vmatpush1.bf16.msra.mxu0 %v2343
        %2863 = vmatprep.subr.bf16.mxu0 %v2340
        %2864 = vmatpush1.bf16.msra.mxu0 %v2339
        %2865 = vmatprep.subr.bf16.mxu0 %v2336
        %2866 = vmatpush1.bf16.msra.mxu0 %v2335
        %2867 = vmatprep.subr.bf16.mxu0 %v2332
        %2868 = vmatpush1.bf16.msra.mxu0 %v2331
        %2869 = vmatprep.subr.bf16.mxu0 %v2328
        %2870 = vmatpush1.bf16.msra.mxu0 %v2327
        %2871 = vmatprep.subr.bf16.mxu0 0
        %2872 = vmatpush2.bf16.msra.mxu0 0
        %2873 = vmatprep.subr.bf16.mxu0 0
        %2874 = vmatpush2.bf16.msra.mxu0 0
        %2875 = vmatprep.subr.bf16.mxu0 0
        %2876 = vmatpush2.bf16.msra.mxu0 0
        %2877 = vmatprep.subr.bf16.mxu0 0
        %2878 = vmatpush2.bf16.msra.mxu0 0
        %2879 = vmatprep.subr.bf16.mxu0 0
        %2880 = vmatpush2.bf16.msra.mxu0 0
        %2881 = vmatprep.subr.bf16.mxu0 0
        %2882 = vmatpush2.bf16.msra.mxu0 0
        %2883 = vmatprep.subr.bf16.mxu0 0
        %2884 = vmatpush2.bf16.msra.mxu0 0
        %2885 = vmatprep.subr.bf16.mxu0 0
        %2886 = vmatpush2.bf16.msra.mxu0 0
        %2887 = vmatprep.mubr.bf16.mxu0 0
        %2888 = vmatmul.mubr.bf16.gmra.mxu0 %v2849
        %v2889 = vpop.f32.mrf.mxu0
        %v2890 = vadd.f32 0.0, %v2889
        %v2891 = vpop.f32.mrf.mxu0
        %v2892 = vadd.f32 0.0, %v2891
        %v2893 = vpop.f32.mrf.mxu0
        %v2894 = vpop.f32.mrf.mxu0
        %2895 = vdwg.mxu0
        %2896 = vmatprep.subr.bf16.mxu0 %v2358
        %2897 = vmatpush1.bf16.msra.mxu0 %v2357
        %2898 = vmatprep.subr.bf16.mxu0 %v2354
        %2899 = vmatpush1.bf16.msra.mxu0 %v2353
        %2900 = vmatprep.subr.bf16.mxu0 %v2350
        %2901 = vmatpush1.bf16.msra.mxu0 %v2349
        %2902 = vmatprep.subr.bf16.mxu0 %v2346
        %2903 = vmatpush1.bf16.msra.mxu0 %v2345
        %2904 = vmatprep.subr.bf16.mxu0 %v2342
        %2905 = vmatpush1.bf16.msra.mxu0 %v2341
        %2906 = vmatprep.subr.bf16.mxu0 %v2338
        %2907 = vmatpush1.bf16.msra.mxu0 %v2337
        %2908 = vmatprep.subr.bf16.mxu0 %v2334
        %2909 = vmatpush1.bf16.msra.mxu0 %v2333
        %2910 = vmatprep.subr.bf16.mxu0 %v2330
        %2911 = vmatpush1.bf16.msra.mxu0 %v2329
        %2912 = vmatprep.subr.bf16.mxu0 0
        %2913 = vmatpush2.bf16.msra.mxu0 0
        %2914 = vmatprep.subr.bf16.mxu0 0
        %2915 = vmatpush2.bf16.msra.mxu0 0
        %2916 = vmatprep.subr.bf16.mxu0 0
        %2917 = vmatpush2.bf16.msra.mxu0 0
        %2918 = vmatprep.subr.bf16.mxu0 0
        %2919 = vmatpush2.bf16.msra.mxu0 0
        %2920 = vmatprep.subr.bf16.mxu0 0
        %2921 = vmatpush2.bf16.msra.mxu0 0
        %2922 = vmatprep.subr.bf16.mxu0 0
        %2923 = vmatpush2.bf16.msra.mxu0 0
        %2924 = vmatprep.subr.bf16.mxu0 0
        %2925 = vmatpush2.bf16.msra.mxu0 0
        %2926 = vmatprep.subr.bf16.mxu0 0
        %2927 = vmatpush2.bf16.msra.mxu0 0
        %2928 = vmatprep.mubr.bf16.mxu0 0
        %2929 = vmatmul.mubr.bf16.gmra.mxu0 %v2849
        %v2930 = vpop.f32.mrf.mxu0
        %v2931 = vadd.f32 0.0, %v2930
        %v2932 = vpop.f32.mrf.mxu0
        %v2933 = vadd.f32 0.0, %v2932
        %v2934 = vpop.f32.mrf.mxu0
        %v2935 = vpop.f32.mrf.mxu0
        %2936 = vdwg.mxu0
        %v2937 = vadd.f32 %v2851, %v2890
        %v2938 = vadd.f32 %v2852, %v2892
        %v2939 = vadd.f32 %v2853, %v2931
        %v2940 = vadd.f32 %v2854, %v2933
        %v2941 = vxor.u32 %v2937, 2147483648
        %v2942 = vmul.f32 %v2941, 1.442695
        %v2943 = vpow.pop %v2942
        %v2944 = vadd.f32 %v2943, 1.0
        %v2945 = vrcp.pop %v2944
        %v2946 = vmul.f32 1.0, %v2945
        %v2947 = vxor.u32 %v2938, 2147483648
        %v2948 = vmul.f32 %v2947, 1.442695
        %v2949 = vpow.pop %v2948
        %v2950 = vadd.f32 %v2949, 1.0
        %v2951 = vrcp.pop %v2950
        %v2952 = vmul.f32 1.0, %v2951
        %v2953 = vtanh.pop %v2939
        %v2954 = vxor.u32 %v2940, 2147483648
        %v2955 = vmul.f32 %v2954, 1.442695
        %v2956 = vpow.pop %v2955
        %v2957 = vadd.f32 %v2956, 1.0
        %v2958 = vrcp.pop %v2957
        %v2959 = vmul.f32 1.0, %v2958
        %v2960 = vmul.f32 %v2952, %v2846
        %v2961 = vmul.f32 %v2946, %v2953
        %v2962 = vadd.f32 %v2960, %v2961
        %v2963 = vtanh.pop %v2962
        %v2964 = vmul.f32 %v2959, %v2963
        %v2965 = vpack.c.bf16 %v2964, %v2964
        %2966 = vst [vmem:[#allocation3 + $0x10] sm:$0xf] %v2965
        %v2967 = vld [vmem:[#allocation2 + $0xa0] sm:$0xff]
        %v2968 = vld [vmem:[#allocation2 + $0xa8] sm:$0xff]
        %v2969 = vld [vmem:[#allocation2 + $0xb0] sm:$0xff]
        %v2970 = vld [vmem:[#allocation2 + $0xb8] sm:$0xff]
        %2971 = vmatprep.subr.bf16.mxu0 %v2356
        %2972 = vmatpush1.bf16.msra.mxu0 %v2355
        %2973 = vmatprep.subr.bf16.mxu0 %v2352
        %2974 = vmatpush1.bf16.msra.mxu0 %v2351
        %2975 = vmatprep.subr.bf16.mxu0 %v2348
        %2976 = vmatpush1.bf16.msra.mxu0 %v2347
        %2977 = vmatprep.subr.bf16.mxu0 %v2344
        %2978 = vmatpush1.bf16.msra.mxu0 %v2343
        %2979 = vmatprep.subr.bf16.mxu0 %v2340
        %2980 = vmatpush1.bf16.msra.mxu0 %v2339
        %2981 = vmatprep.subr.bf16.mxu0 %v2336
        %2982 = vmatpush1.bf16.msra.mxu0 %v2335
        %2983 = vmatprep.subr.bf16.mxu0 %v2332
        %2984 = vmatpush1.bf16.msra.mxu0 %v2331
        %2985 = vmatprep.subr.bf16.mxu0 %v2328
        %2986 = vmatpush1.bf16.msra.mxu0 %v2327
        %2987 = vmatprep.subr.bf16.mxu0 0
        %2988 = vmatpush2.bf16.msra.mxu0 0
        %2989 = vmatprep.subr.bf16.mxu0 0
        %2990 = vmatpush2.bf16.msra.mxu0 0
        %2991 = vmatprep.subr.bf16.mxu0 0
        %2992 = vmatpush2.bf16.msra.mxu0 0
        %2993 = vmatprep.subr.bf16.mxu0 0
        %2994 = vmatpush2.bf16.msra.mxu0 0
        %2995 = vmatprep.subr.bf16.mxu0 0
        %2996 = vmatpush2.bf16.msra.mxu0 0
        %2997 = vmatprep.subr.bf16.mxu0 0
        %2998 = vmatpush2.bf16.msra.mxu0 0
        %2999 = vmatprep.subr.bf16.mxu0 0
        %3000 = vmatpush2.bf16.msra.mxu0 0
        %3001 = vmatprep.subr.bf16.mxu0 0
        %3002 = vmatpush2.bf16.msra.mxu0 0
        %3003 = vmatprep.mubr.bf16.mxu0 0
        %3004 = vmatmul.mubr.bf16.gmra.mxu0 %v2965
        %v3005 = vpop.f32.mrf.mxu0
        %v3006 = vadd.f32 0.0, %v3005
        %v3007 = vpop.f32.mrf.mxu0
        %v3008 = vadd.f32 0.0, %v3007
        %v3009 = vpop.f32.mrf.mxu0
        %v3010 = vpop.f32.mrf.mxu0
        %3011 = vdwg.mxu0
        %3012 = vmatprep.subr.bf16.mxu0 %v2358
        %3013 = vmatpush1.bf16.msra.mxu0 %v2357
        %3014 = vmatprep.subr.bf16.mxu0 %v2354
        %3015 = vmatpush1.bf16.msra.mxu0 %v2353
        %3016 = vmatprep.subr.bf16.mxu0 %v2350
        %3017 = vmatpush1.bf16.msra.mxu0 %v2349
        %3018 = vmatprep.subr.bf16.mxu0 %v2346
        %3019 = vmatpush1.bf16.msra.mxu0 %v2345
        %3020 = vmatprep.subr.bf16.mxu0 %v2342
        %3021 = vmatpush1.bf16.msra.mxu0 %v2341
        %3022 = vmatprep.subr.bf16.mxu0 %v2338
        %3023 = vmatpush1.bf16.msra.mxu0 %v2337
        %3024 = vmatprep.subr.bf16.mxu0 %v2334
        %3025 = vmatpush1.bf16.msra.mxu0 %v2333
        %3026 = vmatprep.subr.bf16.mxu0 %v2330
        %3027 = vmatpush1.bf16.msra.mxu0 %v2329
        %3028 = vmatprep.subr.bf16.mxu0 0
        %3029 = vmatpush2.bf16.msra.mxu0 0
        %3030 = vmatprep.subr.bf16.mxu0 0
        %3031 = vmatpush2.bf16.msra.mxu0 0
        %3032 = vmatprep.subr.bf16.mxu0 0
        %3033 = vmatpush2.bf16.msra.mxu0 0
        %3034 = vmatprep.subr.bf16.mxu0 0
        %3035 = vmatpush2.bf16.msra.mxu0 0
        %3036 = vmatprep.subr.bf16.mxu0 0
        %3037 = vmatpush2.bf16.msra.mxu0 0
        %3038 = vmatprep.subr.bf16.mxu0 0
        %3039 = vmatpush2.bf16.msra.mxu0 0
        %3040 = vmatprep.subr.bf16.mxu0 0
        %3041 = vmatpush2.bf16.msra.mxu0 0
        %3042 = vmatprep.subr.bf16.mxu0 0
        %3043 = vmatpush2.bf16.msra.mxu0 0
        %3044 = vmatprep.mubr.bf16.mxu0 0
        %3045 = vmatmul.mubr.bf16.gmra.mxu0 %v2965
        %v3046 = vpop.f32.mrf.mxu0
        %v3047 = vadd.f32 0.0, %v3046
        %v3048 = vpop.f32.mrf.mxu0
        %v3049 = vadd.f32 0.0, %v3048
        %v3050 = vpop.f32.mrf.mxu0
        %v3051 = vpop.f32.mrf.mxu0
        %3052 = vdwg.mxu0
        %v3053 = vadd.f32 %v2967, %v3006
        %v3054 = vadd.f32 %v2968, %v3008
        %v3055 = vadd.f32 %v2969, %v3047
        %v3056 = vadd.f32 %v2970, %v3049
        %v3057 = vxor.u32 %v3053, 2147483648
        %v3058 = vmul.f32 %v3057, 1.442695
        %v3059 = vpow.pop %v3058
        %v3060 = vadd.f32 %v3059, 1.0
        %v3061 = vrcp.pop %v3060
        %v3062 = vmul.f32 1.0, %v3061
        %v3063 = vxor.u32 %v3054, 2147483648
        %v3064 = vmul.f32 %v3063, 1.442695
        %v3065 = vpow.pop %v3064
        %v3066 = vadd.f32 %v3065, 1.0
        %v3067 = vrcp.pop %v3066
        %v3068 = vmul.f32 1.0, %v3067
        %v3069 = vtanh.pop %v3055
        %v3070 = vxor.u32 %v3056, 2147483648
        %v3071 = vmul.f32 %v3070, 1.442695
        %v3072 = vpow.pop %v3071
        %v3073 = vadd.f32 %v3072, 1.0
        %v3074 = vrcp.pop %v3073
        %v3075 = vmul.f32 1.0, %v3074
        %v3076 = vmul.f32 %v3068, %v2962
        %v3077 = vmul.f32 %v3062, %v3069
        %v3078 = vadd.f32 %v3076, %v3077
        %v3079 = vtanh.pop %v3078
        %v3080 = vmul.f32 %v3075, %v3079
        %v3081 = vpack.c.bf16 %v3080, %v3080
        %3082 = vst [vmem:[#allocation3 + $0x14] sm:$0xf] %v3081
        %v3083 = vld [vmem:[#allocation2 + $0xc0] sm:$0xff]
        %v3084 = vld [vmem:[#allocation2 + $0xc8] sm:$0xff]
        %v3085 = vld [vmem:[#allocation2 + $0xd0] sm:$0xff]
        %v3086 = vld [vmem:[#allocation2 + $0xd8] sm:$0xff]
        %3087 = vmatprep.subr.bf16.mxu0 %v2356
        %3088 = vmatpush1.bf16.msra.mxu0 %v2355
        %3089 = vmatprep.subr.bf16.mxu0 %v2352
        %3090 = vmatpush1.bf16.msra.mxu0 %v2351
        %3091 = vmatprep.subr.bf16.mxu0 %v2348
        %3092 = vmatpush1.bf16.msra.mxu0 %v2347
        %3093 = vmatprep.subr.bf16.mxu0 %v2344
        %3094 = vmatpush1.bf16.msra.mxu0 %v2343
        %3095 = vmatprep.subr.bf16.mxu0 %v2340
        %3096 = vmatpush1.bf16.msra.mxu0 %v2339
        %3097 = vmatprep.subr.bf16.mxu0 %v2336
        %3098 = vmatpush1.bf16.msra.mxu0 %v2335
        %3099 = vmatprep.subr.bf16.mxu0 %v2332
        %3100 = vmatpush1.bf16.msra.mxu0 %v2331
        %3101 = vmatprep.subr.bf16.mxu0 %v2328
        %3102 = vmatpush1.bf16.msra.mxu0 %v2327
        %3103 = vmatprep.subr.bf16.mxu0 0
        %3104 = vmatpush2.bf16.msra.mxu0 0
        %3105 = vmatprep.subr.bf16.mxu0 0
        %3106 = vmatpush2.bf16.msra.mxu0 0
        %3107 = vmatprep.subr.bf16.mxu0 0
        %3108 = vmatpush2.bf16.msra.mxu0 0
        %3109 = vmatprep.subr.bf16.mxu0 0
        %3110 = vmatpush2.bf16.msra.mxu0 0
        %3111 = vmatprep.subr.bf16.mxu0 0
        %3112 = vmatpush2.bf16.msra.mxu0 0
        %3113 = vmatprep.subr.bf16.mxu0 0
        %3114 = vmatpush2.bf16.msra.mxu0 0
        %3115 = vmatprep.subr.bf16.mxu0 0
        %3116 = vmatpush2.bf16.msra.mxu0 0
        %3117 = vmatprep.subr.bf16.mxu0 0
        %3118 = vmatpush2.bf16.msra.mxu0 0
        %3119 = vmatprep.mubr.bf16.mxu0 0
        %3120 = vmatmul.mubr.bf16.gmra.mxu0 %v3081
        %v3121 = vpop.f32.mrf.mxu0
        %v3122 = vadd.f32 0.0, %v3121
        %v3123 = vpop.f32.mrf.mxu0
        %v3124 = vadd.f32 0.0, %v3123
        %v3125 = vpop.f32.mrf.mxu0
        %v3126 = vpop.f32.mrf.mxu0
        %3127 = vdwg.mxu0
        %3128 = vmatprep.subr.bf16.mxu0 %v2358
        %3129 = vmatpush1.bf16.msra.mxu0 %v2357
        %3130 = vmatprep.subr.bf16.mxu0 %v2354
        %3131 = vmatpush1.bf16.msra.mxu0 %v2353
        %3132 = vmatprep.subr.bf16.mxu0 %v2350
        %3133 = vmatpush1.bf16.msra.mxu0 %v2349
        %3134 = vmatprep.subr.bf16.mxu0 %v2346
        %3135 = vmatpush1.bf16.msra.mxu0 %v2345
        %3136 = vmatprep.subr.bf16.mxu0 %v2342
        %3137 = vmatpush1.bf16.msra.mxu0 %v2341
        %3138 = vmatprep.subr.bf16.mxu0 %v2338
        %3139 = vmatpush1.bf16.msra.mxu0 %v2337
        %3140 = vmatprep.subr.bf16.mxu0 %v2334
        %3141 = vmatpush1.bf16.msra.mxu0 %v2333
        %3142 = vmatprep.subr.bf16.mxu0 %v2330
        %3143 = vmatpush1.bf16.msra.mxu0 %v2329
        %3144 = vmatprep.subr.bf16.mxu0 0
        %3145 = vmatpush2.bf16.msra.mxu0 0
        %3146 = vmatprep.subr.bf16.mxu0 0
        %3147 = vmatpush2.bf16.msra.mxu0 0
        %3148 = vmatprep.subr.bf16.mxu0 0
        %3149 = vmatpush2.bf16.msra.mxu0 0
        %3150 = vmatprep.subr.bf16.mxu0 0
        %3151 = vmatpush2.bf16.msra.mxu0 0
        %3152 = vmatprep.subr.bf16.mxu0 0
        %3153 = vmatpush2.bf16.msra.mxu0 0
        %3154 = vmatprep.subr.bf16.mxu0 0
        %3155 = vmatpush2.bf16.msra.mxu0 0
        %3156 = vmatprep.subr.bf16.mxu0 0
        %3157 = vmatpush2.bf16.msra.mxu0 0
        %3158 = vmatprep.subr.bf16.mxu0 0
        %3159 = vmatpush2.bf16.msra.mxu0 0
        %3160 = vmatprep.mubr.bf16.mxu0 0
        %3161 = vmatmul.mubr.bf16.gmra.mxu0 %v3081
        %v3162 = vpop.f32.mrf.mxu0
        %v3163 = vadd.f32 0.0, %v3162
        %v3164 = vpop.f32.mrf.mxu0
        %v3165 = vadd.f32 0.0, %v3164
        %v3166 = vpop.f32.mrf.mxu0
        %v3167 = vpop.f32.mrf.mxu0
        %3168 = vdwg.mxu0
        %v3169 = vadd.f32 %v3083, %v3122
        %v3170 = vadd.f32 %v3084, %v3124
        %v3171 = vadd.f32 %v3085, %v3163
        %v3172 = vadd.f32 %v3086, %v3165
        %v3173 = vxor.u32 %v3169, 2147483648
        %v3174 = vmul.f32 %v3173, 1.442695
        %v3175 = vpow.pop %v3174
        %v3176 = vadd.f32 %v3175, 1.0
        %v3177 = vrcp.pop %v3176
        %v3178 = vmul.f32 1.0, %v3177
        %v3179 = vxor.u32 %v3170, 2147483648
        %v3180 = vmul.f32 %v3179, 1.442695
        %v3181 = vpow.pop %v3180
        %v3182 = vadd.f32 %v3181, 1.0
        %v3183 = vrcp.pop %v3182
        %v3184 = vmul.f32 1.0, %v3183
        %v3185 = vtanh.pop %v3171
        %v3186 = vxor.u32 %v3172, 2147483648
        %v3187 = vmul.f32 %v3186, 1.442695
        %v3188 = vpow.pop %v3187
        %v3189 = vadd.f32 %v3188, 1.0
        %v3190 = vrcp.pop %v3189
        %v3191 = vmul.f32 1.0, %v3190
        %v3192 = vmul.f32 %v3184, %v3078
        %v3193 = vmul.f32 %v3178, %v3185
        %v3194 = vadd.f32 %v3192, %v3193
        %v3195 = vtanh.pop %v3194
        %v3196 = vmul.f32 %v3191, %v3195
        %v3197 = vpack.c.bf16 %v3196, %v3196
        %3198 = vst [vmem:[#allocation3 + $0x18] sm:$0xf] %v3197
        %v3199 = vld [vmem:[#allocation2 + $0xe0] sm:$0xff]
        %v3200 = vld [vmem:[#allocation2 + $0xe8] sm:$0xff]
        %v3201 = vld [vmem:[#allocation2 + $0xf0] sm:$0xff]
        %v3202 = vld [vmem:[#allocation2 + $0xf8] sm:$0xff]
        %3203 = vmatprep.subr.bf16.mxu0 %v2356
        %3204 = vmatpush1.bf16.msra.mxu0 %v2355
        %3205 = vmatprep.subr.bf16.mxu0 %v2352
        %3206 = vmatpush1.bf16.msra.mxu0 %v2351
        %3207 = vmatprep.subr.bf16.mxu0 %v2348
        %3208 = vmatpush1.bf16.msra.mxu0 %v2347
        %3209 = vmatprep.subr.bf16.mxu0 %v2344
        %3210 = vmatpush1.bf16.msra.mxu0 %v2343
        %3211 = vmatprep.subr.bf16.mxu0 %v2340
        %3212 = vmatpush1.bf16.msra.mxu0 %v2339
        %3213 = vmatprep.subr.bf16.mxu0 %v2336
        %3214 = vmatpush1.bf16.msra.mxu0 %v2335
        %3215 = vmatprep.subr.bf16.mxu0 %v2332
        %3216 = vmatpush1.bf16.msra.mxu0 %v2331
        %3217 = vmatprep.subr.bf16.mxu0 %v2328
        %3218 = vmatpush1.bf16.msra.mxu0 %v2327
        %3219 = vmatprep.subr.bf16.mxu0 0
        %3220 = vmatpush2.bf16.msra.mxu0 0
        %3221 = vmatprep.subr.bf16.mxu0 0
        %3222 = vmatpush2.bf16.msra.mxu0 0
        %3223 = vmatprep.subr.bf16.mxu0 0
        %3224 = vmatpush2.bf16.msra.mxu0 0
        %3225 = vmatprep.subr.bf16.mxu0 0
        %3226 = vmatpush2.bf16.msra.mxu0 0
        %3227 = vmatprep.subr.bf16.mxu0 0
        %3228 = vmatpush2.bf16.msra.mxu0 0
        %3229 = vmatprep.subr.bf16.mxu0 0
        %3230 = vmatpush2.bf16.msra.mxu0 0
        %3231 = vmatprep.subr.bf16.mxu0 0
        %3232 = vmatpush2.bf16.msra.mxu0 0
        %3233 = vmatprep.subr.bf16.mxu0 0
        %3234 = vmatpush2.bf16.msra.mxu0 0
        %3235 = vmatprep.mubr.bf16.mxu0 0
        %3236 = vmatmul.mubr.bf16.gmra.mxu0 %v3197
        %v3237 = vpop.f32.mrf.mxu0
        %v3238 = vadd.f32 0.0, %v3237
        %v3239 = vpop.f32.mrf.mxu0
        %v3240 = vadd.f32 0.0, %v3239
        %v3241 = vpop.f32.mrf.mxu0
        %v3242 = vpop.f32.mrf.mxu0
        %3243 = vdwg.mxu0
        %3244 = vmatprep.subr.bf16.mxu0 %v2358
        %3245 = vmatpush1.bf16.msra.mxu0 %v2357
        %3246 = vmatprep.subr.bf16.mxu0 %v2354
        %3247 = vmatpush1.bf16.msra.mxu0 %v2353
        %3248 = vmatprep.subr.bf16.mxu0 %v2350
        %3249 = vmatpush1.bf16.msra.mxu0 %v2349
        %3250 = vmatprep.subr.bf16.mxu0 %v2346
        %3251 = vmatpush1.bf16.msra.mxu0 %v2345
        %3252 = vmatprep.subr.bf16.mxu0 %v2342
        %3253 = vmatpush1.bf16.msra.mxu0 %v2341
        %3254 = vmatprep.subr.bf16.mxu0 %v2338
        %3255 = vmatpush1.bf16.msra.mxu0 %v2337
        %3256 = vmatprep.subr.bf16.mxu0 %v2334
        %3257 = vmatpush1.bf16.msra.mxu0 %v2333
        %3258 = vmatprep.subr.bf16.mxu0 %v2330
        %3259 = vmatpush1.bf16.msra.mxu0 %v2329
        %3260 = vmatprep.subr.bf16.mxu0 0
        %3261 = vmatpush2.bf16.msra.mxu0 0
        %3262 = vmatprep.subr.bf16.mxu0 0
        %3263 = vmatpush2.bf16.msra.mxu0 0
        %3264 = vmatprep.subr.bf16.mxu0 0
        %3265 = vmatpush2.bf16.msra.mxu0 0
        %3266 = vmatprep.subr.bf16.mxu0 0
        %3267 = vmatpush2.bf16.msra.mxu0 0
        %3268 = vmatprep.subr.bf16.mxu0 0
        %3269 = vmatpush2.bf16.msra.mxu0 0
        %3270 = vmatprep.subr.bf16.mxu0 0
        %3271 = vmatpush2.bf16.msra.mxu0 0
        %3272 = vmatprep.subr.bf16.mxu0 0
        %3273 = vmatpush2.bf16.msra.mxu0 0
        %3274 = vmatprep.subr.bf16.mxu0 0
        %3275 = vmatpush2.bf16.msra.mxu0 0
        %3276 = vmatprep.mubr.bf16.mxu0 0
        %3277 = vmatmul.mubr.bf16.gmra.mxu0 %v3197
        %v3278 = vpop.f32.mrf.mxu0
        %v3279 = vadd.f32 0.0, %v3278
        %v3280 = vpop.f32.mrf.mxu0
        %v3281 = vadd.f32 0.0, %v3280
        %v3282 = vpop.f32.mrf.mxu0
        %v3283 = vpop.f32.mrf.mxu0
        %3284 = vdwg.mxu0
        %v3285 = vadd.f32 %v3199, %v3238
        %v3286 = vadd.f32 %v3200, %v3240
        %v3287 = vadd.f32 %v3201, %v3279
        %v3288 = vadd.f32 %v3202, %v3281
        %v3289 = vxor.u32 %v3285, 2147483648
        %v3290 = vmul.f32 %v3289, 1.442695
        %v3291 = vpow.pop %v3290
        %v3292 = vadd.f32 %v3291, 1.0
        %v3293 = vrcp.pop %v3292
        %v3294 = vmul.f32 1.0, %v3293
        %v3295 = vxor.u32 %v3286, 2147483648
        %v3296 = vmul.f32 %v3295, 1.442695
        %v3297 = vpow.pop %v3296
        %v3298 = vadd.f32 %v3297, 1.0
        %v3299 = vrcp.pop %v3298
        %v3300 = vmul.f32 1.0, %v3299
        %v3301 = vtanh.pop %v3287
        %v3302 = vxor.u32 %v3288, 2147483648
        %v3303 = vmul.f32 %v3302, 1.442695
        %v3304 = vpow.pop %v3303
        %v3305 = vadd.f32 %v3304, 1.0
        %v3306 = vrcp.pop %v3305
        %v3307 = vmul.f32 1.0, %v3306
        %v3308 = vmul.f32 %v3300, %v3194
        %v3309 = vmul.f32 %v3294, %v3301
        %v3310 = vadd.f32 %v3308, %v3309
        %v3311 = vtanh.pop %v3310
        %v3312 = vmul.f32 %v3307, %v3311
        %v3313 = vpack.c.bf16 %v3312, %v3312
        %3314 = vst [vmem:[#allocation3 + $0x1c] sm:$0xf] %v3313
        %s3315 = scalar_lea.vmem %s346, 8 [#allocation10]
        %3316 = vst [vmem:[%s3315] sm:$0xff] %v3312
        %s3317 = scalar_lea.vmem %s353, 8 [#allocation11]
        %3318 = vst [vmem:[%s3317] sm:$0xff] %v3310
        %s3319 = sand.u32 %s188, 1
        %s3320 = scalar_lea.sflag [#allocation6], %s3319
        %s3321 = sand.u32 %s188, 1
        %s3322 = smul.addr %s3321, 16
        %s3323 = scalar_lea.vmem [#allocation10], %s3322
        %s3324 = sand.u32 %s214, 1
        %s3325 = scalar_lea.sflag [#allocation12], %s3324
        %s3326 = sand.u32 %s214, 1
        %s3327 = smul.addr %s3326, 16
        %s3328 = scalar_lea.vmem [#allocation11], %s3327
        // Predicated region
        $region61: #{tpu_custom_call.1} parent=47 // pred_check
          %p3329 = pneg %p198
        $region62: #{tpu_custom_call.1} parent=47 // pred_check_branch
          %3331 = sbr.rel (%p3329) target = $region64
        $region63: #{tpu_custom_call.1} parent=47 // pred_region
          %s3333 = ssub.s32 256, 256
          %3334 = vsyncadd %s3320, %s3333
          %s3335 = smul.addr %s28, 2
          %s3336 = smul.addr %s3335, 128
          %s3337 = scalar_lea.hbm %s7, %s3336
          %s3338 = sshll.u32 %s3323, 4
          %s3339 = int_to_ptr.vmem [resolvable:$true] %s3338
          %3344 = dma.vmem_to_hbm [thread:$0]  %s3339, 256, %s3337, %s3320, 128, 128, 8
        $region64: #{tpu_custom_call.1} parent=47 // pred_fallthru
          _
        // Predicated region
        $region65: #{tpu_custom_call.1} parent=47 // pred_check
          %p3345 = pneg %p224
        $region66: #{tpu_custom_call.1} parent=47 // pred_check_branch
          %3347 = sbr.rel (%p3345) target = $region68
        $region67: #{tpu_custom_call.1} parent=47 // pred_region
          %s3349 = ssub.s32 256, 256
          %3350 = vsyncadd %s3325, %s3349
          %s3351 = smul.addr %s28, 2
          %s3352 = smul.addr %s3351, 128
          %s3353 = scalar_lea.hbm %s8, %s3352
          %s3354 = sshll.u32 %s3328, 4
          %s3355 = int_to_ptr.vmem [resolvable:$true] %s3354
          %3360 = dma.vmem_to_hbm [thread:$0]  %s3355, 256, %s3353, %s3325, 128, 128, 8
        $region68: #{tpu_custom_call.1} parent=47 // pred_fallthru
          _
      $region48: #{tpu_custom_call.1} parent=5 // pred_fallthru
        _
      %p3361 = scmp.le.s32.totalorder 2, %s23
      // Predicated region
      $region69: #{tpu_custom_call.1} parent=5 // pred_check
        %p3362 = pneg %p3361
      $region70: #{tpu_custom_call.1} parent=5 // pred_check_branch
        %3364 = sbr.rel (%p3362) target = $region72
      $region71: #{tpu_custom_call.1} parent=5 // pred_region
        %s3365 = ssub.s32 %s23, 2
        // Predicated region
        $region73: #{tpu_custom_call.1} parent=71 // pred_check
          %p3366 = pneg %p204
        $region74: #{tpu_custom_call.1} parent=71 // pred_check_branch
          %3368 = sbr.rel (%p3366) target = $region76
        $region75: #{tpu_custom_call.1} parent=71 // pred_region
          %s3369 = sand.u32 %s189, 1
          %s3370 = scalar_lea.sflag [#allocation6], %s3369
          %s3371 = sand.u32 %s189, 1
          %s3372 = smul.addr %s3371, 16
          %s3373 = scalar_lea.vmem [#allocation10], %s3372
          %3374 = dma.done %s3370, 256
        $region76: #{tpu_custom_call.1} parent=71 // pred_fallthru
          _
        // Predicated region
        $region77: #{tpu_custom_call.1} parent=71 // pred_check
          %p3375 = pneg %p230
        $region78: #{tpu_custom_call.1} parent=71 // pred_check_branch
          %3377 = sbr.rel (%p3375) target = $region80
        $region79: #{tpu_custom_call.1} parent=71 // pred_region
          %s3378 = sand.u32 %s215, 1
          %s3379 = scalar_lea.sflag [#allocation12], %s3378
          %s3380 = sand.u32 %s215, 1
          %s3381 = smul.addr %s3380, 16
          %s3382 = scalar_lea.vmem [#allocation11], %s3381
          %3383 = dma.done %s3379, 256
        $region80: #{tpu_custom_call.1} parent=71 // pred_fallthru
          _
      $region72: #{tpu_custom_call.1} parent=5 // pred_fallthru
        _
    $region6: #{tpu_custom_call.1} parent=1 // loop_footer
      %s27 = sadd.s32 1, %s23
    $region7: #{tpu_custom_call.1} parent=1 // loop_footer_branch
      %22 = sbr.rel target = $region3
    $region8: #{tpu_custom_call.1} parent=1 // loop_exit
      _
    %3384 = vsyncpa [#allocation5], 1
    %s3385 = scalar_lea.sflag [#allocation5], 1
    %3386 = vsyncpa %s3385, 1
    %3387 = vsyncpa [#allocation8], 1
    %3388 = vsyncpa [#allocation6], 1
    %s3389 = scalar_lea.sflag [#allocation6], 1
    %3390 = vsyncpa %s3389, 1
    %3391 = vsyncpa [#allocation12], 1
    %s3392 = scalar_lea.sflag [#allocation12], 1
    %3393 = vsyncpa %s3392, 1

</llo_original>
